<compile_context>
chip_gen: v5e
topology: v5e:2x2
jax: 0.10.0
libtpu: 0.0.40
codegen_flags: <defaults>
</compile_context>

<pallas_src>
import functools

import jax
import jax.numpy as jnp
from jax.experimental import pallas as pl
from jax.experimental.pallas import tpu as pltpu

LN_EPS = 1e-5          # PyTorch nn.LayerNorm default
ATTN_CHUNK = 512       # max keys live per online-softmax step


def _layer_norm(x, gamma, beta):
    mean = jnp.mean(x, axis=-1, keepdims=True)
    var = jnp.mean(jnp.square(x - mean), axis=-1, keepdims=True)
    return (x - mean) * jax.lax.rsqrt(var + LN_EPS) * gamma + beta


def fused_layer_kernel(num_heads,
                       block_type_ref,
                       x0_ref, x1_ref,
                       wqkv_ref, bqkv_ref, wo_ref, bo_ref,
                       g1_ref, be1_ref,
                       w1_ref, b1_ref, w2_ref, b2_ref,
                       g2_ref, be2_ref,
                       o0_ref, o1_ref):
    """One (batch, layer) grid step: applies layer l to both feats0 and feats1."""
    l = pl.program_id(1)

    # Features live in the resident output blocks (block index constant over the
    # layer axis); initialize them from the inputs at the first layer.
    @pl.when(l == 0)
    def _init():
        o0_ref[...] = x0_ref[...]
        o1_ref[...] = x1_ref[...]

    d_model = x0_ref.shape[-1]
    dh = d_model // num_heads

    # Current layer's parameters (only this layer is resident in VMEM).
    wqkv = wqkv_ref[0]      # (D, 3D) bf16, Q columns pre-scaled by 1/sqrt(dh)
    bqkv = bqkv_ref[0]      # (1, 3D) f32
    wo, bo = wo_ref[0], bo_ref[0]
    g1, be1 = g1_ref[0], be1_ref[0]
    w1, b1 = w1_ref[0], b1_ref[0]
    w2, b2 = w2_ref[0], b2_ref[0]
    g2, be2 = g2_ref[0], be2_ref[0]

    def attention(q, k, v):
        # q: (N, D) f32; k, v: (M, D) f32.  Online softmax over chunks of M keys
        # so the live (H, N, chunk) score/prob tensors stay bounded in VMEM.
        n, m = q.shape[0], k.shape[0]
        q3 = jnp.swapaxes(q.reshape(n, num_heads, dh), 0, 1).astype(jnp.bfloat16)
        k3 = jnp.swapaxes(k.reshape(m, num_heads, dh), 0, 1).astype(jnp.bfloat16)
        v3 = jnp.swapaxes(v.reshape(m, num_heads, dh), 0, 1).astype(jnp.bfloat16)

        m_acc = jnp.full((num_heads, n, 1), -jnp.inf, jnp.float32)
        l_acc = jnp.zeros((num_heads, n, 1), jnp.float32)
        o_acc = jnp.zeros((num_heads, n, dh), jnp.float32)
        # m is a trace-time constant -> static (unrolled) chunk loop.
        for start in range(0, m, ATTN_CHUNK):
            stop = min(start + ATTN_CHUNK, m)
            kc = k3[:, start:stop, :]
            vc = v3[:, start:stop, :]
            # 1/sqrt(dh) is folded into the Q weights/bias host-side.
            s = jnp.einsum('hnd,hmd->hnm', q3, kc,
                           preferred_element_type=jnp.float32)
            m_new = jnp.maximum(m_acc, jnp.max(s, axis=-1, keepdims=True))
            alpha = jnp.exp(m_acc - m_new)
            p = jnp.exp(s - m_new)
            l_acc = alpha * l_acc + jnp.sum(p, axis=-1, keepdims=True)
            o_acc = alpha * o_acc + jnp.einsum(
                'hnm,hmd->hnd', p.astype(jnp.bfloat16), vc,
                preferred_element_type=jnp.float32)
            m_acc = m_new
        # approx reciprocal (EUP slot): rows do not sum to exactly 1.
        out = o_acc * pl.reciprocal(l_acc, approx=True)
        return jnp.swapaxes(out, 0, 1).reshape(n, d_model)   # 'h n c -> n (h c)'

    def layer(x, mem, is_self):
        # TODO(synk): memory_masks / key_weights / attention_factors (all None by
        # default in the module) are not implemented.
        x_b = x.astype(jnp.bfloat16)
        if is_self:
            qkv = jnp.dot(x_b, wqkv, preferred_element_type=jnp.float32) + bqkv
            q = qkv[:, :d_model]
            k = qkv[:, d_model:2 * d_model]
            v = qkv[:, 2 * d_model:]
        else:
            mem_b = mem.astype(jnp.bfloat16)
            q = (jnp.dot(x_b, wqkv[:, :d_model],
                         preferred_element_type=jnp.float32) + bqkv[:, :d_model])
            kv = (jnp.dot(mem_b, wqkv[:, d_model:],
                          preferred_element_type=jnp.float32) + bqkv[:, d_model:])
            k = kv[:, :d_model]
            v = kv[:, d_model:]

        hidden = attention(q, k, v)
        # AttentionLayer: output linear + residual + LayerNorm (dropout=None).
        hidden = (jnp.dot(hidden.astype(jnp.bfloat16), wo,
                          preferred_element_type=jnp.float32) + bo)
        h1 = _layer_norm(hidden + x, g1, be1)
        # AttentionOutput: expand(2D) -> ReLU -> squeeze(D) -> residual -> LN.
        e = jnp.dot(h1.astype(jnp.bfloat16), w1,
                    preferred_element_type=jnp.float32) + b1
        e = jnp.maximum(e, 0.0)
        sqz = jnp.dot(e.astype(jnp.bfloat16), w2,
                      preferred_element_type=jnp.float32) + b2
        return _layer_norm(h1 + sqz, g2, be2)

    is_self = block_type_ref[l] == 0

    @pl.when(is_self)
    def _self_block():
        f0 = o0_ref[0].astype(jnp.float32)
        f1 = o1_ref[0].astype(jnp.float32)
        o0_ref[0] = layer(f0, f0, True).astype(o0_ref.dtype)
        o1_ref[0] = layer(f1, f1, True).astype(o1_ref.dtype)

    @pl.when(jnp.logical_not(is_self))
    def _cross_block():
        f0 = o0_ref[0].astype(jnp.float32)
        f1 = o1_ref[0].astype(jnp.float32)
        nf0 = layer(f0, f1, False)                 # feats0 attends over feats1
        o0_ref[0] = nf0.astype(o0_ref.dtype)
        # feats1 attends over the UPDATED feats0, exactly like PyTorch.
        o1_ref[0] = layer(f1, nf0, False).astype(o1_ref.dtype)


def pack_layer_params(layer_params, num_heads, d_model):
    """Pre-transpose weights, fuse QKV, fold 1/sqrt(dh) into Q, cast to bf16."""
    dh = d_model // num_heads
    scale = 1.0 / (dh ** 0.5)
    keys = ('wqkv', 'bqkv', 'wo', 'bo', 'g1', 'be1',
            'w1', 'b1', 'w2', 'b2', 'g2', 'be2')
    packed = {k: [] for k in keys}
    for p in layer_params:
        wq = p['wq'] * scale
        bq = p['bq'] * scale
        wqkv = jnp.concatenate([wq.T, p['wk'].T, p['wv'].T], axis=1)
        packed['wqkv'].append(wqkv.astype(jnp.bfloat16))
        packed['bqkv'].append(jnp.concatenate([bq, p['bk'], p['bv']], axis=1))
        packed['wo'].append(p['wo'].T.astype(jnp.bfloat16))
        packed['bo'].append(p['bo'])
        packed['g1'].append(p['ln1_g'])
        packed['be1'].append(p['ln1_b'])
        packed['w1'].append(p['w1'].T.astype(jnp.bfloat16))
        packed['b1'].append(p['b1'])
        packed['w2'].append(p['w2'].T.astype(jnp.bfloat16))
        packed['b2'].append(p['b2'])
        packed['g2'].append(p['ln2_g'])
        packed['be2'].append(p['ln2_b'])
    return [jnp.stack(packed[k]) for k in keys]


def _vmem_limit_bytes(n0, n1, d, num_heads):
    """Rough VMEM footprint -> explicit scoped limit (clamped to v7x 64 MiB)."""
    bf16, f32 = 2, 4
    w = (3 * d * d + d * d + 2 * d * d + 2 * d * d) * bf16     # wqkv, wo, w1, w2
    b = (3 * d + d + 2 * d + d + 4 * d) * f32                  # biases + LN params
    weights = 2 * (w + b)                                      # double-buffered
    feats = (n0 + n1) * d * f32 * 3                            # inputs + resident outs
    n = max(n0, n1)
    chunk = min(ATTN_CHUNK, n)
    act = n * (3 * d + 2 * d + 2 * d) * f32                    # qkv / expand / etc.
    act += 2 * num_heads * n * chunk * f32                     # scores + probs
    act += num_heads * n * (d // num_heads + 2) * f32          # m/l/acc
    est = weights + feats + act
    return int(min(64 * 2 ** 20, max(32 * 2 ** 20, 4 * est)))


def _cost_estimate(blocks, batch, n0, n1, d, num_heads):
    def update(n, m, is_self):
        flops = (2 * n * d * 3 * d) if is_self else (2 * n * d * d + 2 * m * d * 2 * d)
        flops += 4 * n * m * d                   # QK^T + PV
        flops += 2 * n * d * d                   # output projection
        flops += 2 * n * d * 2 * d               # expand
        flops += 2 * n * 2 * d * d               # squeeze
        return flops, num_heads * n * m          # exp count
    flops = trans = 0
    for blk in blocks:
        if blk == 'self':
            parts = (update(n0, n0, True), update(n1, n1, True))
        else:
            parts = (update(n0, n1, False), update(n1, n0, False))
        flops += parts[0][0] + parts[1][0]
        trans += parts[0][1] + parts[1][1]
    w_bytes = len(blocks) * (8 * d * d * 2 + 11 * d * 4)
    feat_bytes = 2 * batch * (n0 + n1) * d * 4
    return pl.CostEstimate(flops=batch * flops,
                           transcendentals=batch * trans,
                           bytes_accessed=w_bytes + feat_bytes)


def vanilla_conditional_transformer(feats0, feats1, blocks, layer_params,
                                    num_heads, masks0=None, masks1=None):
    """Matches VanillaConditionalTransformer.forward (masks=None, no scores)."""
    for block in blocks:
        if block not in ('self', 'cross'):
            raise ValueError('Unsupported block type "{}".'.format(block))
    if masks0 is not None or masks1 is not None:
        # TODO(synk): memory_masks are not implemented in the kernel.
        raise NotImplementedError('memory masks are not supported')

    B, N0, D = feats0.shape
    _, N1, _ = feats1.shape
    L = len(blocks)

    weights = pack_layer_params(layer_params, num_heads, D)
    block_types = jnp.asarray([0 if b == 'self' else 1 for b in blocks],
                              dtype=jnp.int32)

    # index_maps receive (b, l, *scalar_prefetch_refs).
    feat0_spec = pl.BlockSpec((1, N0, D), lambda b, l, bt: (b, 0, 0))
    feat1_spec = pl.BlockSpec((1, N1, D), lambda b, l, bt: (b, 0, 0))

    def weight_spec(arr):
        # One layer's slice per grid step; pipeline prefetches layer l+1's
        # weights under layer l's compute.
        return pl.BlockSpec((1,) + arr.shape[1:], lambda b, l, bt: (l, 0, 0))

    grid_spec = pltpu.PrefetchScalarGridSpec(
        num_scalar_prefetch=1,
        grid=(B, L),
        in_specs=[feat0_spec, feat1_spec] + [weight_spec(w) for w in weights],
        out_specs=[feat0_spec, feat1_spec],
    )

    # TODO(synk): with B=1 on v7x one TensorCore is idle; split the independent
    # feats0/feats1 'self' updates across cores (core_map) if that case matters.
    # TODO(synk): D=32 outputs are not lane-dense (masked stores); pad/pack the
    # channel axis to 128 (with LN masking) if stores become the bottleneck.
    out0, out1 = pl.pallas_call(
        functools.partial(fused_layer_kernel, num_heads),
        out_shape=(jax.ShapeDtypeStruct((B, N0, D), feats0.dtype),
                   jax.ShapeDtypeStruct((B, N1, D), feats1.dtype)),
        grid_spec=grid_spec,
        compiler_params=pltpu.CompilerParams(
            dimension_semantics=("parallel", "arbitrary"),
            vmem_limit_bytes=_vmem_limit_bytes(N0, N1, D, num_heads)),
        cost_estimate=_cost_estimate(blocks, B, N0, N1, D, num_heads),
    )(block_types, feats0, feats1, *weights)
    return out0, out1


def init_layer_params(key, d_model):
    ks = jax.random.split(key, 12)

    def lin_w(k, out_d, in_d):
        return jax.random.normal(k, (out_d, in_d), jnp.float32) * 0.02

    def lin_b(k, out_d):
        return jax.random.normal(k, (1, out_d), jnp.float32) * 0.01

    return {
        'wq': lin_w(ks[0], d_model, d_model), 'bq': lin_b(ks[1], d_model),
        'wk': lin_w(ks[2], d_model, d_model), 'bk': lin_b(ks[3], d_model),
        'wv': lin_w(ks[4], d_model, d_model), 'bv': lin_b(ks[5], d_model),
        'wo': lin_w(ks[6], d_model, d_model), 'bo': lin_b(ks[7], d_model),
        'ln1_g': jnp.ones((1, d_model), jnp.float32),
        'ln1_b': jnp.zeros((1, d_model), jnp.float32),
        'w1': lin_w(ks[8], 2 * d_model, d_model), 'b1': lin_b(ks[9], 2 * d_model),
        'w2': lin_w(ks[10], d_model, 2 * d_model), 'b2': lin_b(ks[11], d_model),
        'ln2_g': jnp.ones((1, d_model), jnp.float32),
        'ln2_b': jnp.zeros((1, d_model), jnp.float32),
    }


if __name__ == "__main__":
    blocks = ['self', 'cross']
    d_model = 32
    num_heads = 4
    B, N0, N1 = 2, 8, 16

    key = jax.random.PRNGKey(0)
    k_f0, k_f1, k_params = jax.random.split(key, 3)
    feats0 = jax.random.normal(k_f0, (B, N0, d_model), jnp.float32)
    feats1 = jax.random.normal(k_f1, (B, N1, d_model), jnp.float32)

    layer_keys = jax.random.split(k_params, len(blocks))
    layer_params = [init_layer_params(k, d_model) for k in layer_keys]

    out0, out1 = vanilla_conditional_transformer(
        feats0, feats1, blocks, layer_params, num_heads)
    jax.block_until_ready((out0, out1))

    assert out0.shape == (B, N0, d_model) and out1.shape == (B, N1, d_model)
    assert jnp.all(jnp.isfinite(out0)) and jnp.all(jnp.isfinite(out1))
    print("KERNEL_OK")
</pallas_src>

<mosaic_0001>
module attributes {stable_mosaic.version = 11 : i64} {
  func.func @fused_layer_kernel(%arg0: i32, %arg1: i32, %arg2: memref<2xi32, #tpu.memory_space<smem>>, %arg3: memref<1x8x32xf32, #tpu.memory_space<vmem>>, %arg4: memref<1x16x32xf32, #tpu.memory_space<vmem>>, %arg5: memref<1x32x96xbf16, #tpu.memory_space<vmem>>, %arg6: memref<1x1x96xf32, #tpu.memory_space<vmem>>, %arg7: memref<1x32x32xbf16, #tpu.memory_space<vmem>>, %arg8: memref<1x1x32xf32, #tpu.memory_space<vmem>>, %arg9: memref<1x1x32xf32, #tpu.memory_space<vmem>>, %arg10: memref<1x1x32xf32, #tpu.memory_space<vmem>>, %arg11: memref<1x32x64xbf16, #tpu.memory_space<vmem>>, %arg12: memref<1x1x64xf32, #tpu.memory_space<vmem>>, %arg13: memref<1x64x32xbf16, #tpu.memory_space<vmem>>, %arg14: memref<1x1x32xf32, #tpu.memory_space<vmem>>, %arg15: memref<1x1x32xf32, #tpu.memory_space<vmem>>, %arg16: memref<1x1x32xf32, #tpu.memory_space<vmem>>, %arg17: memref<1x8x32xf32, #tpu.memory_space<vmem>>, %arg18: memref<1x16x32xf32, #tpu.memory_space<vmem>>) attributes {dimension_semantics = [#tpu.dimension_semantics<parallel>, #tpu.dimension_semantics<arbitrary>], iteration_bounds = array<i64: 2, 2>, scalar_prefetch = 1 : i64, scratch_operands = 0 : i64, tpu.core_type = #tpu.core_type<tc>, window_params = [{transform_indices = @transform_0, window_bounds = array<i64: 1, 8, 32>}, {transform_indices = @transform_1, window_bounds = array<i64: 1, 16, 32>}, {transform_indices = @transform_2, window_bounds = array<i64: 1, 32, 96>}, {transform_indices = @transform_3, window_bounds = array<i64: 1, 1, 96>}, {transform_indices = @transform_4, window_bounds = array<i64: 1, 32, 32>}, {transform_indices = @transform_5, window_bounds = array<i64: 1, 1, 32>}, {transform_indices = @transform_6, window_bounds = array<i64: 1, 1, 32>}, {transform_indices = @transform_7, window_bounds = array<i64: 1, 1, 32>}, {transform_indices = @transform_8, window_bounds = array<i64: 1, 32, 64>}, {transform_indices = @transform_9, window_bounds = array<i64: 1, 1, 64>}, {transform_indices = @transform_10, window_bounds = array<i64: 1, 64, 32>}, {transform_indices = @transform_11, window_bounds = array<i64: 1, 1, 32>}, {transform_indices = @transform_12, window_bounds = array<i64: 1, 1, 32>}, {transform_indices = @transform_13, window_bounds = array<i64: 1, 1, 32>}, {transform_indices = @transform_14, window_bounds = array<i64: 1, 8, 32>}, {transform_indices = @transform_15, window_bounds = array<i64: 1, 16, 32>}]} {
    %c0_i32 = arith.constant 0 : i32
    %0 = arith.cmpi eq, %arg1, %c0_i32 : i32
    %1 = arith.extui %0 : i1 to i32
    %c0_i32_0 = arith.constant 0 : i32
    %2 = arith.cmpi ne, %1, %c0_i32_0 : i32
    scf.if %2 {
      %c0_39 = arith.constant 0 : index
      %c0_40 = arith.constant 0 : index
      %c0_41 = arith.constant 0 : index
      %35 = vector.load %arg3[%c0_39, %c0_40, %c0_41] : memref<1x8x32xf32, #tpu.memory_space<vmem>>, vector<1x8x32xf32>
      %c0_42 = arith.constant 0 : index
      %c0_43 = arith.constant 0 : index
      %c0_44 = arith.constant 0 : index
      %36 = vector.load %arg17[%c0_42, %c0_43, %c0_44] : memref<1x8x32xf32, #tpu.memory_space<vmem>>, vector<1x8x32xf32>
      tpu.vector_store %arg17[%c0_42, %c0_43, %c0_44], %35 {strides = array<i32>} : memref<1x8x32xf32, #tpu.memory_space<vmem>>, vector<1x8x32xf32>,
      %c0_45 = arith.constant 0 : index
      %c0_46 = arith.constant 0 : index
      %c0_47 = arith.constant 0 : index
      %37 = vector.load %arg4[%c0_45, %c0_46, %c0_47] : memref<1x16x32xf32, #tpu.memory_space<vmem>>, vector<1x16x32xf32>
      %c0_48 = arith.constant 0 : index
      %c0_49 = arith.constant 0 : index
      %c0_50 = arith.constant 0 : index
      %38 = vector.load %arg18[%c0_48, %c0_49, %c0_50] : memref<1x16x32xf32, #tpu.memory_space<vmem>>, vector<1x16x32xf32>
      tpu.vector_store %arg18[%c0_48, %c0_49, %c0_50], %37 {strides = array<i32>} : memref<1x16x32xf32, #tpu.memory_space<vmem>>, vector<1x16x32xf32>,
    } else {
    }
    %c0 = arith.constant 0 : index
    %c0_1 = arith.constant 0 : index
    %c0_2 = arith.constant 0 : index
    %3 = vector.load %arg5[%c0, %c0_1, %c0_2] : memref<1x32x96xbf16, #tpu.memory_space<vmem>>, vector<1x32x96xbf16>
    %4 = vector.shape_cast %3 : vector<1x32x96xbf16> to vector<32x96xbf16>
    %c0_3 = arith.constant 0 : index
    %c0_4 = arith.constant 0 : index
    %c0_5 = arith.constant 0 : index
    %5 = vector.load %arg6[%c0_3, %c0_4, %c0_5] : memref<1x1x96xf32, #tpu.memory_space<vmem>>, vector<1x1x96xf32>
    %6 = vector.shape_cast %5 : vector<1x1x96xf32> to vector<1x96xf32>
    %c0_6 = arith.constant 0 : index
    %c0_7 = arith.constant 0 : index
    %c0_8 = arith.constant 0 : index
    %7 = vector.load %arg7[%c0_6, %c0_7, %c0_8] : memref<1x32x32xbf16, #tpu.memory_space<vmem>>, vector<1x32x32xbf16>
    %8 = vector.shape_cast %7 : vector<1x32x32xbf16> to vector<32x32xbf16>
    %c0_9 = arith.constant 0 : index
    %c0_10 = arith.constant 0 : index
    %c0_11 = arith.constant 0 : index
    %9 = vector.load %arg8[%c0_9, %c0_10, %c0_11] : memref<1x1x32xf32, #tpu.memory_space<vmem>>, vector<1x1x32xf32>
    %10 = vector.shape_cast %9 : vector<1x1x32xf32> to vector<1x32xf32>
    %c0_12 = arith.constant 0 : index
    %c0_13 = arith.constant 0 : index
    %c0_14 = arith.constant 0 : index
    %11 = vector.load %arg9[%c0_12, %c0_13, %c0_14] : memref<1x1x32xf32, #tpu.memory_space<vmem>>, vector<1x1x32xf32>
    %12 = vector.shape_cast %11 : vector<1x1x32xf32> to vector<1x32xf32>
    %c0_15 = arith.constant 0 : index
    %c0_16 = arith.constant 0 : index
    %c0_17 = arith.constant 0 : index
    %13 = vector.load %arg10[%c0_15, %c0_16, %c0_17] : memref<1x1x32xf32, #tpu.memory_space<vmem>>, vector<1x1x32xf32>
    %14 = vector.shape_cast %13 : vector<1x1x32xf32> to vector<1x32xf32>
    %c0_18 = arith.constant 0 : index
    %c0_19 = arith.constant 0 : index
    %c0_20 = arith.constant 0 : index
    %15 = vector.load %arg11[%c0_18, %c0_19, %c0_20] : memref<1x32x64xbf16, #tpu.memory_space<vmem>>, vector<1x32x64xbf16>
    %16 = vector.shape_cast %15 : vector<1x32x64xbf16> to vector<32x64xbf16>
    %c0_21 = arith.constant 0 : index
    %c0_22 = arith.constant 0 : index
    %c0_23 = arith.constant 0 : index
    %17 = vector.load %arg12[%c0_21, %c0_22, %c0_23] : memref<1x1x64xf32, #tpu.memory_space<vmem>>, vector<1x1x64xf32>
    %18 = vector.shape_cast %17 : vector<1x1x64xf32> to vector<1x64xf32>
    %c0_24 = arith.constant 0 : index
    %c0_25 = arith.constant 0 : index
    %c0_26 = arith.constant 0 : index
    %19 = vector.load %arg13[%c0_24, %c0_25, %c0_26] : memref<1x64x32xbf16, #tpu.memory_space<vmem>>, vector<1x64x32xbf16>
    %20 = vector.shape_cast %19 : vector<1x64x32xbf16> to vector<64x32xbf16>
    %c0_27 = arith.constant 0 : index
    %c0_28 = arith.constant 0 : index
    %c0_29 = arith.constant 0 : index
    %21 = vector.load %arg14[%c0_27, %c0_28, %c0_29] : memref<1x1x32xf32, #tpu.memory_space<vmem>>, vector<1x1x32xf32>
    %22 = vector.shape_cast %21 : vector<1x1x32xf32> to vector<1x32xf32>
    %c0_30 = arith.constant 0 : index
    %c0_31 = arith.constant 0 : index
    %c0_32 = arith.constant 0 : index
    %23 = vector.load %arg15[%c0_30, %c0_31, %c0_32] : memref<1x1x32xf32, #tpu.memory_space<vmem>>, vector<1x1x32xf32>
    %24 = vector.shape_cast %23 : vector<1x1x32xf32> to vector<1x32xf32>
    %c0_33 = arith.constant 0 : index
    %c0_34 = arith.constant 0 : index
    %c0_35 = arith.constant 0 : index
    %25 = vector.load %arg16[%c0_33, %c0_34, %c0_35] : memref<1x1x32xf32, #tpu.memory_space<vmem>>, vector<1x1x32xf32>
    %26 = vector.shape_cast %25 : vector<1x1x32xf32> to vector<1x32xf32>
    %27 = arith.index_cast %arg1 : i32 to index
    %28 = memref.load %arg2[%27] : memref<2xi32, #tpu.memory_space<smem>>
    %c0_i32_36 = arith.constant 0 : i32
    %29 = arith.cmpi eq, %28, %c0_i32_36 : i32
    %30 = arith.extui %29 : i1 to i32
    %c0_i32_37 = arith.constant 0 : i32
    %31 = arith.cmpi ne, %30, %c0_i32_37 : i32
    scf.if %31 {
      %c0_39 = arith.constant 0 : index
      %c0_40 = arith.constant 0 : index
      %c0_41 = arith.constant 0 : index
      %35 = vector.load %arg17[%c0_39, %c0_40, %c0_41] : memref<1x8x32xf32, #tpu.memory_space<vmem>>, vector<1x8x32xf32>
      %36 = vector.shape_cast %35 : vector<1x8x32xf32> to vector<8x32xf32>
      %c0_42 = arith.constant 0 : index
      %c0_43 = arith.constant 0 : index
      %c0_44 = arith.constant 0 : index
      %37 = vector.load %arg18[%c0_42, %c0_43, %c0_44] : memref<1x16x32xf32, #tpu.memory_space<vmem>>, vector<1x16x32xf32>
      %38 = vector.shape_cast %37 : vector<1x16x32xf32> to vector<16x32xf32>
      %39 = arith.truncf %36 : vector<8x32xf32> to vector<8x32xbf16>
      %cst = arith.constant dense<0.000000e+00> : vector<8x96xf32>
      %40 = tpu.matmul %39, %4, %cst {dimension_numbers = #tpu.dot_dimension_numbers<[1], [0], [0], [1], [0, 0, 1, 1], [], []>} : vector<8x32xbf16>, vector<32x96xbf16>, vector<8x96xf32> -> vector<8x96xf32>
      %41 = vector.broadcast %6 : vector<1x96xf32> to vector<8x96xf32>
      %42 = arith.addf %40, %41 : vector<8x96xf32>
      %43 = vector.extract_strided_slice %42 {offsets = [0, 0], sizes = [8, 32], strides = [1, 1]} : vector<8x96xf32> to vector<8x32xf32>
      %44 = vector.extract_strided_slice %42 {offsets = [0, 32], sizes = [8, 32], strides = [1, 1]} : vector<8x96xf32> to vector<8x32xf32>
      %45 = vector.extract_strided_slice %42 {offsets = [0, 64], sizes = [8, 32], strides = [1, 1]} : vector<8x96xf32> to vector<8x32xf32>
      %46 = vector.shape_cast %43 : vector<8x32xf32> to vector<8x4x8xf32>
      %47 = tpu.transpose %46, [1, 0, 2] : vector<8x4x8xf32> -> vector<4x8x8xf32>
      %48 = arith.truncf %47 : vector<4x8x8xf32> to vector<4x8x8xbf16>
      %49 = vector.shape_cast %44 : vector<8x32xf32> to vector<8x4x8xf32>
      %50 = tpu.transpose %49, [1, 0, 2] : vector<8x4x8xf32> -> vector<4x8x8xf32>
      %51 = arith.truncf %50 : vector<4x8x8xf32> to vector<4x8x8xbf16>
      %52 = vector.shape_cast %45 : vector<8x32xf32> to vector<8x4x8xf32>
      %53 = tpu.transpose %52, [1, 0, 2] : vector<8x4x8xf32> -> vector<4x8x8xf32>
      %54 = arith.truncf %53 : vector<4x8x8xf32> to vector<4x8x8xbf16>
      %cst_45 = arith.constant 0xFF800000 : f32
      %55 = vector.broadcast %cst_45 : f32 to vector<4x8x1xf32>
      %cst_46 = arith.constant 0.000000e+00 : f32
      %56 = vector.broadcast %cst_46 : f32 to vector<4x8x1xf32>
      %cst_47 = arith.constant 0.000000e+00 : f32
      %57 = vector.broadcast %cst_47 : f32 to vector<4x8x8xf32>
      "tpu.trace_start"() <{level = 10 : i32, message = "hnd,hmd->hnm"}> : () -> ()
      %cst_48 = arith.constant dense<0.000000e+00> : vector<4x8x8xf32>
      %58 = tpu.matmul %48, %51, %cst_48 {dimension_numbers = #tpu.dot_dimension_numbers<[2], [2], [1], [1], [0, 0, 0, 1, 1, 1], [0], [0]>} : vector<4x8x8xbf16>, vector<4x8x8xbf16>, vector<4x8x8xf32> -> vector<4x8x8xf32>
      "tpu.trace_stop"() : () -> ()
      %cst_49 = arith.constant dense<0xFF800000> : vector<4x8xf32>
      %59 = vector.multi_reduction <maximumf>, %58, %cst_49 [2] : vector<4x8x8xf32> to vector<4x8xf32>
      %60 = vector.shape_cast %59 : vector<4x8xf32> to vector<4x8x1xf32>
      %61 = arith.maximumf %55, %60 : vector<4x8x1xf32>
      %62 = arith.subf %55, %61 : vector<4x8x1xf32>
      %63 = math.exp %62 : vector<4x8x1xf32>
      %64 = vector.broadcast %61 : vector<4x8x1xf32> to vector<4x8x8xf32>
      %65 = arith.subf %58, %64 : vector<4x8x8xf32>
      %66 = math.exp %65 : vector<4x8x8xf32>
      %67 = arith.mulf %63, %56 : vector<4x8x1xf32>
      %cst_50 = arith.constant dense<0.000000e+00> : vector<4x8xf32>
      %68 = vector.multi_reduction <add>, %66, %cst_50 [2] : vector<4x8x8xf32> to vector<4x8xf32>
      %69 = vector.shape_cast %68 : vector<4x8xf32> to vector<4x8x1xf32>
      %70 = arith.addf %67, %69 : vector<4x8x1xf32>
      %71 = vector.broadcast %63 : vector<4x8x1xf32> to vector<4x8x8xf32>
      %72 = arith.mulf %71, %57 : vector<4x8x8xf32>
      %73 = arith.truncf %66 : vector<4x8x8xf32> to vector<4x8x8xbf16>
      "tpu.trace_start"() <{level = 10 : i32, message = "hnm,hmd->hnd"}> : () -> ()
      %cst_51 = arith.constant dense<0.000000e+00> : vector<4x8x8xf32>
      %74 = tpu.matmul %73, %54, %cst_51 {dimension_numbers = #tpu.dot_dimension_numbers<[2], [1], [1], [2], [0, 0, 0, 1, 1, 2], [0], [0]>} : vector<4x8x8xbf16>, vector<4x8x8xbf16>, vector<4x8x8xf32> -> vector<4x8x8xf32>
      "tpu.trace_stop"() : () -> ()
      %75 = arith.addf %72, %74 : vector<4x8x8xf32>
      %76 = tpu.reciprocal %70 {approx = true} : vector<4x8x1xf32> -> vector<4x8x1xf32>
      %77 = vector.broadcast %76 : vector<4x8x1xf32> to vector<4x8x8xf32>
      %78 = arith.mulf %75, %77 : vector<4x8x8xf32>
      %79 = tpu.transpose %78, [1, 0, 2] : vector<4x8x8xf32> -> vector<8x4x8xf32>
      %80 = vector.shape_cast %79 : vector<8x4x8xf32> to vector<8x32xf32>
      %81 = arith.truncf %80 : vector<8x32xf32> to vector<8x32xbf16>
      %cst_52 = arith.constant dense<0.000000e+00> : vector<8x32xf32>
      %82 = tpu.matmul %81, %8, %cst_52 {dimension_numbers = #tpu.dot_dimension_numbers<[1], [0], [0], [1], [0, 0, 1, 1], [], []>} : vector<8x32xbf16>, vector<32x32xbf16>, vector<8x32xf32> -> vector<8x32xf32>
      %83 = vector.broadcast %10 : vector<1x32xf32> to vector<8x32xf32>
      %84 = arith.addf %82, %83 : vector<8x32xf32>
      %85 = arith.addf %84, %36 : vector<8x32xf32>
      %cst_53 = arith.constant dense<0.000000e+00> : vector<8xf32>
      %86 = vector.multi_reduction <add>, %85, %cst_53 [1] : vector<8x32xf32> to vector<8xf32>
      %87 = vector.shape_cast %86 : vector<8xf32> to vector<8x1xf32>
      %cst_54 = arith.constant 3.200000e+01 : f32
      %88 = vector.broadcast %cst_54 : f32 to vector<8x1xf32>
      %89 = arith.divf %87, %88 : vector<8x1xf32>
      %90 = vector.broadcast %89 : vector<8x1xf32> to vector<8x32xf32>
      %91 = arith.subf %85, %90 : vector<8x32xf32>
      %92 = arith.mulf %91, %91 : vector<8x32xf32>
      %cst_55 = arith.constant dense<0.000000e+00> : vector<8xf32>
      %93 = vector.multi_reduction <add>, %92, %cst_55 [1] : vector<8x32xf32> to vector<8xf32>
      %94 = vector.shape_cast %93 : vector<8xf32> to vector<8x1xf32>
      %cst_56 = arith.constant 3.200000e+01 : f32
      %95 = vector.broadcast %cst_56 : f32 to vector<8x1xf32>
      %96 = arith.divf %94, %95 : vector<8x1xf32>
      %97 = vector.broadcast %89 : vector<8x1xf32> to vector<8x32xf32>
      %98 = arith.subf %85, %97 : vector<8x32xf32>
      %cst_57 = arith.constant 9.99999974E-6 : f32
      %99 = vector.broadcast %cst_57 : f32 to vector<8x1xf32>
      %100 = arith.addf %96, %99 : vector<8x1xf32>
      %101 = math.rsqrt %100 : vector<8x1xf32>
      %102 = vector.broadcast %101 : vector<8x1xf32> to vector<8x32xf32>
      %103 = arith.mulf %98, %102 : vector<8x32xf32>
      %104 = vector.broadcast %12 : vector<1x32xf32> to vector<8x32xf32>
      %105 = arith.mulf %103, %104 : vector<8x32xf32>
      %106 = vector.broadcast %14 : vector<1x32xf32> to vector<8x32xf32>
      %107 = arith.addf %105, %106 : vector<8x32xf32>
      %108 = arith.truncf %107 : vector<8x32xf32> to vector<8x32xbf16>
      %cst_58 = arith.constant dense<0.000000e+00> : vector<8x64xf32>
      %109 = tpu.matmul %108, %16, %cst_58 {dimension_numbers = #tpu.dot_dimension_numbers<[1], [0], [0], [1], [0, 0, 1, 1], [], []>} : vector<8x32xbf16>, vector<32x64xbf16>, vector<8x64xf32> -> vector<8x64xf32>
      %110 = vector.broadcast %18 : vector<1x64xf32> to vector<8x64xf32>
      %111 = arith.addf %109, %110 : vector<8x64xf32>
      %cst_59 = arith.constant 0.000000e+00 : f32
      %112 = vector.broadcast %cst_59 : f32 to vector<8x64xf32>
      %113 = arith.maximumf %111, %112 : vector<8x64xf32>
      %114 = arith.truncf %113 : vector<8x64xf32> to vector<8x64xbf16>
      %cst_60 = arith.constant dense<0.000000e+00> : vector<8x32xf32>
      %115 = tpu.matmul %114, %20, %cst_60 {dimension_numbers = #tpu.dot_dimension_numbers<[1], [0], [0], [1], [0, 0, 1, 1], [], []>} : vector<8x64xbf16>, vector<64x32xbf16>, vector<8x32xf32> -> vector<8x32xf32>
      %116 = vector.broadcast %22 : vector<1x32xf32> to vector<8x32xf32>
      %117 = arith.addf %115, %116 : vector<8x32xf32>
      %118 = arith.addf %107, %117 : vector<8x32xf32>
      %cst_61 = arith.constant dense<0.000000e+00> : vector<8xf32>
      %119 = vector.multi_reduction <add>, %118, %cst_61 [1] : vector<8x32xf32> to vector<8xf32>
      %120 = vector.shape_cast %119 : vector<8xf32> to vector<8x1xf32>
      %cst_62 = arith.constant 3.200000e+01 : f32
      %121 = vector.broadcast %cst_62 : f32 to vector<8x1xf32>
      %122 = arith.divf %120, %121 : vector<8x1xf32>
      %123 = vector.broadcast %122 : vector<8x1xf32> to vector<8x32xf32>
      %124 = arith.subf %118, %123 : vector<8x32xf32>
      %125 = arith.mulf %124, %124 : vector<8x32xf32>
      %cst_63 = arith.constant dense<0.000000e+00> : vector<8xf32>
      %126 = vector.multi_reduction <add>, %125, %cst_63 [1] : vector<8x32xf32> to vector<8xf32>
      %127 = vector.shape_cast %126 : vector<8xf32> to vector<8x1xf32>
      %cst_64 = arith.constant 3.200000e+01 : f32
      %128 = vector.broadcast %cst_64 : f32 to vector<8x1xf32>
      %129 = arith.divf %127, %128 : vector<8x1xf32>
      %130 = vector.broadcast %122 : vector<8x1xf32> to vector<8x32xf32>
      %131 = arith.subf %118, %130 : vector<8x32xf32>
      %cst_65 = arith.constant 9.99999974E-6 : f32
      %132 = vector.broadcast %cst_65 : f32 to vector<8x1xf32>
      %133 = arith.addf %129, %132 : vector<8x1xf32>
      %134 = math.rsqrt %133 : vector<8x1xf32>
      %135 = vector.broadcast %134 : vector<8x1xf32> to vector<8x32xf32>
      %136 = arith.mulf %131, %135 : vector<8x32xf32>
      %137 = vector.broadcast %24 : vector<1x32xf32> to vector<8x32xf32>
      %138 = arith.mulf %136, %137 : vector<8x32xf32>
      %139 = vector.broadcast %26 : vector<1x32xf32> to vector<8x32xf32>
      %140 = arith.addf %138, %139 : vector<8x32xf32>
      %c0_66 = arith.constant 0 : index
      %c0_67 = arith.constant 0 : index
      %c0_68 = arith.constant 0 : index
      %141 = vector.load %arg17[%c0_66, %c0_67, %c0_68] : memref<1x8x32xf32, #tpu.memory_space<vmem>>, vector<1x8x32xf32>
      %142 = vector.shape_cast %141 : vector<1x8x32xf32> to vector<8x32xf32>
      %143 = vector.shape_cast %140 : vector<8x32xf32> to vector<1x8x32xf32>
      tpu.vector_store %arg17[%c0_66, %c0_67, %c0_68], %143 {strides = array<i32>} : memref<1x8x32xf32, #tpu.memory_space<vmem>>, vector<1x8x32xf32>,
      %144 = arith.truncf %38 : vector<16x32xf32> to vector<16x32xbf16>
      %cst_69 = arith.constant dense<0.000000e+00> : vector<16x96xf32>
      %145 = tpu.matmul %144, %4, %cst_69 {dimension_numbers = #tpu.dot_dimension_numbers<[1], [0], [0], [1], [0, 0, 1, 1], [], []>} : vector<16x32xbf16>, vector<32x96xbf16>, vector<16x96xf32> -> vector<16x96xf32>
      %146 = vector.broadcast %6 : vector<1x96xf32> to vector<16x96xf32>
      %147 = arith.addf %145, %146 : vector<16x96xf32>
      %148 = vector.extract_strided_slice %147 {offsets = [0, 0], sizes = [16, 32], strides = [1, 1]} : vector<16x96xf32> to vector<16x32xf32>
      %149 = vector.extract_strided_slice %147 {offsets = [0, 32], sizes = [16, 32], strides = [1, 1]} : vector<16x96xf32> to vector<16x32xf32>
      %150 = vector.extract_strided_slice %147 {offsets = [0, 64], sizes = [16, 32], strides = [1, 1]} : vector<16x96xf32> to vector<16x32xf32>
      %151 = vector.shape_cast %148 : vector<16x32xf32> to vector<16x4x8xf32>
      %152 = tpu.transpose %151, [1, 0, 2] : vector<16x4x8xf32> -> vector<4x16x8xf32>
      %153 = arith.truncf %152 : vector<4x16x8xf32> to vector<4x16x8xbf16>
      %154 = vector.shape_cast %149 : vector<16x32xf32> to vector<16x4x8xf32>
      %155 = tpu.transpose %154, [1, 0, 2] : vector<16x4x8xf32> -> vector<4x16x8xf32>
      %156 = arith.truncf %155 : vector<4x16x8xf32> to vector<4x16x8xbf16>
      %157 = vector.shape_cast %150 : vector<16x32xf32> to vector<16x4x8xf32>
      %158 = tpu.transpose %157, [1, 0, 2] : vector<16x4x8xf32> -> vector<4x16x8xf32>
      %159 = arith.truncf %158 : vector<4x16x8xf32> to vector<4x16x8xbf16>
      %cst_70 = arith.constant 0xFF800000 : f32
      %160 = vector.broadcast %cst_70 : f32 to vector<4x16x1xf32>
      %cst_71 = arith.constant 0.000000e+00 : f32
      %161 = vector.broadcast %cst_71 : f32 to vector<4x16x1xf32>
      %cst_72 = arith.constant 0.000000e+00 : f32
      %162 = vector.broadcast %cst_72 : f32 to vector<4x16x8xf32>
      "tpu.trace_start"() <{level = 10 : i32, message = "hnd,hmd->hnm"}> : () -> ()
      %cst_73 = arith.constant dense<0.000000e+00> : vector<4x16x16xf32>
      %163 = tpu.matmul %153, %156, %cst_73 {dimension_numbers = #tpu.dot_dimension_numbers<[2], [2], [1], [1], [0, 0, 0, 1, 1, 1], [0], [0]>} : vector<4x16x8xbf16>, vector<4x16x8xbf16>, vector<4x16x16xf32> -> vector<4x16x16xf32>
      "tpu.trace_stop"() : () -> ()
      %cst_74 = arith.constant dense<0xFF800000> : vector<4x16xf32>
      %164 = vector.multi_reduction <maximumf>, %163, %cst_74 [2] : vector<4x16x16xf32> to vector<4x16xf32>
      %165 = vector.shape_cast %164 : vector<4x16xf32> to vector<4x16x1xf32>
      %166 = arith.maximumf %160, %165 : vector<4x16x1xf32>
      %167 = arith.subf %160, %166 : vector<4x16x1xf32>
      %168 = math.exp %167 : vector<4x16x1xf32>
      %169 = vector.broadcast %166 : vector<4x16x1xf32> to vector<4x16x16xf32>
      %170 = arith.subf %163, %169 : vector<4x16x16xf32>
      %171 = math.exp %170 : vector<4x16x16xf32>
      %172 = arith.mulf %168, %161 : vector<4x16x1xf32>
      %cst_75 = arith.constant dense<0.000000e+00> : vector<4x16xf32>
      %173 = vector.multi_reduction <add>, %171, %cst_75 [2] : vector<4x16x16xf32> to vector<4x16xf32>
      %174 = vector.shape_cast %173 : vector<4x16xf32> to vector<4x16x1xf32>
      %175 = arith.addf %172, %174 : vector<4x16x1xf32>
      %176 = vector.broadcast %168 : vector<4x16x1xf32> to vector<4x16x8xf32>
      %177 = arith.mulf %176, %162 : vector<4x16x8xf32>
      %178 = arith.truncf %171 : vector<4x16x16xf32> to vector<4x16x16xbf16>
      "tpu.trace_start"() <{level = 10 : i32, message = "hnm,hmd->hnd"}> : () -> ()
      %cst_76 = arith.constant dense<0.000000e+00> : vector<4x16x8xf32>
      %179 = tpu.matmul %178, %159, %cst_76 {dimension_numbers = #tpu.dot_dimension_numbers<[2], [1], [1], [2], [0, 0, 0, 1, 1, 2], [0], [0]>} : vector<4x16x16xbf16>, vector<4x16x8xbf16>, vector<4x16x8xf32> -> vector<4x16x8xf32>
      "tpu.trace_stop"() : () -> ()
      %180 = arith.addf %177, %179 : vector<4x16x8xf32>
      %181 = tpu.reciprocal %175 {approx = true} : vector<4x16x1xf32> -> vector<4x16x1xf32>
      %182 = vector.broadcast %181 : vector<4x16x1xf32> to vector<4x16x8xf32>
      %183 = arith.mulf %180, %182 : vector<4x16x8xf32>
      %184 = tpu.transpose %183, [1, 0, 2] : vector<4x16x8xf32> -> vector<16x4x8xf32>
      %185 = vector.shape_cast %184 : vector<16x4x8xf32> to vector<16x32xf32>
      %186 = arith.truncf %185 : vector<16x32xf32> to vector<16x32xbf16>
      %cst_77 = arith.constant dense<0.000000e+00> : vector<16x32xf32>
      %187 = tpu.matmul %186, %8, %cst_77 {dimension_numbers = #tpu.dot_dimension_numbers<[1], [0], [0], [1], [0, 0, 1, 1], [], []>} : vector<16x32xbf16>, vector<32x32xbf16>, vector<16x32xf32> -> vector<16x32xf32>
      %188 = vector.broadcast %10 : vector<1x32xf32> to vector<16x32xf32>
      %189 = arith.addf %187, %188 : vector<16x32xf32>
      %190 = arith.addf %189, %38 : vector<16x32xf32>
      %cst_78 = arith.constant dense<0.000000e+00> : vector<16xf32>
      %191 = vector.multi_reduction <add>, %190, %cst_78 [1] : vector<16x32xf32> to vector<16xf32>
      %192 = vector.shape_cast %191 : vector<16xf32> to vector<16x1xf32>
      %cst_79 = arith.constant 3.200000e+01 : f32
      %193 = vector.broadcast %cst_79 : f32 to vector<16x1xf32>
      %194 = arith.divf %192, %193 : vector<16x1xf32>
      %195 = vector.broadcast %194 : vector<16x1xf32> to vector<16x32xf32>
      %196 = arith.subf %190, %195 : vector<16x32xf32>
      %197 = arith.mulf %196, %196 : vector<16x32xf32>
      %cst_80 = arith.constant dense<0.000000e+00> : vector<16xf32>
      %198 = vector.multi_reduction <add>, %197, %cst_80 [1] : vector<16x32xf32> to vector<16xf32>
      %199 = vector.shape_cast %198 : vector<16xf32> to vector<16x1xf32>
      %cst_81 = arith.constant 3.200000e+01 : f32
      %200 = vector.broadcast %cst_81 : f32 to vector<16x1xf32>
      %201 = arith.divf %199, %200 : vector<16x1xf32>
      %202 = vector.broadcast %194 : vector<16x1xf32> to vector<16x32xf32>
      %203 = arith.subf %190, %202 : vector<16x32xf32>
      %cst_82 = arith.constant 9.99999974E-6 : f32
      %204 = vector.broadcast %cst_82 : f32 to vector<16x1xf32>
      %205 = arith.addf %201, %204 : vector<16x1xf32>
      %206 = math.rsqrt %205 : vector<16x1xf32>
      %207 = vector.broadcast %206 : vector<16x1xf32> to vector<16x32xf32>
      %208 = arith.mulf %203, %207 : vector<16x32xf32>
      %209 = vector.broadcast %12 : vector<1x32xf32> to vector<16x32xf32>
      %210 = arith.mulf %208, %209 : vector<16x32xf32>
      %211 = vector.broadcast %14 : vector<1x32xf32> to vector<16x32xf32>
      %212 = arith.addf %210, %211 : vector<16x32xf32>
      %213 = arith.truncf %212 : vector<16x32xf32> to vector<16x32xbf16>
      %cst_83 = arith.constant dense<0.000000e+00> : vector<16x64xf32>
      %214 = tpu.matmul %213, %16, %cst_83 {dimension_numbers = #tpu.dot_dimension_numbers<[1], [0], [0], [1], [0, 0, 1, 1], [], []>} : vector<16x32xbf16>, vector<32x64xbf16>, vector<16x64xf32> -> vector<16x64xf32>
      %215 = vector.broadcast %18 : vector<1x64xf32> to vector<16x64xf32>
      %216 = arith.addf %214, %215 : vector<16x64xf32>
      %cst_84 = arith.constant 0.000000e+00 : f32
      %217 = vector.broadcast %cst_84 : f32 to vector<16x64xf32>
      %218 = arith.maximumf %216, %217 : vector<16x64xf32>
      %219 = arith.truncf %218 : vector<16x64xf32> to vector<16x64xbf16>
      %cst_85 = arith.constant dense<0.000000e+00> : vector<16x32xf32>
      %220 = tpu.matmul %219, %20, %cst_85 {dimension_numbers = #tpu.dot_dimension_numbers<[1], [0], [0], [1], [0, 0, 1, 1], [], []>} : vector<16x64xbf16>, vector<64x32xbf16>, vector<16x32xf32> -> vector<16x32xf32>
      %221 = vector.broadcast %22 : vector<1x32xf32> to vector<16x32xf32>
      %222 = arith.addf %220, %221 : vector<16x32xf32>
      %223 = arith.addf %212, %222 : vector<16x32xf32>
      %cst_86 = arith.constant dense<0.000000e+00> : vector<16xf32>
      %224 = vector.multi_reduction <add>, %223, %cst_86 [1] : vector<16x32xf32> to vector<16xf32>
      %225 = vector.shape_cast %224 : vector<16xf32> to vector<16x1xf32>
      %cst_87 = arith.constant 3.200000e+01 : f32
      %226 = vector.broadcast %cst_87 : f32 to vector<16x1xf32>
      %227 = arith.divf %225, %226 : vector<16x1xf32>
      %228 = vector.broadcast %227 : vector<16x1xf32> to vector<16x32xf32>
      %229 = arith.subf %223, %228 : vector<16x32xf32>
      %230 = arith.mulf %229, %229 : vector<16x32xf32>
      %cst_88 = arith.constant dense<0.000000e+00> : vector<16xf32>
      %231 = vector.multi_reduction <add>, %230, %cst_88 [1] : vector<16x32xf32> to vector<16xf32>
      %232 = vector.shape_cast %231 : vector<16xf32> to vector<16x1xf32>
      %cst_89 = arith.constant 3.200000e+01 : f32
      %233 = vector.broadcast %cst_89 : f32 to vector<16x1xf32>
      %234 = arith.divf %232, %233 : vector<16x1xf32>
      %235 = vector.broadcast %227 : vector<16x1xf32> to vector<16x32xf32>
      %236 = arith.subf %223, %235 : vector<16x32xf32>
      %cst_90 = arith.constant 9.99999974E-6 : f32
      %237 = vector.broadcast %cst_90 : f32 to vector<16x1xf32>
      %238 = arith.addf %234, %237 : vector<16x1xf32>
      %239 = math.rsqrt %238 : vector<16x1xf32>
      %240 = vector.broadcast %239 : vector<16x1xf32> to vector<16x32xf32>
      %241 = arith.mulf %236, %240 : vector<16x32xf32>
      %242 = vector.broadcast %24 : vector<1x32xf32> to vector<16x32xf32>
      %243 = arith.mulf %241, %242 : vector<16x32xf32>
      %244 = vector.broadcast %26 : vector<1x32xf32> to vector<16x32xf32>
      %245 = arith.addf %243, %244 : vector<16x32xf32>
      %c0_91 = arith.constant 0 : index
      %c0_92 = arith.constant 0 : index
      %c0_93 = arith.constant 0 : index
      %246 = vector.load %arg18[%c0_91, %c0_92, %c0_93] : memref<1x16x32xf32, #tpu.memory_space<vmem>>, vector<1x16x32xf32>
      %247 = vector.shape_cast %246 : vector<1x16x32xf32> to vector<16x32xf32>
      %248 = vector.shape_cast %245 : vector<16x32xf32> to vector<1x16x32xf32>
      tpu.vector_store %arg18[%c0_91, %c0_92, %c0_93], %248 {strides = array<i32>} : memref<1x16x32xf32, #tpu.memory_space<vmem>>, vector<1x16x32xf32>,
    } else {
    }
    %true = arith.constant true
    %32 = arith.xori %29, %true : i1
    %33 = arith.extui %32 : i1 to i32
    %c0_i32_38 = arith.constant 0 : i32
    %34 = arith.cmpi ne, %33, %c0_i32_38 : i32
    scf.if %34 {
      %c0_39 = arith.constant 0 : index
      %c0_40 = arith.constant 0 : index
      %c0_41 = arith.constant 0 : index
      %35 = vector.load %arg17[%c0_39, %c0_40, %c0_41] : memref<1x8x32xf32, #tpu.memory_space<vmem>>, vector<1x8x32xf32>
      %36 = vector.shape_cast %35 : vector<1x8x32xf32> to vector<8x32xf32>
      %c0_42 = arith.constant 0 : index
      %c0_43 = arith.constant 0 : index
      %c0_44 = arith.constant 0 : index
      %37 = vector.load %arg18[%c0_42, %c0_43, %c0_44] : memref<1x16x32xf32, #tpu.memory_space<vmem>>, vector<1x16x32xf32>
      %38 = vector.shape_cast %37 : vector<1x16x32xf32> to vector<16x32xf32>
      %39 = arith.truncf %36 : vector<8x32xf32> to vector<8x32xbf16>
      %40 = arith.truncf %38 : vector<16x32xf32> to vector<16x32xbf16>
      %41 = vector.extract_strided_slice %4 {offsets = [0, 0], sizes = [32, 32], strides = [1, 1]} : vector<32x96xbf16> to vector<32x32xbf16>
      %cst = arith.constant dense<0.000000e+00> : vector<8x32xf32>
      %42 = tpu.matmul %39, %41, %cst {dimension_numbers = #tpu.dot_dimension_numbers<[1], [0], [0], [1], [0, 0, 1, 1], [], []>} : vector<8x32xbf16>, vector<32x32xbf16>, vector<8x32xf32> -> vector<8x32xf32>
      %43 = vector.extract_strided_slice %6 {offsets = [0, 0], sizes = [1, 32], strides = [1, 1]} : vector<1x96xf32> to vector<1x32xf32>
      %44 = vector.broadcast %43 : vector<1x32xf32> to vector<8x32xf32>
      %45 = arith.addf %42, %44 : vector<8x32xf32>
      %46 = vector.extract_strided_slice %4 {offsets = [0, 32], sizes = [32, 64], strides = [1, 1]} : vector<32x96xbf16> to vector<32x64xbf16>
      %cst_45 = arith.constant dense<0.000000e+00> : vector<16x64xf32>
      %47 = tpu.matmul %40, %46, %cst_45 {dimension_numbers = #tpu.dot_dimension_numbers<[1], [0], [0], [1], [0, 0, 1, 1], [], []>} : vector<16x32xbf16>, vector<32x64xbf16>, vector<16x64xf32> -> vector<16x64xf32>
      %48 = vector.extract_strided_slice %6 {offsets = [0, 32], sizes = [1, 64], strides = [1, 1]} : vector<1x96xf32> to vector<1x64xf32>
      %49 = vector.broadcast %48 : vector<1x64xf32> to vector<16x64xf32>
      %50 = arith.addf %47, %49 : vector<16x64xf32>
      %51 = vector.extract_strided_slice %50 {offsets = [0, 0], sizes = [16, 32], strides = [1, 1]} : vector<16x64xf32> to vector<16x32xf32>
      %52 = vector.extract_strided_slice %50 {offsets = [0, 32], sizes = [16, 32], strides = [1, 1]} : vector<16x64xf32> to vector<16x32xf32>
      %53 = vector.shape_cast %45 : vector<8x32xf32> to vector<8x4x8xf32>
      %54 = tpu.transpose %53, [1, 0, 2] : vector<8x4x8xf32> -> vector<4x8x8xf32>
      %55 = arith.truncf %54 : vector<4x8x8xf32> to vector<4x8x8xbf16>
      %56 = vector.shape_cast %51 : vector<16x32xf32> to vector<16x4x8xf32>
      %57 = tpu.transpose %56, [1, 0, 2] : vector<16x4x8xf32> -> vector<4x16x8xf32>
      %58 = arith.truncf %57 : vector<4x16x8xf32> to vector<4x16x8xbf16>
      %59 = vector.shape_cast %52 : vector<16x32xf32> to vector<16x4x8xf32>
      %60 = tpu.transpose %59, [1, 0, 2] : vector<16x4x8xf32> -> vector<4x16x8xf32>
      %61 = arith.truncf %60 : vector<4x16x8xf32> to vector<4x16x8xbf16>
      %cst_46 = arith.constant 0xFF800000 : f32
      %62 = vector.broadcast %cst_46 : f32 to vector<4x8x1xf32>
      %cst_47 = arith.constant 0.000000e+00 : f32
      %63 = vector.broadcast %cst_47 : f32 to vector<4x8x1xf32>
      %cst_48 = arith.constant 0.000000e+00 : f32
      %64 = vector.broadcast %cst_48 : f32 to vector<4x8x8xf32>
      "tpu.trace_start"() <{level = 10 : i32, message = "hnd,hmd->hnm"}> : () -> ()
      %cst_49 = arith.constant dense<0.000000e+00> : vector<4x8x16xf32>
      %65 = tpu.matmul %55, %58, %cst_49 {dimension_numbers = #tpu.dot_dimension_numbers<[2], [2], [1], [1], [0, 0, 0, 1, 1, 1], [0], [0]>} : vector<4x8x8xbf16>, vector<4x16x8xbf16>, vector<4x8x16xf32> -> vector<4x8x16xf32>
      "tpu.trace_stop"() : () -> ()
      %cst_50 = arith.constant dense<0xFF800000> : vector<4x8xf32>
      %66 = vector.multi_reduction <maximumf>, %65, %cst_50 [2] : vector<4x8x16xf32> to vector<4x8xf32>
      %67 = vector.shape_cast %66 : vector<4x8xf32> to vector<4x8x1xf32>
      %68 = arith.maximumf %62, %67 : vector<4x8x1xf32>
      %69 = arith.subf %62, %68 : vector<4x8x1xf32>
      %70 = math.exp %69 : vector<4x8x1xf32>
      %71 = vector.broadcast %68 : vector<4x8x1xf32> to vector<4x8x16xf32>
      %72 = arith.subf %65, %71 : vector<4x8x16xf32>
      %73 = math.exp %72 : vector<4x8x16xf32>
      %74 = arith.mulf %70, %63 : vector<4x8x1xf32>
      %cst_51 = arith.constant dense<0.000000e+00> : vector<4x8xf32>
      %75 = vector.multi_reduction <add>, %73, %cst_51 [2] : vector<4x8x16xf32> to vector<4x8xf32>
      %76 = vector.shape_cast %75 : vector<4x8xf32> to vector<4x8x1xf32>
      %77 = arith.addf %74, %76 : vector<4x8x1xf32>
      %78 = vector.broadcast %70 : vector<4x8x1xf32> to vector<4x8x8xf32>
      %79 = arith.mulf %78, %64 : vector<4x8x8xf32>
      %80 = arith.truncf %73 : vector<4x8x16xf32> to vector<4x8x16xbf16>
      "tpu.trace_start"() <{level = 10 : i32, message = "hnm,hmd->hnd"}> : () -> ()
      %cst_52 = arith.constant dense<0.000000e+00> : vector<4x8x8xf32>
      %81 = tpu.matmul %80, %61, %cst_52 {dimension_numbers = #tpu.dot_dimension_numbers<[2], [1], [1], [2], [0, 0, 0, 1, 1, 2], [0], [0]>} : vector<4x8x16xbf16>, vector<4x16x8xbf16>, vector<4x8x8xf32> -> vector<4x8x8xf32>
      "tpu.trace_stop"() : () -> ()
      %82 = arith.addf %79, %81 : vector<4x8x8xf32>
      %83 = tpu.reciprocal %77 {approx = true} : vector<4x8x1xf32> -> vector<4x8x1xf32>
      %84 = vector.broadcast %83 : vector<4x8x1xf32> to vector<4x8x8xf32>
      %85 = arith.mulf %82, %84 : vector<4x8x8xf32>
      %86 = tpu.transpose %85, [1, 0, 2] : vector<4x8x8xf32> -> vector<8x4x8xf32>
      %87 = vector.shape_cast %86 : vector<8x4x8xf32> to vector<8x32xf32>
      %88 = arith.truncf %87 : vector<8x32xf32> to vector<8x32xbf16>
      %cst_53 = arith.constant dense<0.000000e+00> : vector<8x32xf32>
      %89 = tpu.matmul %88, %8, %cst_53 {dimension_numbers = #tpu.dot_dimension_numbers<[1], [0], [0], [1], [0, 0, 1, 1], [], []>} : vector<8x32xbf16>, vector<32x32xbf16>, vector<8x32xf32> -> vector<8x32xf32>
      %90 = vector.broadcast %10 : vector<1x32xf32> to vector<8x32xf32>
      %91 = arith.addf %89, %90 : vector<8x32xf32>
      %92 = arith.addf %91, %36 : vector<8x32xf32>
      %cst_54 = arith.constant dense<0.000000e+00> : vector<8xf32>
      %93 = vector.multi_reduction <add>, %92, %cst_54 [1] : vector<8x32xf32> to vector<8xf32>
      %94 = vector.shape_cast %93 : vector<8xf32> to vector<8x1xf32>
      %cst_55 = arith.constant 3.200000e+01 : f32
      %95 = vector.broadcast %cst_55 : f32 to vector<8x1xf32>
      %96 = arith.divf %94, %95 : vector<8x1xf32>
      %97 = vector.broadcast %96 : vector<8x1xf32> to vector<8x32xf32>
      %98 = arith.subf %92, %97 : vector<8x32xf32>
      %99 = arith.mulf %98, %98 : vector<8x32xf32>
      %cst_56 = arith.constant dense<0.000000e+00> : vector<8xf32>
      %100 = vector.multi_reduction <add>, %99, %cst_56 [1] : vector<8x32xf32> to vector<8xf32>
      %101 = vector.shape_cast %100 : vector<8xf32> to vector<8x1xf32>
      %cst_57 = arith.constant 3.200000e+01 : f32
      %102 = vector.broadcast %cst_57 : f32 to vector<8x1xf32>
      %103 = arith.divf %101, %102 : vector<8x1xf32>
      %104 = vector.broadcast %96 : vector<8x1xf32> to vector<8x32xf32>
      %105 = arith.subf %92, %104 : vector<8x32xf32>
      %cst_58 = arith.constant 9.99999974E-6 : f32
      %106 = vector.broadcast %cst_58 : f32 to vector<8x1xf32>
      %107 = arith.addf %103, %106 : vector<8x1xf32>
      %108 = math.rsqrt %107 : vector<8x1xf32>
      %109 = vector.broadcast %108 : vector<8x1xf32> to vector<8x32xf32>
      %110 = arith.mulf %105, %109 : vector<8x32xf32>
      %111 = vector.broadcast %12 : vector<1x32xf32> to vector<8x32xf32>
      %112 = arith.mulf %110, %111 : vector<8x32xf32>
      %113 = vector.broadcast %14 : vector<1x32xf32> to vector<8x32xf32>
      %114 = arith.addf %112, %113 : vector<8x32xf32>
      %115 = arith.truncf %114 : vector<8x32xf32> to vector<8x32xbf16>
      %cst_59 = arith.constant dense<0.000000e+00> : vector<8x64xf32>
      %116 = tpu.matmul %115, %16, %cst_59 {dimension_numbers = #tpu.dot_dimension_numbers<[1], [0], [0], [1], [0, 0, 1, 1], [], []>} : vector<8x32xbf16>, vector<32x64xbf16>, vector<8x64xf32> -> vector<8x64xf32>
      %117 = vector.broadcast %18 : vector<1x64xf32> to vector<8x64xf32>
      %118 = arith.addf %116, %117 : vector<8x64xf32>
      %cst_60 = arith.constant 0.000000e+00 : f32
      %119 = vector.broadcast %cst_60 : f32 to vector<8x64xf32>
      %120 = arith.maximumf %118, %119 : vector<8x64xf32>
      %121 = arith.truncf %120 : vector<8x64xf32> to vector<8x64xbf16>
      %cst_61 = arith.constant dense<0.000000e+00> : vector<8x32xf32>
      %122 = tpu.matmul %121, %20, %cst_61 {dimension_numbers = #tpu.dot_dimension_numbers<[1], [0], [0], [1], [0, 0, 1, 1], [], []>} : vector<8x64xbf16>, vector<64x32xbf16>, vector<8x32xf32> -> vector<8x32xf32>
      %123 = vector.broadcast %22 : vector<1x32xf32> to vector<8x32xf32>
      %124 = arith.addf %122, %123 : vector<8x32xf32>
      %125 = arith.addf %114, %124 : vector<8x32xf32>
      %cst_62 = arith.constant dense<0.000000e+00> : vector<8xf32>
      %126 = vector.multi_reduction <add>, %125, %cst_62 [1] : vector<8x32xf32> to vector<8xf32>
      %127 = vector.shape_cast %126 : vector<8xf32> to vector<8x1xf32>
      %cst_63 = arith.constant 3.200000e+01 : f32
      %128 = vector.broadcast %cst_63 : f32 to vector<8x1xf32>
      %129 = arith.divf %127, %128 : vector<8x1xf32>
      %130 = vector.broadcast %129 : vector<8x1xf32> to vector<8x32xf32>
      %131 = arith.subf %125, %130 : vector<8x32xf32>
      %132 = arith.mulf %131, %131 : vector<8x32xf32>
      %cst_64 = arith.constant dense<0.000000e+00> : vector<8xf32>
      %133 = vector.multi_reduction <add>, %132, %cst_64 [1] : vector<8x32xf32> to vector<8xf32>
      %134 = vector.shape_cast %133 : vector<8xf32> to vector<8x1xf32>
      %cst_65 = arith.constant 3.200000e+01 : f32
      %135 = vector.broadcast %cst_65 : f32 to vector<8x1xf32>
      %136 = arith.divf %134, %135 : vector<8x1xf32>
      %137 = vector.broadcast %129 : vector<8x1xf32> to vector<8x32xf32>
      %138 = arith.subf %125, %137 : vector<8x32xf32>
      %cst_66 = arith.constant 9.99999974E-6 : f32
      %139 = vector.broadcast %cst_66 : f32 to vector<8x1xf32>
      %140 = arith.addf %136, %139 : vector<8x1xf32>
      %141 = math.rsqrt %140 : vector<8x1xf32>
      %142 = vector.broadcast %141 : vector<8x1xf32> to vector<8x32xf32>
      %143 = arith.mulf %138, %142 : vector<8x32xf32>
      %144 = vector.broadcast %24 : vector<1x32xf32> to vector<8x32xf32>
      %145 = arith.mulf %143, %144 : vector<8x32xf32>
      %146 = vector.broadcast %26 : vector<1x32xf32> to vector<8x32xf32>
      %147 = arith.addf %145, %146 : vector<8x32xf32>
      %c0_67 = arith.constant 0 : index
      %c0_68 = arith.constant 0 : index
      %c0_69 = arith.constant 0 : index
      %148 = vector.load %arg17[%c0_67, %c0_68, %c0_69] : memref<1x8x32xf32, #tpu.memory_space<vmem>>, vector<1x8x32xf32>
      %149 = vector.shape_cast %148 : vector<1x8x32xf32> to vector<8x32xf32>
      %150 = vector.shape_cast %147 : vector<8x32xf32> to vector<1x8x32xf32>
      tpu.vector_store %arg17[%c0_67, %c0_68, %c0_69], %150 {strides = array<i32>} : memref<1x8x32xf32, #tpu.memory_space<vmem>>, vector<1x8x32xf32>,
      %151 = arith.truncf %38 : vector<16x32xf32> to vector<16x32xbf16>
      %152 = arith.truncf %147 : vector<8x32xf32> to vector<8x32xbf16>
      %153 = vector.extract_strided_slice %4 {offsets = [0, 0], sizes = [32, 32], strides = [1, 1]} : vector<32x96xbf16> to vector<32x32xbf16>
      %cst_70 = arith.constant dense<0.000000e+00> : vector<16x32xf32>
      %154 = tpu.matmul %151, %153, %cst_70 {dimension_numbers = #tpu.dot_dimension_numbers<[1], [0], [0], [1], [0, 0, 1, 1], [], []>} : vector<16x32xbf16>, vector<32x32xbf16>, vector<16x32xf32> -> vector<16x32xf32>
      %155 = vector.extract_strided_slice %6 {offsets = [0, 0], sizes = [1, 32], strides = [1, 1]} : vector<1x96xf32> to vector<1x32xf32>
      %156 = vector.broadcast %155 : vector<1x32xf32> to vector<16x32xf32>
      %157 = arith.addf %154, %156 : vector<16x32xf32>
      %158 = vector.extract_strided_slice %4 {offsets = [0, 32], sizes = [32, 64], strides = [1, 1]} : vector<32x96xbf16> to vector<32x64xbf16>
      %cst_71 = arith.constant dense<0.000000e+00> : vector<8x64xf32>
      %159 = tpu.matmul %152, %158, %cst_71 {dimension_numbers = #tpu.dot_dimension_numbers<[1], [0], [0], [1], [0, 0, 1, 1], [], []>} : vector<8x32xbf16>, vector<32x64xbf16>, vector<8x64xf32> -> vector<8x64xf32>
      %160 = vector.extract_strided_slice %6 {offsets = [0, 32], sizes = [1, 64], strides = [1, 1]} : vector<1x96xf32> to vector<1x64xf32>
      %161 = vector.broadcast %160 : vector<1x64xf32> to vector<8x64xf32>
      %162 = arith.addf %159, %161 : vector<8x64xf32>
      %163 = vector.extract_strided_slice %162 {offsets = [0, 0], sizes = [8, 32], strides = [1, 1]} : vector<8x64xf32> to vector<8x32xf32>
      %164 = vector.extract_strided_slice %162 {offsets = [0, 32], sizes = [8, 32], strides = [1, 1]} : vector<8x64xf32> to vector<8x32xf32>
      %165 = vector.shape_cast %157 : vector<16x32xf32> to vector<16x4x8xf32>
      %166 = tpu.transpose %165, [1, 0, 2] : vector<16x4x8xf32> -> vector<4x16x8xf32>
      %167 = arith.truncf %166 : vector<4x16x8xf32> to vector<4x16x8xbf16>
      %168 = vector.shape_cast %163 : vector<8x32xf32> to vector<8x4x8xf32>
      %169 = tpu.transpose %168, [1, 0, 2] : vector<8x4x8xf32> -> vector<4x8x8xf32>
      %170 = arith.truncf %169 : vector<4x8x8xf32> to vector<4x8x8xbf16>
      %171 = vector.shape_cast %164 : vector<8x32xf32> to vector<8x4x8xf32>
      %172 = tpu.transpose %171, [1, 0, 2] : vector<8x4x8xf32> -> vector<4x8x8xf32>
      %173 = arith.truncf %172 : vector<4x8x8xf32> to vector<4x8x8xbf16>
      %cst_72 = arith.constant 0xFF800000 : f32
      %174 = vector.broadcast %cst_72 : f32 to vector<4x16x1xf32>
      %cst_73 = arith.constant 0.000000e+00 : f32
      %175 = vector.broadcast %cst_73 : f32 to vector<4x16x1xf32>
      %cst_74 = arith.constant 0.000000e+00 : f32
      %176 = vector.broadcast %cst_74 : f32 to vector<4x16x8xf32>
      "tpu.trace_start"() <{level = 10 : i32, message = "hnd,hmd->hnm"}> : () -> ()
      %cst_75 = arith.constant dense<0.000000e+00> : vector<4x16x8xf32>
      %177 = tpu.matmul %167, %170, %cst_75 {dimension_numbers = #tpu.dot_dimension_numbers<[2], [2], [1], [1], [0, 0, 0, 1, 1, 1], [0], [0]>} : vector<4x16x8xbf16>, vector<4x8x8xbf16>, vector<4x16x8xf32> -> vector<4x16x8xf32>
      "tpu.trace_stop"() : () -> ()
      %cst_76 = arith.constant dense<0xFF800000> : vector<4x16xf32>
      %178 = vector.multi_reduction <maximumf>, %177, %cst_76 [2] : vector<4x16x8xf32> to vector<4x16xf32>
      %179 = vector.shape_cast %178 : vector<4x16xf32> to vector<4x16x1xf32>
      %180 = arith.maximumf %174, %179 : vector<4x16x1xf32>
      %181 = arith.subf %174, %180 : vector<4x16x1xf32>
      %182 = math.exp %181 : vector<4x16x1xf32>
      %183 = vector.broadcast %180 : vector<4x16x1xf32> to vector<4x16x8xf32>
      %184 = arith.subf %177, %183 : vector<4x16x8xf32>
      %185 = math.exp %184 : vector<4x16x8xf32>
      %186 = arith.mulf %182, %175 : vector<4x16x1xf32>
      %cst_77 = arith.constant dense<0.000000e+00> : vector<4x16xf32>
      %187 = vector.multi_reduction <add>, %185, %cst_77 [2] : vector<4x16x8xf32> to vector<4x16xf32>
      %188 = vector.shape_cast %187 : vector<4x16xf32> to vector<4x16x1xf32>
      %189 = arith.addf %186, %188 : vector<4x16x1xf32>
      %190 = vector.broadcast %182 : vector<4x16x1xf32> to vector<4x16x8xf32>
      %191 = arith.mulf %190, %176 : vector<4x16x8xf32>
      %192 = arith.truncf %185 : vector<4x16x8xf32> to vector<4x16x8xbf16>
      "tpu.trace_start"() <{level = 10 : i32, message = "hnm,hmd->hnd"}> : () -> ()
      %cst_78 = arith.constant dense<0.000000e+00> : vector<4x16x8xf32>
      %193 = tpu.matmul %192, %173, %cst_78 {dimension_numbers = #tpu.dot_dimension_numbers<[2], [1], [1], [2], [0, 0, 0, 1, 1, 2], [0], [0]>} : vector<4x16x8xbf16>, vector<4x8x8xbf16>, vector<4x16x8xf32> -> vector<4x16x8xf32>
      "tpu.trace_stop"() : () -> ()
      %194 = arith.addf %191, %193 : vector<4x16x8xf32>
      %195 = tpu.reciprocal %189 {approx = true} : vector<4x16x1xf32> -> vector<4x16x1xf32>
      %196 = vector.broadcast %195 : vector<4x16x1xf32> to vector<4x16x8xf32>
      %197 = arith.mulf %194, %196 : vector<4x16x8xf32>
      %198 = tpu.transpose %197, [1, 0, 2] : vector<4x16x8xf32> -> vector<16x4x8xf32>
      %199 = vector.shape_cast %198 : vector<16x4x8xf32> to vector<16x32xf32>
      %200 = arith.truncf %199 : vector<16x32xf32> to vector<16x32xbf16>
      %cst_79 = arith.constant dense<0.000000e+00> : vector<16x32xf32>
      %201 = tpu.matmul %200, %8, %cst_79 {dimension_numbers = #tpu.dot_dimension_numbers<[1], [0], [0], [1], [0, 0, 1, 1], [], []>} : vector<16x32xbf16>, vector<32x32xbf16>, vector<16x32xf32> -> vector<16x32xf32>
      %202 = vector.broadcast %10 : vector<1x32xf32> to vector<16x32xf32>
      %203 = arith.addf %201, %202 : vector<16x32xf32>
      %204 = arith.addf %203, %38 : vector<16x32xf32>
      %cst_80 = arith.constant dense<0.000000e+00> : vector<16xf32>
      %205 = vector.multi_reduction <add>, %204, %cst_80 [1] : vector<16x32xf32> to vector<16xf32>
      %206 = vector.shape_cast %205 : vector<16xf32> to vector<16x1xf32>
      %cst_81 = arith.constant 3.200000e+01 : f32
      %207 = vector.broadcast %cst_81 : f32 to vector<16x1xf32>
      %208 = arith.divf %206, %207 : vector<16x1xf32>
      %209 = vector.broadcast %208 : vector<16x1xf32> to vector<16x32xf32>
      %210 = arith.subf %204, %209 : vector<16x32xf32>
      %211 = arith.mulf %210, %210 : vector<16x32xf32>
      %cst_82 = arith.constant dense<0.000000e+00> : vector<16xf32>
      %212 = vector.multi_reduction <add>, %211, %cst_82 [1] : vector<16x32xf32> to vector<16xf32>
      %213 = vector.shape_cast %212 : vector<16xf32> to vector<16x1xf32>
      %cst_83 = arith.constant 3.200000e+01 : f32
      %214 = vector.broadcast %cst_83 : f32 to vector<16x1xf32>
      %215 = arith.divf %213, %214 : vector<16x1xf32>
      %216 = vector.broadcast %208 : vector<16x1xf32> to vector<16x32xf32>
      %217 = arith.subf %204, %216 : vector<16x32xf32>
      %cst_84 = arith.constant 9.99999974E-6 : f32
      %218 = vector.broadcast %cst_84 : f32 to vector<16x1xf32>
      %219 = arith.addf %215, %218 : vector<16x1xf32>
      %220 = math.rsqrt %219 : vector<16x1xf32>
      %221 = vector.broadcast %220 : vector<16x1xf32> to vector<16x32xf32>
      %222 = arith.mulf %217, %221 : vector<16x32xf32>
      %223 = vector.broadcast %12 : vector<1x32xf32> to vector<16x32xf32>
      %224 = arith.mulf %222, %223 : vector<16x32xf32>
      %225 = vector.broadcast %14 : vector<1x32xf32> to vector<16x32xf32>
      %226 = arith.addf %224, %225 : vector<16x32xf32>
      %227 = arith.truncf %226 : vector<16x32xf32> to vector<16x32xbf16>
      %cst_85 = arith.constant dense<0.000000e+00> : vector<16x64xf32>
      %228 = tpu.matmul %227, %16, %cst_85 {dimension_numbers = #tpu.dot_dimension_numbers<[1], [0], [0], [1], [0, 0, 1, 1], [], []>} : vector<16x32xbf16>, vector<32x64xbf16>, vector<16x64xf32> -> vector<16x64xf32>
      %229 = vector.broadcast %18 : vector<1x64xf32> to vector<16x64xf32>
      %230 = arith.addf %228, %229 : vector<16x64xf32>
      %cst_86 = arith.constant 0.000000e+00 : f32
      %231 = vector.broadcast %cst_86 : f32 to vector<16x64xf32>
      %232 = arith.maximumf %230, %231 : vector<16x64xf32>
      %233 = arith.truncf %232 : vector<16x64xf32> to vector<16x64xbf16>
      %cst_87 = arith.constant dense<0.000000e+00> : vector<16x32xf32>
      %234 = tpu.matmul %233, %20, %cst_87 {dimension_numbers = #tpu.dot_dimension_numbers<[1], [0], [0], [1], [0, 0, 1, 1], [], []>} : vector<16x64xbf16>, vector<64x32xbf16>, vector<16x32xf32> -> vector<16x32xf32>
      %235 = vector.broadcast %22 : vector<1x32xf32> to vector<16x32xf32>
      %236 = arith.addf %234, %235 : vector<16x32xf32>
      %237 = arith.addf %226, %236 : vector<16x32xf32>
      %cst_88 = arith.constant dense<0.000000e+00> : vector<16xf32>
      %238 = vector.multi_reduction <add>, %237, %cst_88 [1] : vector<16x32xf32> to vector<16xf32>
      %239 = vector.shape_cast %238 : vector<16xf32> to vector<16x1xf32>
      %cst_89 = arith.constant 3.200000e+01 : f32
      %240 = vector.broadcast %cst_89 : f32 to vector<16x1xf32>
      %241 = arith.divf %239, %240 : vector<16x1xf32>
      %242 = vector.broadcast %241 : vector<16x1xf32> to vector<16x32xf32>
      %243 = arith.subf %237, %242 : vector<16x32xf32>
      %244 = arith.mulf %243, %243 : vector<16x32xf32>
      %cst_90 = arith.constant dense<0.000000e+00> : vector<16xf32>
      %245 = vector.multi_reduction <add>, %244, %cst_90 [1] : vector<16x32xf32> to vector<16xf32>
      %246 = vector.shape_cast %245 : vector<16xf32> to vector<16x1xf32>
      %cst_91 = arith.constant 3.200000e+01 : f32
      %247 = vector.broadcast %cst_91 : f32 to vector<16x1xf32>
      %248 = arith.divf %246, %247 : vector<16x1xf32>
      %249 = vector.broadcast %241 : vector<16x1xf32> to vector<16x32xf32>
      %250 = arith.subf %237, %249 : vector<16x32xf32>
      %cst_92 = arith.constant 9.99999974E-6 : f32
      %251 = vector.broadcast %cst_92 : f32 to vector<16x1xf32>
      %252 = arith.addf %248, %251 : vector<16x1xf32>
      %253 = math.rsqrt %252 : vector<16x1xf32>
      %254 = vector.broadcast %253 : vector<16x1xf32> to vector<16x32xf32>
      %255 = arith.mulf %250, %254 : vector<16x32xf32>
      %256 = vector.broadcast %24 : vector<1x32xf32> to vector<16x32xf32>
      %257 = arith.mulf %255, %256 : vector<16x32xf32>
      %258 = vector.broadcast %26 : vector<1x32xf32> to vector<16x32xf32>
      %259 = arith.addf %257, %258 : vector<16x32xf32>
      %c0_93 = arith.constant 0 : index
      %c0_94 = arith.constant 0 : index
      %c0_95 = arith.constant 0 : index
      %260 = vector.load %arg18[%c0_93, %c0_94, %c0_95] : memref<1x16x32xf32, #tpu.memory_space<vmem>>, vector<1x16x32xf32>
      %261 = vector.shape_cast %260 : vector<1x16x32xf32> to vector<16x32xf32>
      %262 = vector.shape_cast %259 : vector<16x32xf32> to vector<1x16x32xf32>
      tpu.vector_store %arg18[%c0_93, %c0_94, %c0_95], %262 {strides = array<i32>} : memref<1x16x32xf32, #tpu.memory_space<vmem>>, vector<1x16x32xf32>,
    } else {
    }
    return
  }
  func.func @transform_0(%arg0: i32, %arg1: i32, %arg2: memref<2xi32, #tpu.memory_space<smem>>) -> (i32, i32, i32) {
    %c0_i32 = arith.constant 0 : i32
    %c0_i32_0 = arith.constant 0 : i32
    %c0_i32_1 = arith.constant 0 : i32
    return %arg0, %c0_i32, %c0_i32_0 : i32, i32, i32
  }
  func.func @transform_1(%arg0: i32, %arg1: i32, %arg2: memref<2xi32, #tpu.memory_space<smem>>) -> (i32, i32, i32) {
    %c0_i32 = arith.constant 0 : i32
    %c0_i32_0 = arith.constant 0 : i32
    %c0_i32_1 = arith.constant 0 : i32
    return %arg0, %c0_i32, %c0_i32_0 : i32, i32, i32
  }
  func.func @transform_2(%arg0: i32, %arg1: i32, %arg2: memref<2xi32, #tpu.memory_space<smem>>) -> (i32, i32, i32) {
    %c0_i32 = arith.constant 0 : i32
    %c0_i32_0 = arith.constant 0 : i32
    %c0_i32_1 = arith.constant 0 : i32
    return %arg1, %c0_i32, %c0_i32_0 : i32, i32, i32
  }
  func.func @transform_3(%arg0: i32, %arg1: i32, %arg2: memref<2xi32, #tpu.memory_space<smem>>) -> (i32, i32, i32) {
    %c0_i32 = arith.constant 0 : i32
    %c0_i32_0 = arith.constant 0 : i32
    %c0_i32_1 = arith.constant 0 : i32
    return %arg1, %c0_i32, %c0_i32_0 : i32, i32, i32
  }
  func.func @transform_4(%arg0: i32, %arg1: i32, %arg2: memref<2xi32, #tpu.memory_space<smem>>) -> (i32, i32, i32) {
    %c0_i32 = arith.constant 0 : i32
    %c0_i32_0 = arith.constant 0 : i32
    %c0_i32_1 = arith.constant 0 : i32
    return %arg1, %c0_i32, %c0_i32_0 : i32, i32, i32
  }
  func.func @transform_5(%arg0: i32, %arg1: i32, %arg2: memref<2xi32, #tpu.memory_space<smem>>) -> (i32, i32, i32) {
    %c0_i32 = arith.constant 0 : i32
    %c0_i32_0 = arith.constant 0 : i32
    %c0_i32_1 = arith.constant 0 : i32
    return %arg1, %c0_i32, %c0_i32_0 : i32, i32, i32
  }
  func.func @transform_6(%arg0: i32, %arg1: i32, %arg2: memref<2xi32, #tpu.memory_space<smem>>) -> (i32, i32, i32) {
    %c0_i32 = arith.constant 0 : i32
    %c0_i32_0 = arith.constant 0 : i32
    %c0_i32_1 = arith.constant 0 : i32
    return %arg1, %c0_i32, %c0_i32_0 : i32, i32, i32
  }
  func.func @transform_7(%arg0: i32, %arg1: i32, %arg2: memref<2xi32, #tpu.memory_space<smem>>) -> (i32, i32, i32) {
    %c0_i32 = arith.constant 0 : i32
    %c0_i32_0 = arith.constant 0 : i32
    %c0_i32_1 = arith.constant 0 : i32
    return %arg1, %c0_i32, %c0_i32_0 : i32, i32, i32
  }
  func.func @transform_8(%arg0: i32, %arg1: i32, %arg2: memref<2xi32, #tpu.memory_space<smem>>) -> (i32, i32, i32) {
    %c0_i32 = arith.constant 0 : i32
    %c0_i32_0 = arith.constant 0 : i32
    %c0_i32_1 = arith.constant 0 : i32
    return %arg1, %c0_i32, %c0_i32_0 : i32, i32, i32
  }
  func.func @transform_9(%arg0: i32, %arg1: i32, %arg2: memref<2xi32, #tpu.memory_space<smem>>) -> (i32, i32, i32) {
    %c0_i32 = arith.constant 0 : i32
    %c0_i32_0 = arith.constant 0 : i32
    %c0_i32_1 = arith.constant 0 : i32
    return %arg1, %c0_i32, %c0_i32_0 : i32, i32, i32
  }
  func.func @transform_10(%arg0: i32, %arg1: i32, %arg2: memref<2xi32, #tpu.memory_space<smem>>) -> (i32, i32, i32) {
    %c0_i32 = arith.constant 0 : i32
    %c0_i32_0 = arith.constant 0 : i32
    %c0_i32_1 = arith.constant 0 : i32
    return %arg1, %c0_i32, %c0_i32_0 : i32, i32, i32
  }
  func.func @transform_11(%arg0: i32, %arg1: i32, %arg2: memref<2xi32, #tpu.memory_space<smem>>) -> (i32, i32, i32) {
    %c0_i32 = arith.constant 0 : i32
    %c0_i32_0 = arith.constant 0 : i32
    %c0_i32_1 = arith.constant 0 : i32
    return %arg1, %c0_i32, %c0_i32_0 : i32, i32, i32
  }
  func.func @transform_12(%arg0: i32, %arg1: i32, %arg2: memref<2xi32, #tpu.memory_space<smem>>) -> (i32, i32, i32) {
    %c0_i32 = arith.constant 0 : i32
    %c0_i32_0 = arith.constant 0 : i32
    %c0_i32_1 = arith.constant 0 : i32
    return %arg1, %c0_i32, %c0_i32_0 : i32, i32, i32
  }
  func.func @transform_13(%arg0: i32, %arg1: i32, %arg2: memref<2xi32, #tpu.memory_space<smem>>) -> (i32, i32, i32) {
    %c0_i32 = arith.constant 0 : i32
    %c0_i32_0 = arith.constant 0 : i32
    %c0_i32_1 = arith.constant 0 : i32
    return %arg1, %c0_i32, %c0_i32_0 : i32, i32, i32
  }
  func.func @transform_14(%arg0: i32, %arg1: i32, %arg2: memref<2xi32, #tpu.memory_space<smem>>) -> (i32, i32, i32) {
    %c0_i32 = arith.constant 0 : i32
    %c0_i32_0 = arith.constant 0 : i32
    %c0_i32_1 = arith.constant 0 : i32
    return %arg0, %c0_i32, %c0_i32_0 : i32, i32, i32
  }
  func.func @transform_15(%arg0: i32, %arg1: i32, %arg2: memref<2xi32, #tpu.memory_space<smem>>) -> (i32, i32, i32) {
    %c0_i32 = arith.constant 0 : i32
    %c0_i32_0 = arith.constant 0 : i32
    %c0_i32_1 = arith.constant 0 : i32
    return %arg0, %c0_i32, %c0_i32_0 : i32, i32, i32
  }
}

</mosaic_0001>

<llo_original>
// kernel: tpu_custom_call.1
$region0: #{tpu_custom_call.1}
  #allocation0 [shape = 'u32[]', space=smem, size = 0x4, offset = 0x4, fixed_abs, tag = 'smem constant byte address 0x4 - core index']
  #allocation1 [shape = 'u32[72,128]{1,0:T(1,128)}', space=vmem, size = 0x9000, scoped, tag = 'internal scratch']
  #allocation2 [shape = 's32[1]{0}', space=sflag, size = 0x4, scoped, tag = 'scoped memory for tpu_custom_call.1']
  #allocation3 [shape = 'u8[512]{0}', space=smem, size = 0x200, scoped, tag = 'prefetched SMEM operand 0']
  %s0 = inlined_call_operand.hbm [shape: s32[2], index: 0, kind: input, shape index: {}]
  %s1 = inlined_call_operand.hbm [shape: f32[2,8,32], index: 1, kind: input, shape index: {}]
  %s2 = inlined_call_operand.vmem [shape: f32[2,16,32], index: 2, kind: input, shape index: {}]
  %s3 = inlined_call_operand.vmem [shape: bf16[2,32,96], index: 3, kind: input, shape index: {}]
  %s4 = inlined_call_operand.vmem [shape: f32[2,1,96], index: 4, kind: input, shape index: {}]
  %s5 = inlined_call_operand.vmem [shape: bf16[2,32,32], index: 5, kind: input, shape index: {}]
  %s6 = inlined_call_operand.vmem [shape: f32[2,1,32], index: 6, kind: input, shape index: {}]
  %s7 = inlined_call_operand.hbm [shape: f32[2,1,32], index: 7, kind: input, shape index: {}]
  %s8 = inlined_call_operand.vmem [shape: f32[2,1,32], index: 8, kind: input, shape index: {}]
  %s9 = inlined_call_operand.hbm [shape: bf16[2,32,64], index: 9, kind: input, shape index: {}]
  %s10 = inlined_call_operand.vmem [shape: f32[2,1,64], index: 10, kind: input, shape index: {}]
  %s11 = inlined_call_operand.vmem [shape: bf16[2,64,32], index: 11, kind: input, shape index: {}]
  %s12 = inlined_call_operand.vmem [shape: f32[2,1,32], index: 12, kind: input, shape index: {}]
  %s13 = inlined_call_operand.hbm [shape: f32[2,1,32], index: 13, kind: input, shape index: {}]
  %s14 = inlined_call_operand.vmem [shape: f32[2,1,32], index: 14, kind: input, shape index: {}]
  %s15 = inlined_call_operand.hbm [shape: f32[2,8,32], index: 15, kind: output, shape index: {0}]
  %s16 = inlined_call_operand.hbm [shape: f32[2,16,32], index: 16, kind: output, shape index: {1}]
  %17 = xla_tuple %s15, %s16
  %s18 = sld [smem:[#allocation0]]
  $region125: #{tpu_custom_call.1} parent=0
    _
  %s20 = ssub.s32 1, %s18
  %s21 = scalar_select 0, %s20, %s18
  %s23 = sshll.u32 %s0, 4
  %s24 = int_to_ptr.hbm [resolvable:$true] %s23
  %26 = dma.hbm_to_smem %s24, 16, [#allocation3], [#allocation2]
  %28 = dma.done [#allocation2], 16
  %29 = sfence
  $region1: #{tpu_custom_call.1} parent=0
    #allocation4 [shape = 'u8[8192]{0}', space=vmem, size = 0x2000, scoped, tag = 'input window, operand 1']
    #allocation5 [shape = 's32[2]{0}', space=sflag, size = 0x8, scoped, tag = 'scoped memory for tpu_custom_call.1']
    #allocation6 [shape = 's32[2]{0}', space=sflag, size = 0x8, scoped, tag = 'scoped memory for tpu_custom_call.1']
    #allocation7 [shape = 'u8[1024]{0}', space=vmem, size = 0x400, scoped, tag = 'input window, operand 7']
    #allocation8 [shape = 's32[2]{0}', space=sflag, size = 0x8, scoped, tag = 'scoped memory for tpu_custom_call.1']
    #allocation9 [shape = 'u8[16384]{0}', space=vmem, size = 0x4000, scoped, tag = 'input window, operand 9']
    #allocation10 [shape = 'u8[1024]{0}', space=vmem, size = 0x400, scoped, tag = 'input window, operand 13']
    #allocation11 [shape = 's32[2]{0}', space=sflag, size = 0x8, scoped, tag = 'scoped memory for tpu_custom_call.1']
    #allocation12 [shape = 'u8[8192]{0}', space=vmem, size = 0x2000, scoped, tag = 'output window, operand 0']
    #allocation13 [shape = 'u8[16384]{0}', space=vmem, size = 0x4000, scoped, tag = 'output window, operand 1']
    #allocation14 [shape = 's32[2]{0}', space=sflag, size = 0x8, scoped, tag = 'scoped memory for tpu_custom_call.1']
    %30 = vsyncpa [#allocation5], 0
    %s31 = scalar_lea.sflag [#allocation5], 1
    %32 = vsyncpa %s31, 0
    %33 = vsyncpa [#allocation8], 0
    %s34 = scalar_lea.sflag [#allocation8], 1
    %35 = vsyncpa %s34, 0
    %36 = vsyncpa [#allocation11], 0
    %s37 = scalar_lea.sflag [#allocation11], 1
    %38 = vsyncpa %s37, 0
    %39 = vsyncpa [#allocation6], 0
    %s40 = scalar_lea.sflag [#allocation6], 1
    %41 = vsyncpa %s40, 0
    %42 = vsyncpa [#allocation14], 0
    %s43 = scalar_lea.sflag [#allocation14], 1
    %44 = vsyncpa %s43, 0
    loop: start=0, step=1, limit=6
    $region2: #{tpu_custom_call.1} parent=1 // loop_pre_header
      _
    $region3: #{tpu_custom_call.1} parent=1 // loop_header
      %s46 = sphi 0, %s50
      %p47 = scmp.ge.s32.totalorder %s46, 6
      %s53 = sphi 0, %s65
      %s54 = sphi 0, %s61
      %s55 = sphi 0, %s53
      %s56 = sphi 0, %s54
      %s57 = sphi 0, %s55
      %s58 = sphi 0, %s56
      %s68 = sphi 0, %s70
      %s71 = sphi 0, %s68
      %s72 = sphi 0, %s71
      %s88 = sphi 0, %s72
      %s94 = sphi 0, %s96
      %s97 = sphi 0, %s94
      %s98 = sphi 0, %s97
      %s114 = sphi 0, %s98
      %s120 = sphi 0, %s122
      %s123 = sphi 0, %s120
      %s124 = sphi 0, %s123
      %s140 = sphi 0, %s124
      %s146 = sphi 0, %s148
      %s149 = sphi 0, %s146
      %s150 = sphi 0, %s149
      %s166 = sphi 0, %s150
      %s172 = sphi 0, %s174
      %s175 = sphi 0, %s172
      %s176 = sphi 0, %s175
      %s192 = sphi 0, %s176
      %s198 = sphi 0, %s200
      %s201 = sphi 0, %s198
      %s202 = sphi 0, %s201
      %s218 = sphi 0, %s202
      %s224 = sphi 0, %s226
      %s227 = sphi 0, %s224
      %s228 = sphi 0, %s227
      %s244 = sphi 0, %s228
      %s250 = sphi 0, %s252
      %s253 = sphi 0, %s250
      %s254 = sphi 0, %s253
      %s270 = sphi 0, %s254
      %s276 = sphi 0, %s278
      %s279 = sphi 0, %s276
      %s280 = sphi 0, %s279
      %s296 = sphi 0, %s280
      %s302 = sphi 0, %s304
      %s305 = sphi 0, %s302
      %s306 = sphi 0, %s305
      %s322 = sphi 0, %s306
      %s328 = sphi 0, %s330
      %s331 = sphi 0, %s328
      %s332 = sphi 0, %s331
      %s348 = sphi 0, %s332
      %s354 = sphi 0, %s356
      %s357 = sphi 0, %s354
      %s358 = sphi 0, %s357
      %s374 = sphi 0, %s358
      %s380 = sphi 0, %s382
      %s383 = sphi 0, %s380
      %s384 = sphi 0, %s383
      %s400 = sphi 0, %s384
      %s406 = sphi 0, %s408
      %s409 = sphi 0, %s406
      %s410 = sphi 0, %s409
      %s426 = sphi 0, %s410
      %s432 = sphi 0, %s434
      %s435 = sphi 0, %s432
      %s436 = sphi 0, %s435
      %s452 = sphi 0, %s436
      %s458 = sphi 0, %s460
      %s461 = sphi 0, %s458
      %s462 = sphi 0, %s461
      %s478 = sphi 0, %s462
    $region4: #{tpu_custom_call.1} parent=1 // loop_header_branch
      %49 = sbr.rel (%p47) target = $region8
    $region5: #{tpu_custom_call.1} parent=1 // loop_body
      %s51 = ssub.s32 %s46, 1
      %s52 = ssub.s32 %s46, 2
      %s59 = sadd.s32 1, %s54
      %p60 = scmp.ge.s32.totalorder %s59, 2
      %s61 = scalar_select %p60, 0, %s59
      %s62 = sadd.s32 1, %s53
      %s63 = scalar_select %p60, %s62, %s53
      %p64 = scmp.ge.s32.totalorder %s63, 2
      %s65 = scalar_select %p64, 0, %s63
      %s66 = ssub.s32 %s53, %s65
      %p67 = scmp.eq.s32.totalorder %s66, 0
      %s69 = sadd.s32 %s68, 1
      %s70 = scalar_select %p67, %s68, %s69
      %p73 = pneg %p67
      %p74 = scmp.eq.s32.totalorder %s46, 3
      %p75 = por %p73, %p74
      %p76 = scmp.ne.s32.totalorder %s68, %s71
      %p77 = scmp.eq.s32.totalorder %s46, 0
      %p78 = por %p76, %p77
      %p79 = scmp.ne.s32.totalorder %s68, %s71
      %p80 = scmp.eq.s32.totalorder %s51, 3
      %p81 = por %p79, %p80
      %p82 = scmp.ne.s32.totalorder %s71, %s72
      %p83 = scmp.eq.s32.totalorder %s51, 0
      %p84 = por %p82, %p83
      %p85 = scmp.ne.s32.totalorder %s71, %s72
      %p86 = scmp.eq.s32.totalorder %s52, 3
      %p87 = por %p85, %p86
      %p89 = scmp.ne.s32.totalorder %s72, %s88
      %p90 = scmp.eq.s32.totalorder %s52, 0
      %p91 = por %p89, %p90
      %s92 = ssub.s32 %s53, %s65
      %p93 = scmp.eq.s32.totalorder %s92, 0
      %s95 = sadd.s32 %s94, 1
      %s96 = scalar_select %p93, %s94, %s95
      %p99 = pneg %p93
      %p100 = scmp.eq.s32.totalorder %s46, 3
      %p101 = por %p99, %p100
      %p102 = scmp.ne.s32.totalorder %s94, %s97
      %p103 = scmp.eq.s32.totalorder %s46, 0
      %p104 = por %p102, %p103
      %p105 = scmp.ne.s32.totalorder %s94, %s97
      %p106 = scmp.eq.s32.totalorder %s51, 3
      %p107 = por %p105, %p106
      %p108 = scmp.ne.s32.totalorder %s97, %s98
      %p109 = scmp.eq.s32.totalorder %s51, 0
      %p110 = por %p108, %p109
      %p111 = scmp.ne.s32.totalorder %s97, %s98
      %p112 = scmp.eq.s32.totalorder %s52, 3
      %p113 = por %p111, %p112
      %p115 = scmp.ne.s32.totalorder %s98, %s114
      %p116 = scmp.eq.s32.totalorder %s52, 0
      %p117 = por %p115, %p116
      %s118 = ssub.s32 %s54, %s61
      %p119 = scmp.eq.s32.totalorder %s118, 0
      %s121 = sadd.s32 %s120, 1
      %s122 = scalar_select %p119, %s120, %s121
      %p125 = pneg %p119
      %p126 = scmp.eq.s32.totalorder %s46, 3
      %p127 = por %p125, %p126
      %p128 = scmp.ne.s32.totalorder %s120, %s123
      %p129 = scmp.eq.s32.totalorder %s46, 0
      %p130 = por %p128, %p129
      %p131 = scmp.ne.s32.totalorder %s120, %s123
      %p132 = scmp.eq.s32.totalorder %s51, 3
      %p133 = por %p131, %p132
      %p134 = scmp.ne.s32.totalorder %s123, %s124
      %p135 = scmp.eq.s32.totalorder %s51, 0
      %p136 = por %p134, %p135
      %p137 = scmp.ne.s32.totalorder %s123, %s124
      %p138 = scmp.eq.s32.totalorder %s52, 3
      %p139 = por %p137, %p138
      %p141 = scmp.ne.s32.totalorder %s124, %s140
      %p142 = scmp.eq.s32.totalorder %s52, 0
      %p143 = por %p141, %p142
      %s144 = ssub.s32 %s54, %s61
      %p145 = scmp.eq.s32.totalorder %s144, 0
      %s147 = sadd.s32 %s146, 1
      %s148 = scalar_select %p145, %s146, %s147
      %p151 = pneg %p145
      %p152 = scmp.eq.s32.totalorder %s46, 3
      %p153 = por %p151, %p152
      %p154 = scmp.ne.s32.totalorder %s146, %s149
      %p155 = scmp.eq.s32.totalorder %s46, 0
      %p156 = por %p154, %p155
      %p157 = scmp.ne.s32.totalorder %s146, %s149
      %p158 = scmp.eq.s32.totalorder %s51, 3
      %p159 = por %p157, %p158
      %p160 = scmp.ne.s32.totalorder %s149, %s150
      %p161 = scmp.eq.s32.totalorder %s51, 0
      %p162 = por %p160, %p161
      %p163 = scmp.ne.s32.totalorder %s149, %s150
      %p164 = scmp.eq.s32.totalorder %s52, 3
      %p165 = por %p163, %p164
      %p167 = scmp.ne.s32.totalorder %s150, %s166
      %p168 = scmp.eq.s32.totalorder %s52, 0
      %p169 = por %p167, %p168
      %s170 = ssub.s32 %s54, %s61
      %p171 = scmp.eq.s32.totalorder %s170, 0
      %s173 = sadd.s32 %s172, 1
      %s174 = scalar_select %p171, %s172, %s173
      %p177 = pneg %p171
      %p178 = scmp.eq.s32.totalorder %s46, 3
      %p179 = por %p177, %p178
      %p180 = scmp.ne.s32.totalorder %s172, %s175
      %p181 = scmp.eq.s32.totalorder %s46, 0
      %p182 = por %p180, %p181
      %p183 = scmp.ne.s32.totalorder %s172, %s175
      %p184 = scmp.eq.s32.totalorder %s51, 3
      %p185 = por %p183, %p184
      %p186 = scmp.ne.s32.totalorder %s175, %s176
      %p187 = scmp.eq.s32.totalorder %s51, 0
      %p188 = por %p186, %p187
      %p189 = scmp.ne.s32.totalorder %s175, %s176
      %p190 = scmp.eq.s32.totalorder %s52, 3
      %p191 = por %p189, %p190
      %p193 = scmp.ne.s32.totalorder %s176, %s192
      %p194 = scmp.eq.s32.totalorder %s52, 0
      %p195 = por %p193, %p194
      %s196 = ssub.s32 %s54, %s61
      %p197 = scmp.eq.s32.totalorder %s196, 0
      %s199 = sadd.s32 %s198, 1
      %s200 = scalar_select %p197, %s198, %s199
      %p203 = pneg %p197
      %p204 = scmp.eq.s32.totalorder %s46, 3
      %p205 = por %p203, %p204
      %p206 = scmp.ne.s32.totalorder %s198, %s201
      %p207 = scmp.eq.s32.totalorder %s46, 0
      %p208 = por %p206, %p207
      %p209 = scmp.ne.s32.totalorder %s198, %s201
      %p210 = scmp.eq.s32.totalorder %s51, 3
      %p211 = por %p209, %p210
      %p212 = scmp.ne.s32.totalorder %s201, %s202
      %p213 = scmp.eq.s32.totalorder %s51, 0
      %p214 = por %p212, %p213
      %p215 = scmp.ne.s32.totalorder %s201, %s202
      %p216 = scmp.eq.s32.totalorder %s52, 3
      %p217 = por %p215, %p216
      %p219 = scmp.ne.s32.totalorder %s202, %s218
      %p220 = scmp.eq.s32.totalorder %s52, 0
      %p221 = por %p219, %p220
      %s222 = ssub.s32 %s54, %s61
      %p223 = scmp.eq.s32.totalorder %s222, 0
      %s225 = sadd.s32 %s224, 1
      %s226 = scalar_select %p223, %s224, %s225
      %p229 = pneg %p223
      %p230 = scmp.eq.s32.totalorder %s46, 3
      %p231 = por %p229, %p230
      %p232 = scmp.ne.s32.totalorder %s224, %s227
      %p233 = scmp.eq.s32.totalorder %s46, 0
      %p234 = por %p232, %p233
      %p235 = scmp.ne.s32.totalorder %s224, %s227
      %p236 = scmp.eq.s32.totalorder %s51, 3
      %p237 = por %p235, %p236
      %p238 = scmp.ne.s32.totalorder %s227, %s228
      %p239 = scmp.eq.s32.totalorder %s51, 0
      %p240 = por %p238, %p239
      %p241 = scmp.ne.s32.totalorder %s227, %s228
      %p242 = scmp.eq.s32.totalorder %s52, 3
      %p243 = por %p241, %p242
      %p245 = scmp.ne.s32.totalorder %s228, %s244
      %p246 = scmp.eq.s32.totalorder %s52, 0
      %p247 = por %p245, %p246
      %s248 = ssub.s32 %s54, %s61
      %p249 = scmp.eq.s32.totalorder %s248, 0
      %s251 = sadd.s32 %s250, 1
      %s252 = scalar_select %p249, %s250, %s251
      %p255 = pneg %p249
      %p256 = scmp.eq.s32.totalorder %s46, 3
      %p257 = por %p255, %p256
      %p258 = scmp.ne.s32.totalorder %s250, %s253
      %p259 = scmp.eq.s32.totalorder %s46, 0
      %p260 = por %p258, %p259
      %p261 = scmp.ne.s32.totalorder %s250, %s253
      %p262 = scmp.eq.s32.totalorder %s51, 3
      %p263 = por %p261, %p262
      %p264 = scmp.ne.s32.totalorder %s253, %s254
      %p265 = scmp.eq.s32.totalorder %s51, 0
      %p266 = por %p264, %p265
      %p267 = scmp.ne.s32.totalorder %s253, %s254
      %p268 = scmp.eq.s32.totalorder %s52, 3
      %p269 = por %p267, %p268
      %p271 = scmp.ne.s32.totalorder %s254, %s270
      %p272 = scmp.eq.s32.totalorder %s52, 0
      %p273 = por %p271, %p272
      %s274 = ssub.s32 %s54, %s61
      %p275 = scmp.eq.s32.totalorder %s274, 0
      %s277 = sadd.s32 %s276, 1
      %s278 = scalar_select %p275, %s276, %s277
      %p281 = pneg %p275
      %p282 = scmp.eq.s32.totalorder %s46, 3
      %p283 = por %p281, %p282
      %p284 = scmp.ne.s32.totalorder %s276, %s279
      %p285 = scmp.eq.s32.totalorder %s46, 0
      %p286 = por %p284, %p285
      %p287 = scmp.ne.s32.totalorder %s276, %s279
      %p288 = scmp.eq.s32.totalorder %s51, 3
      %p289 = por %p287, %p288
      %p290 = scmp.ne.s32.totalorder %s279, %s280
      %p291 = scmp.eq.s32.totalorder %s51, 0
      %p292 = por %p290, %p291
      %p293 = scmp.ne.s32.totalorder %s279, %s280
      %p294 = scmp.eq.s32.totalorder %s52, 3
      %p295 = por %p293, %p294
      %p297 = scmp.ne.s32.totalorder %s280, %s296
      %p298 = scmp.eq.s32.totalorder %s52, 0
      %p299 = por %p297, %p298
      %s300 = ssub.s32 %s54, %s61
      %p301 = scmp.eq.s32.totalorder %s300, 0
      %s303 = sadd.s32 %s302, 1
      %s304 = scalar_select %p301, %s302, %s303
      %p307 = pneg %p301
      %p308 = scmp.eq.s32.totalorder %s46, 3
      %p309 = por %p307, %p308
      %p310 = scmp.ne.s32.totalorder %s302, %s305
      %p311 = scmp.eq.s32.totalorder %s46, 0
      %p312 = por %p310, %p311
      %p313 = scmp.ne.s32.totalorder %s302, %s305
      %p314 = scmp.eq.s32.totalorder %s51, 3
      %p315 = por %p313, %p314
      %p316 = scmp.ne.s32.totalorder %s305, %s306
      %p317 = scmp.eq.s32.totalorder %s51, 0
      %p318 = por %p316, %p317
      %p319 = scmp.ne.s32.totalorder %s305, %s306
      %p320 = scmp.eq.s32.totalorder %s52, 3
      %p321 = por %p319, %p320
      %p323 = scmp.ne.s32.totalorder %s306, %s322
      %p324 = scmp.eq.s32.totalorder %s52, 0
      %p325 = por %p323, %p324
      %s326 = ssub.s32 %s54, %s61
      %p327 = scmp.eq.s32.totalorder %s326, 0
      %s329 = sadd.s32 %s328, 1
      %s330 = scalar_select %p327, %s328, %s329
      %p333 = pneg %p327
      %p334 = scmp.eq.s32.totalorder %s46, 3
      %p335 = por %p333, %p334
      %p336 = scmp.ne.s32.totalorder %s328, %s331
      %p337 = scmp.eq.s32.totalorder %s46, 0
      %p338 = por %p336, %p337
      %p339 = scmp.ne.s32.totalorder %s328, %s331
      %p340 = scmp.eq.s32.totalorder %s51, 3
      %p341 = por %p339, %p340
      %p342 = scmp.ne.s32.totalorder %s331, %s332
      %p343 = scmp.eq.s32.totalorder %s51, 0
      %p344 = por %p342, %p343
      %p345 = scmp.ne.s32.totalorder %s331, %s332
      %p346 = scmp.eq.s32.totalorder %s52, 3
      %p347 = por %p345, %p346
      %p349 = scmp.ne.s32.totalorder %s332, %s348
      %p350 = scmp.eq.s32.totalorder %s52, 0
      %p351 = por %p349, %p350
      %s352 = ssub.s32 %s54, %s61
      %p353 = scmp.eq.s32.totalorder %s352, 0
      %s355 = sadd.s32 %s354, 1
      %s356 = scalar_select %p353, %s354, %s355
      %p359 = pneg %p353
      %p360 = scmp.eq.s32.totalorder %s46, 3
      %p361 = por %p359, %p360
      %p362 = scmp.ne.s32.totalorder %s354, %s357
      %p363 = scmp.eq.s32.totalorder %s46, 0
      %p364 = por %p362, %p363
      %p365 = scmp.ne.s32.totalorder %s354, %s357
      %p366 = scmp.eq.s32.totalorder %s51, 3
      %p367 = por %p365, %p366
      %p368 = scmp.ne.s32.totalorder %s357, %s358
      %p369 = scmp.eq.s32.totalorder %s51, 0
      %p370 = por %p368, %p369
      %p371 = scmp.ne.s32.totalorder %s357, %s358
      %p372 = scmp.eq.s32.totalorder %s52, 3
      %p373 = por %p371, %p372
      %p375 = scmp.ne.s32.totalorder %s358, %s374
      %p376 = scmp.eq.s32.totalorder %s52, 0
      %p377 = por %p375, %p376
      %s378 = ssub.s32 %s54, %s61
      %p379 = scmp.eq.s32.totalorder %s378, 0
      %s381 = sadd.s32 %s380, 1
      %s382 = scalar_select %p379, %s380, %s381
      %p385 = pneg %p379
      %p386 = scmp.eq.s32.totalorder %s46, 3
      %p387 = por %p385, %p386
      %p388 = scmp.ne.s32.totalorder %s380, %s383
      %p389 = scmp.eq.s32.totalorder %s46, 0
      %p390 = por %p388, %p389
      %p391 = scmp.ne.s32.totalorder %s380, %s383
      %p392 = scmp.eq.s32.totalorder %s51, 3
      %p393 = por %p391, %p392
      %p394 = scmp.ne.s32.totalorder %s383, %s384
      %p395 = scmp.eq.s32.totalorder %s51, 0
      %p396 = por %p394, %p395
      %p397 = scmp.ne.s32.totalorder %s383, %s384
      %p398 = scmp.eq.s32.totalorder %s52, 3
      %p399 = por %p397, %p398
      %p401 = scmp.ne.s32.totalorder %s384, %s400
      %p402 = scmp.eq.s32.totalorder %s52, 0
      %p403 = por %p401, %p402
      %s404 = ssub.s32 %s54, %s61
      %p405 = scmp.eq.s32.totalorder %s404, 0
      %s407 = sadd.s32 %s406, 1
      %s408 = scalar_select %p405, %s406, %s407
      %p411 = pneg %p405
      %p412 = scmp.eq.s32.totalorder %s46, 3
      %p413 = por %p411, %p412
      %p414 = scmp.ne.s32.totalorder %s406, %s409
      %p415 = scmp.eq.s32.totalorder %s46, 0
      %p416 = por %p414, %p415
      %p417 = scmp.ne.s32.totalorder %s406, %s409
      %p418 = scmp.eq.s32.totalorder %s51, 3
      %p419 = por %p417, %p418
      %p420 = scmp.ne.s32.totalorder %s409, %s410
      %p421 = scmp.eq.s32.totalorder %s51, 0
      %p422 = por %p420, %p421
      %p423 = scmp.ne.s32.totalorder %s409, %s410
      %p424 = scmp.eq.s32.totalorder %s52, 3
      %p425 = por %p423, %p424
      %p427 = scmp.ne.s32.totalorder %s410, %s426
      %p428 = scmp.eq.s32.totalorder %s52, 0
      %p429 = por %p427, %p428
      %s430 = ssub.s32 %s53, %s65
      %p431 = scmp.eq.s32.totalorder %s430, 0
      %s433 = sadd.s32 %s432, 1
      %s434 = scalar_select %p431, %s432, %s433
      %p437 = pneg %p431
      %p438 = scmp.eq.s32.totalorder %s46, 3
      %p439 = por %p437, %p438
      %p440 = scmp.ne.s32.totalorder %s432, %s435
      %p441 = scmp.eq.s32.totalorder %s46, 0
      %p442 = por %p440, %p441
      %p443 = scmp.ne.s32.totalorder %s432, %s435
      %p444 = scmp.eq.s32.totalorder %s51, 3
      %p445 = por %p443, %p444
      %p446 = scmp.ne.s32.totalorder %s435, %s436
      %p447 = scmp.eq.s32.totalorder %s51, 0
      %p448 = por %p446, %p447
      %p449 = scmp.ne.s32.totalorder %s435, %s436
      %p450 = scmp.eq.s32.totalorder %s52, 3
      %p451 = por %p449, %p450
      %p453 = scmp.ne.s32.totalorder %s436, %s452
      %p454 = scmp.eq.s32.totalorder %s52, 0
      %p455 = por %p453, %p454
      %s456 = ssub.s32 %s53, %s65
      %p457 = scmp.eq.s32.totalorder %s456, 0
      %s459 = sadd.s32 %s458, 1
      %s460 = scalar_select %p457, %s458, %s459
      %p463 = pneg %p457
      %p464 = scmp.eq.s32.totalorder %s46, 3
      %p465 = por %p463, %p464
      %p466 = scmp.ne.s32.totalorder %s458, %s461
      %p467 = scmp.eq.s32.totalorder %s46, 0
      %p468 = por %p466, %p467
      %p469 = scmp.ne.s32.totalorder %s458, %s461
      %p470 = scmp.eq.s32.totalorder %s51, 3
      %p471 = por %p469, %p470
      %p472 = scmp.ne.s32.totalorder %s461, %s462
      %p473 = scmp.eq.s32.totalorder %s51, 0
      %p474 = por %p472, %p473
      %p475 = scmp.ne.s32.totalorder %s461, %s462
      %p476 = scmp.eq.s32.totalorder %s52, 3
      %p477 = por %p475, %p476
      %p479 = scmp.ne.s32.totalorder %s462, %s478
      %p480 = scmp.eq.s32.totalorder %s52, 0
      %p481 = por %p479, %p480
      %p482 = scmp.le.s32.totalorder 1, %s46
      %p483 = scmp.lt.s32.totalorder %s46, 5
      %p484 = pnand %p482, %p483
      %p485 = pneg %p484
      // Predicated region
      $region9: #{tpu_custom_call.1} parent=5 // pred_check
        _
      $region10: #{tpu_custom_call.1} parent=5 // pred_check_branch
        %487 = sbr.rel (%p484) target = $region12
      $region11: #{tpu_custom_call.1} parent=5 // pred_region
        %s488 = ssub.s32 %s46, 1
      $region12: #{tpu_custom_call.1} parent=5 // pred_fallthru
        _
      %p489 = scmp.lt.s32.totalorder %s46, 4
      // Predicated region
      $region13: #{tpu_custom_call.1} parent=5 // pred_check
        %p490 = pneg %p489
      $region14: #{tpu_custom_call.1} parent=5 // pred_check_branch
        %492 = sbr.rel (%p490) target = $region16
      $region15: #{tpu_custom_call.1} parent=5 // pred_region
        // Predicated region
        $region17: #{tpu_custom_call.1} parent=15 // pred_check
          %p493 = pneg %p78
        $region18: #{tpu_custom_call.1} parent=15 // pred_check_branch
          %495 = sbr.rel (%p493) target = $region20
        $region19: #{tpu_custom_call.1} parent=15 // pred_region
          %s496 = sand.u32 %s68, 1
          %s497 = scalar_lea.sflag [#allocation5], %s496
          %s498 = sand.u32 %s68, 1
          %s499 = smul.addr %s498, 8
          %s500 = scalar_lea.vmem [#allocation4], %s499
          %502 = vsyncadd %s497, 0
          %s503 = smul.addr %s53, 8
          %s504 = scalar_lea.hbm %s1, %s503
          %s506 = sshll.u32 %s504, 4
          %s507 = int_to_ptr.hbm [resolvable:$true] %s506
          %s508 = sshll.u32 %s500, 4
          %s509 = int_to_ptr.vmem [resolvable:$true] %s508
          %511 = dma.hbm_to_vmem [thread:$0]  %s507, 128, %s509, %s497
        $region20: #{tpu_custom_call.1} parent=15 // pred_fallthru
          _
        // Predicated region
        $region21: #{tpu_custom_call.1} parent=15 // pred_check
          %p512 = pneg %p104
        $region22: #{tpu_custom_call.1} parent=15 // pred_check_branch
          %514 = sbr.rel (%p512) target = $region24
        $region23: #{tpu_custom_call.1} parent=15 // pred_region
          %p515 = scmp.lt.s32.totalorder %s53, 1
          %s516 = scalar_select %p515, %s53, 1
          %s517 = smul.addr %s516, 2
          %s518 = smul.addr %s517, 8
          %s519 = scalar_lea.vmem %s2, %s518
        $region24: #{tpu_custom_call.1} parent=15 // pred_fallthru
          _
        // Predicated region
        $region25: #{tpu_custom_call.1} parent=15 // pred_check
          %p520 = pneg %p130
        $region26: #{tpu_custom_call.1} parent=15 // pred_check_branch
          %522 = sbr.rel (%p520) target = $region28
        $region27: #{tpu_custom_call.1} parent=15 // pred_region
          %p523 = scmp.lt.s32.totalorder %s54, 1
          %s524 = scalar_select %p523, %s54, 1
          %s525 = smul.addr %s524, 4
          %s526 = smul.addr %s525, 4
          %s527 = scalar_lea.vmem %s3, %s526
        $region28: #{tpu_custom_call.1} parent=15 // pred_fallthru
          _
        // Predicated region
        $region29: #{tpu_custom_call.1} parent=15 // pred_check
          %p528 = pneg %p156
        $region30: #{tpu_custom_call.1} parent=15 // pred_check_branch
          %530 = sbr.rel (%p528) target = $region32
        $region31: #{tpu_custom_call.1} parent=15 // pred_region
          %p531 = scmp.lt.s32.totalorder %s54, 1
          %s532 = scalar_select %p531, %s54, 1
          %s533 = scalar_lea.vmem %s4, %s532
        $region32: #{tpu_custom_call.1} parent=15 // pred_fallthru
          _
        // Predicated region
        $region33: #{tpu_custom_call.1} parent=15 // pred_check
          %p534 = pneg %p182
        $region34: #{tpu_custom_call.1} parent=15 // pred_check_branch
          %536 = sbr.rel (%p534) target = $region36
        $region35: #{tpu_custom_call.1} parent=15 // pred_region
          %p537 = scmp.lt.s32.totalorder %s54, 1
          %s538 = scalar_select %p537, %s54, 1
          %s539 = smul.addr %s538, 4
          %s540 = smul.addr %s539, 4
          %s541 = scalar_lea.vmem %s5, %s540
        $region36: #{tpu_custom_call.1} parent=15 // pred_fallthru
          _
        // Predicated region
        $region37: #{tpu_custom_call.1} parent=15 // pred_check
          %p542 = pneg %p208
        $region38: #{tpu_custom_call.1} parent=15 // pred_check_branch
          %544 = sbr.rel (%p542) target = $region40
        $region39: #{tpu_custom_call.1} parent=15 // pred_region
          %p545 = scmp.lt.s32.totalorder %s54, 1
          %s546 = scalar_select %p545, %s54, 1
          %s547 = scalar_lea.vmem %s6, %s546
        $region40: #{tpu_custom_call.1} parent=15 // pred_fallthru
          _
        // Predicated region
        $region41: #{tpu_custom_call.1} parent=15 // pred_check
          %p548 = pneg %p234
        $region42: #{tpu_custom_call.1} parent=15 // pred_check_branch
          %550 = sbr.rel (%p548) target = $region44
        $region43: #{tpu_custom_call.1} parent=15 // pred_region
          %s551 = sand.u32 %s46, 1
          %s552 = scalar_lea.sflag [#allocation8], %s551
          %s553 = sand.u32 %s224, 1
          %s554 = scalar_lea.vmem [#allocation7], %s553
          %556 = vsyncadd %s552, 0
          %s557 = scalar_lea.hbm %s7, %s54
          %s559 = sshll.u32 %s557, 4
          %s560 = int_to_ptr.hbm [resolvable:$true] %s559
          %s561 = sshll.u32 %s554, 4
          %s562 = int_to_ptr.vmem [resolvable:$true] %s561
          %564 = dma.hbm_to_vmem [thread:$0]  %s560, 16, %s562, %s552
        $region44: #{tpu_custom_call.1} parent=15 // pred_fallthru
          _
        // Predicated region
        $region45: #{tpu_custom_call.1} parent=15 // pred_check
          %p565 = pneg %p260
        $region46: #{tpu_custom_call.1} parent=15 // pred_check_branch
          %567 = sbr.rel (%p565) target = $region48
        $region47: #{tpu_custom_call.1} parent=15 // pred_region
          %p568 = scmp.lt.s32.totalorder %s54, 1
          %s569 = scalar_select %p568, %s54, 1
          %s570 = scalar_lea.vmem %s8, %s569
        $region48: #{tpu_custom_call.1} parent=15 // pred_fallthru
          _
        // Predicated region
        $region49: #{tpu_custom_call.1} parent=15 // pred_check
          %p571 = pneg %p286
        $region50: #{tpu_custom_call.1} parent=15 // pred_check_branch
          %573 = sbr.rel (%p571) target = $region52
        $region51: #{tpu_custom_call.1} parent=15 // pred_region
          %s574 = sand.u32 %s46, 1
          %s575 = scalar_lea.sflag [#allocation8], %s574
          %s576 = sand.u32 %s276, 1
          %s577 = smul.addr %s576, 16
          %s578 = scalar_lea.vmem [#allocation9], %s577
          %580 = vsyncadd %s575, 0
          %s581 = smul.addr %s54, 4
          %s582 = smul.addr %s581, 4
          %s583 = scalar_lea.hbm %s9, %s582
          %s584 = sshll.u32 %s583, 4
          %s585 = int_to_ptr.hbm [resolvable:$true] %s584
          %s586 = sshll.u32 %s578, 4
          %s587 = int_to_ptr.vmem [resolvable:$true] %s586
          %592 = dma.hbm_to_vmem [thread:$0]  %s585, 256, %s587, %s575, 64, 64, 4
        $region52: #{tpu_custom_call.1} parent=15 // pred_fallthru
          _
        // Predicated region
        $region53: #{tpu_custom_call.1} parent=15 // pred_check
          %p593 = pneg %p312
        $region54: #{tpu_custom_call.1} parent=15 // pred_check_branch
          %595 = sbr.rel (%p593) target = $region56
        $region55: #{tpu_custom_call.1} parent=15 // pred_region
          %p596 = scmp.lt.s32.totalorder %s54, 1
          %s597 = scalar_select %p596, %s54, 1
          %s598 = scalar_lea.vmem %s10, %s597
        $region56: #{tpu_custom_call.1} parent=15 // pred_fallthru
          _
        // Predicated region
        $region57: #{tpu_custom_call.1} parent=15 // pred_check
          %p599 = pneg %p338
        $region58: #{tpu_custom_call.1} parent=15 // pred_check_branch
          %601 = sbr.rel (%p599) target = $region60
        $region59: #{tpu_custom_call.1} parent=15 // pred_region
          %p602 = scmp.lt.s32.totalorder %s54, 1
          %s603 = scalar_select %p602, %s54, 1
          %s604 = smul.addr %s603, 8
          %s605 = smul.addr %s604, 4
          %s606 = scalar_lea.vmem %s11, %s605
        $region60: #{tpu_custom_call.1} parent=15 // pred_fallthru
          _
        // Predicated region
        $region61: #{tpu_custom_call.1} parent=15 // pred_check
          %p607 = pneg %p364
        $region62: #{tpu_custom_call.1} parent=15 // pred_check_branch
          %609 = sbr.rel (%p607) target = $region64
        $region63: #{tpu_custom_call.1} parent=15 // pred_region
          %p610 = scmp.lt.s32.totalorder %s54, 1
          %s611 = scalar_select %p610, %s54, 1
          %s612 = scalar_lea.vmem %s12, %s611
        $region64: #{tpu_custom_call.1} parent=15 // pred_fallthru
          _
        // Predicated region
        $region65: #{tpu_custom_call.1} parent=15 // pred_check
          %p613 = pneg %p390
        $region66: #{tpu_custom_call.1} parent=15 // pred_check_branch
          %615 = sbr.rel (%p613) target = $region68
        $region67: #{tpu_custom_call.1} parent=15 // pred_region
          %s616 = sand.u32 %s380, 1
          %s617 = scalar_lea.sflag [#allocation11], %s616
          %s618 = sand.u32 %s380, 1
          %s619 = scalar_lea.vmem [#allocation10], %s618
          %621 = vsyncadd %s617, 0
          %s622 = scalar_lea.hbm %s13, %s54
          %s624 = sshll.u32 %s622, 4
          %s625 = int_to_ptr.hbm [resolvable:$true] %s624
          %s626 = sshll.u32 %s619, 4
          %s627 = int_to_ptr.vmem [resolvable:$true] %s626
          %629 = dma.hbm_to_vmem [thread:$0]  %s625, 16, %s627, %s617
        $region68: #{tpu_custom_call.1} parent=15 // pred_fallthru
          _
        // Predicated region
        $region69: #{tpu_custom_call.1} parent=15 // pred_check
          %p630 = pneg %p416
        $region70: #{tpu_custom_call.1} parent=15 // pred_check_branch
          %632 = sbr.rel (%p630) target = $region72
        $region71: #{tpu_custom_call.1} parent=15 // pred_region
          %p633 = scmp.lt.s32.totalorder %s54, 1
          %s634 = scalar_select %p633, %s54, 1
          %s635 = scalar_lea.vmem %s14, %s634
        $region72: #{tpu_custom_call.1} parent=15 // pred_fallthru
          _
      $region16: #{tpu_custom_call.1} parent=5 // pred_fallthru
        _
      %p636 = scmp.le.s32.totalorder 1, %s46
      %p637 = scmp.lt.s32.totalorder %s46, 5
      %p638 = pnand %p636, %p637
      %p639 = pneg %p638
      // Predicated region
      $region73: #{tpu_custom_call.1} parent=5 // pred_check
        _
      $region74: #{tpu_custom_call.1} parent=5 // pred_check_branch
        %641 = sbr.rel (%p638) target = $region76
      $region75: #{tpu_custom_call.1} parent=5 // pred_region
        %s642 = ssub.s32 %s46, 1
        %s643 = sand.u32 %s71, 1
        %s644 = scalar_lea.sflag [#allocation5], %s643
        %s645 = sand.u32 %s71, 1
        %s646 = smul.addr %s645, 8
        %s647 = scalar_lea.vmem [#allocation4], %s646
        // Predicated region
        $region77: #{tpu_custom_call.1} parent=75 // pred_check
          %p648 = pneg %p84
        $region78: #{tpu_custom_call.1} parent=75 // pred_check_branch
          %650 = sbr.rel (%p648) target = $region80
        $region79: #{tpu_custom_call.1} parent=75 // pred_region
          %652 = dma.done %s644, 128
        $region80: #{tpu_custom_call.1} parent=75 // pred_fallthru
          _
        %s653 = sand.u32 %s51, 1
        %s654 = scalar_lea.sflag [#allocation8], %s653
        %s655 = sand.u32 %s227, 1
        %s656 = scalar_lea.vmem [#allocation7], %s655
        // Predicated region
        $region81: #{tpu_custom_call.1} parent=75 // pred_check
          %p657 = pneg %p240
        $region82: #{tpu_custom_call.1} parent=75 // pred_check_branch
          %659 = sbr.rel (%p657) target = $region84
        $region83: #{tpu_custom_call.1} parent=75 // pred_region
          %661 = dma.done %s654, 16
        $region84: #{tpu_custom_call.1} parent=75 // pred_fallthru
          _
        %s662 = sand.u32 %s51, 1
        %s663 = scalar_lea.sflag [#allocation8], %s662
        %s664 = sand.u32 %s279, 1
        %s665 = smul.addr %s664, 16
        %s666 = scalar_lea.vmem [#allocation9], %s665
        // Predicated region
        $region85: #{tpu_custom_call.1} parent=75 // pred_check
          %p667 = pneg %p292
        $region86: #{tpu_custom_call.1} parent=75 // pred_check_branch
          %669 = sbr.rel (%p667) target = $region88
        $region87: #{tpu_custom_call.1} parent=75 // pred_region
          %671 = dma.done %s663, 256
        $region88: #{tpu_custom_call.1} parent=75 // pred_fallthru
          _
        %s672 = sand.u32 %s383, 1
        %s673 = scalar_lea.sflag [#allocation11], %s672
        %s674 = sand.u32 %s383, 1
        %s675 = scalar_lea.vmem [#allocation10], %s674
        // Predicated region
        $region89: #{tpu_custom_call.1} parent=75 // pred_check
          %p676 = pneg %p396
        $region90: #{tpu_custom_call.1} parent=75 // pred_check_branch
          %678 = sbr.rel (%p676) target = $region92
        $region91: #{tpu_custom_call.1} parent=75 // pred_region
          %680 = dma.done %s673, 16
        $region92: #{tpu_custom_call.1} parent=75 // pred_fallthru
          _
        %s681 = sand.u32 %s71, 1
        %s682 = scalar_lea.sflag [#allocation5], %s681
        %s683 = sand.u32 %s71, 1
        %s684 = smul.addr %s683, 8
        %s685 = scalar_lea.vmem [#allocation4], %s684
        %p686 = pneg %p84
        %p687 = pneg %p81
        %p688 = scmp.lt.s32.totalorder %s55, 1
        %s689 = scalar_select %p688, %s55, 1
        %s690 = smul.addr %s689, 2
        %s691 = smul.addr %s690, 8
        %s692 = scalar_lea.vmem %s2, %s691
        %p693 = pneg %p110
        %p694 = pneg %p107
        %p695 = scmp.lt.s32.totalorder %s56, 1
        %s696 = scalar_select %p695, %s56, 1
        %s697 = smul.addr %s696, 4
        %s698 = smul.addr %s697, 4
        %s699 = scalar_lea.vmem %s3, %s698
        %p700 = pneg %p136
        %p701 = pneg %p133
        %p702 = scmp.lt.s32.totalorder %s56, 1
        %s703 = scalar_select %p702, %s56, 1
        %s704 = scalar_lea.vmem %s4, %s703
        %p705 = pneg %p162
        %p706 = pneg %p159
        %p707 = scmp.lt.s32.totalorder %s56, 1
        %s708 = scalar_select %p707, %s56, 1
        %s709 = smul.addr %s708, 4
        %s710 = smul.addr %s709, 4
        %s711 = scalar_lea.vmem %s5, %s710
        %p712 = pneg %p188
        %p713 = pneg %p185
        %p714 = scmp.lt.s32.totalorder %s56, 1
        %s715 = scalar_select %p714, %s56, 1
        %s716 = scalar_lea.vmem %s6, %s715
        %p717 = pneg %p214
        %p718 = pneg %p211
        %s719 = sand.u32 %s51, 1
        %s720 = scalar_lea.sflag [#allocation8], %s719
        %s721 = sand.u32 %s227, 1
        %s722 = scalar_lea.vmem [#allocation7], %s721
        %p723 = pneg %p240
        %p724 = pneg %p237
        %p725 = scmp.lt.s32.totalorder %s56, 1
        %s726 = scalar_select %p725, %s56, 1
        %s727 = scalar_lea.vmem %s8, %s726
        %p728 = pneg %p266
        %p729 = pneg %p263
        %s730 = sand.u32 %s51, 1
        %s731 = scalar_lea.sflag [#allocation8], %s730
        %s732 = sand.u32 %s279, 1
        %s733 = smul.addr %s732, 16
        %s734 = scalar_lea.vmem [#allocation9], %s733
        %p735 = pneg %p292
        %p736 = pneg %p289
        %p737 = scmp.lt.s32.totalorder %s56, 1
        %s738 = scalar_select %p737, %s56, 1
        %s739 = scalar_lea.vmem %s10, %s738
        %p740 = pneg %p318
        %p741 = pneg %p315
        %p742 = scmp.lt.s32.totalorder %s56, 1
        %s743 = scalar_select %p742, %s56, 1
        %s744 = smul.addr %s743, 8
        %s745 = smul.addr %s744, 4
        %s746 = scalar_lea.vmem %s11, %s745
        %p747 = pneg %p344
        %p748 = pneg %p341
        %p749 = scmp.lt.s32.totalorder %s56, 1
        %s750 = scalar_select %p749, %s56, 1
        %s751 = scalar_lea.vmem %s12, %s750
        %p752 = pneg %p370
        %p753 = pneg %p367
        %s754 = sand.u32 %s383, 1
        %s755 = scalar_lea.sflag [#allocation11], %s754
        %s756 = sand.u32 %s383, 1
        %s757 = scalar_lea.vmem [#allocation10], %s756
        %p758 = pneg %p396
        %p759 = pneg %p393
        %p760 = scmp.lt.s32.totalorder %s56, 1
        %s761 = scalar_select %p760, %s56, 1
        %s762 = scalar_lea.vmem %s14, %s761
        %p763 = pneg %p422
        %p764 = pneg %p419
        %p765 = pneg %p448
        %p766 = pneg %p445
        %s767 = sand.u32 %s435, 1
        %s768 = scalar_lea.sflag [#allocation6], %s767
        %s769 = sand.u32 %s435, 1
        %s770 = smul.addr %s769, 8
        %s771 = scalar_lea.vmem [#allocation12], %s770
        %p772 = pneg %p474
        %p773 = pneg %p471
        %s774 = sand.u32 %s461, 1
        %s775 = scalar_lea.sflag [#allocation14], %s774
        %s776 = sand.u32 %s461, 1
        %s777 = smul.addr %s776, 16
        %s778 = scalar_lea.vmem [#allocation13], %s777
        %p779 = scmp.lt.s32.totalorder %s55, 1
        %s780 = scalar_select %p779, %s55, 1
        %s781 = smul.addr %s780, 2
        %s782 = smul.addr %s781, 8
        %s783 = scalar_lea.vmem %s2, %s782
        %p784 = scmp.lt.s32.totalorder %s56, 1
        %s785 = scalar_select %p784, %s56, 1
        %s786 = smul.addr %s785, 4
        %s787 = smul.addr %s786, 4
        %s788 = scalar_lea.vmem %s3, %s787
        %p789 = scmp.lt.s32.totalorder %s56, 1
        %s790 = scalar_select %p789, %s56, 1
        %s791 = scalar_lea.vmem %s4, %s790
        %p792 = scmp.lt.s32.totalorder %s56, 1
        %s793 = scalar_select %p792, %s56, 1
        %s794 = smul.addr %s793, 4
        %s795 = smul.addr %s794, 4
        %s796 = scalar_lea.vmem %s5, %s795
        %p797 = scmp.lt.s32.totalorder %s56, 1
        %s798 = scalar_select %p797, %s56, 1
        %s799 = scalar_lea.vmem %s6, %s798
        %p800 = scmp.lt.s32.totalorder %s56, 1
        %s801 = scalar_select %p800, %s56, 1
        %s802 = scalar_lea.vmem %s8, %s801
        %p803 = scmp.lt.s32.totalorder %s56, 1
        %s804 = scalar_select %p803, %s56, 1
        %s805 = scalar_lea.vmem %s10, %s804
        %p806 = scmp.lt.s32.totalorder %s56, 1
        %s807 = scalar_select %p806, %s56, 1
        %s808 = smul.addr %s807, 8
        %s809 = smul.addr %s808, 4
        %s810 = scalar_lea.vmem %s11, %s809
        %p811 = scmp.lt.s32.totalorder %s56, 1
        %s812 = scalar_select %p811, %s56, 1
        %s813 = scalar_lea.vmem %s12, %s812
        %p814 = scmp.lt.s32.totalorder %s56, 1
        %s815 = scalar_select %p814, %s56, 1
        %s816 = scalar_lea.vmem %s14, %s815
        %p818 = scmp.eq.s32.totalorder %s56, 0
        // Predicated region
        $region93: #{tpu_custom_call.1} parent=75 // pred_check
          %p819 = pneg %p818
        $region94: #{tpu_custom_call.1} parent=75 // pred_check_branch
          %821 = sbr.rel (%p819) target = $region96
        $region95: #{tpu_custom_call.1} parent=75 // pred_region
          %v822 = vld [vmem:[%s647] sm:$0xff]
          %vm823 = vcmask 261120
          %824 = vst.msk [vmem:[%s771] sm:$0xff] %vm823, %v822
          %v825 = vld [vmem:[%s783] sm:$0xff]
          %v826 = vld [vmem:[%s783 + $0x8] sm:$0xff]
          %827 = vst.msk [vmem:[%s778] sm:$0xff] %vm823, %v825
          %828 = vst.msk [vmem:[%s778 + $0x8] sm:$0xff] %vm823, %v826
        $region96: #{tpu_custom_call.1} parent=75 // pred_fallthru
          _
        %v829 = vld [vmem:[%s788] sm:$0xf]
        %v830 = vld [vmem:[%s788 + $0x4] sm:$0xf]
        %v831 = vld [vmem:[%s788 + $0x8] sm:$0xf]
        %v832 = vld [vmem:[%s788 + $0xc] sm:$0xf]
        %v833 = vld [vmem:[%s791] sm:$0x1]
        %v834 = vld [vmem:[%s796] sm:$0xf]
        %v835 = vld [vmem:[%s796 + $0x4] sm:$0xf]
        %v836 = vld [vmem:[%s796 + $0x8] sm:$0xf]
        %v837 = vld [vmem:[%s796 + $0xc] sm:$0xf]
        %v838 = vld [vmem:[%s799] sm:$0x1]
        %v839 = vld [vmem:[%s656] sm:$0x1]
        %v840 = vld [vmem:[%s802] sm:$0x1]
        %v841 = vld [vmem:[%s666] sm:$0xf]
        %v842 = vld [vmem:[%s666 + $0x4] sm:$0xf]
        %v843 = vld [vmem:[%s666 + $0x8] sm:$0xf]
        %v844 = vld [vmem:[%s666 + $0xc] sm:$0xf]
        %v845 = vld [vmem:[%s805] sm:$0x1]
        %v846 = vld [vmem:[%s810] sm:$0xf]
        %v847 = vld [vmem:[%s810 + $0x4] sm:$0xf]
        %v848 = vld [vmem:[%s810 + $0x8] sm:$0xf]
        %v849 = vld [vmem:[%s810 + $0xc] sm:$0xf]
        %v850 = vld [vmem:[%s810 + $0x10] sm:$0xf]
        %v851 = vld [vmem:[%s810 + $0x14] sm:$0xf]
        %v852 = vld [vmem:[%s810 + $0x18] sm:$0xf]
        %v853 = vld [vmem:[%s810 + $0x1c] sm:$0xf]
        %v854 = vld [vmem:[%s813] sm:$0x1]
        %v855 = vld [vmem:[%s675] sm:$0x1]
        %v856 = vld [vmem:[%s816] sm:$0x1]
        %s857 = sld [smem:[#allocation3 + %s56]]
        %p858 = scmp.eq.s32.totalorder %s857, 0
        // Predicated region
        $region97: #{tpu_custom_call.1} parent=75 // pred_check
          %p859 = pneg %p858
        $region98: #{tpu_custom_call.1} parent=75 // pred_check_branch
          %861 = sbr.rel (%p859) target = $region100
        $region99: #{tpu_custom_call.1} parent=75 // pred_region
          %v862 = vld [vmem:[%s771] sm:$0xff]
          %v863 = vld [vmem:[%s778] sm:$0xff]
          %v864 = vld [vmem:[%s778 + $0x8] sm:$0xff]
          %v865 = vpack.c.bf16 %v862, %v862
          %v867 = vperm.slane %v833, 0
          %v873 = vunpack.c.l.b16 %v829
          %v874 = vunpack.c.l.b16 %v830
          %v875 = vunpack.c.l.b16 %v831
          %v876 = vunpack.c.l.b16 %v832
          %v877 = vpack.c.b16 %v874, %v873
          %v878 = vpack.c.b16 %v876, %v875
          %vm881 = vcmask 261120
          %v883 = vsel %vm881, %v865, 0
          %885 = vmatpush.bf16.msra.mxu0 0
          %886 = vmatpush.bf16.msra.mxu0 0
          %887 = vmatpush.bf16.msra.mxu0 0
          %888 = vmatpush.bf16.msra.mxu0 0
          %889 = vmatpush.bf16.msra.mxu0 0
          %890 = vmatpush.bf16.msra.mxu0 0
          %891 = vmatpush.bf16.msra.mxu0 %v878
          %892 = vmatpush.bf16.msra.mxu0 %v877
          %893 = vmatmul.bf16.gmra.mxu0 %v883
          %v894 = vpop.f32.mrf.mxu0
          %v895 = vadd.f32 %v867, %v894
          %v896 = vpop.f32.mrf.mxu0
          %897 = vdwg.mxu0
          %899 = vrot.lane.b32.xlu0 %v895, 120
          %v900 = vpop.permute.xlu0 %899
          %902 = vrot.lane.b32.xlu0 %v895, 112
          %v903 = vpop.permute.xlu0 %902
          %905 = vrot.lane.b32.xlu0 %v895, 104
          %v906 = vpop.permute.xlu0 %905
          %v908 = vrot.slane %v903, 4
          %vm909 = vcmask 1047556
          %v910 = vsel %vm909, %v908, %v895
          %v911 = vrot.slane %v895, 4
          %v912 = vsel %vm909, %v903, %v911
          %v914 = vunpack.c.l.s4 1983009808
          %v915 = vunpack.c.0.s8 %v914
          %v916 = vperm.slane %v910, %v915
          %v918 = vunpack.c.l.s4 1983009808
          %v919 = vunpack.c.0.s8 %v918
          %v920 = vperm.slane %v912, %v919
          %v921 = vrot.slane %v906, 4
          %v922 = vsel %vm909, %v921, %v900
          %v923 = vrot.slane %v900, 4
          %v924 = vsel %vm909, %v906, %v923
          %v926 = vunpack.c.l.s4 1983009808
          %v927 = vunpack.c.0.s8 %v926
          %v928 = vperm.slane %v922, %v927
          %v930 = vunpack.c.l.s4 1983009808
          %v931 = vunpack.c.0.s8 %v930
          %v932 = vperm.slane %v924, %v931
          %v933 = vrot.slane %v928, 4
          %v934 = vsel %vm909, %v933, %v916
          %v935 = vrot.slane %v916, 4
          %v936 = vsel %vm909, %v928, %v935
          %v938 = vunpack.c.l.s4 1934713408
          %v939 = vunpack.c.0.s8 %v938
          %v940 = vperm.slane %v934, %v939
          %v942 = vunpack.c.l.s4 1934713408
          %v943 = vunpack.c.0.s8 %v942
          %v944 = vperm.slane %v936, %v943
          %v945 = vrot.slane %v932, 4
          %v946 = vsel %vm909, %v945, %v920
          %v947 = vrot.slane %v920, 4
          %v948 = vsel %vm909, %v932, %v947
          %v950 = vunpack.c.l.s4 1934713408
          %v951 = vunpack.c.0.s8 %v950
          %v952 = vperm.slane %v946, %v951
          %v954 = vunpack.c.l.s4 1934713408
          %v955 = vunpack.c.0.s8 %v954
          %v956 = vperm.slane %v948, %v955
          %v957 = vrot.slane %v940, 4
          %v958 = vsel %vm909, 0.0, %v957
          %v959 = vrot.slane %v944, 4
          %v960 = vsel %vm909, 0.0, %v959
          %v961 = vrot.slane %v952, 4
          %v962 = vsel %vm909, 0.0, %v961
          %v963 = vrot.slane %v956, 4
          %v964 = vsel %vm909, 0.0, %v963
          %v965 = vsel %vm909, %v959, %v940
          %v967 = vunpack.c.l.s4 1983009808
          %v968 = vunpack.c.0.s8 %v967
          %v969 = vperm.slane %v965, %v968
          %v970 = vrot.slane %v960, 4
          %v971 = vsel %vm909, %v970, %v958
          %v973 = vunpack.c.l.s4 1983009808
          %v974 = vunpack.c.0.s8 %v973
          %v975 = vperm.slane %v971, %v974
          %v976 = vsel %vm909, %v963, %v952
          %v978 = vunpack.c.l.s4 1983009808
          %v979 = vunpack.c.0.s8 %v978
          %v980 = vperm.slane %v976, %v979
          %v981 = vrot.slane %v964, 4
          %v982 = vsel %vm909, %v981, %v962
          %v984 = vunpack.c.l.s4 1983009808
          %v985 = vunpack.c.0.s8 %v984
          %v986 = vperm.slane %v982, %v985
          %v987 = vrot.slane %v975, 4
          %v988 = vsel %vm909, %v987, %v969
          %v989 = vrot.slane %v969, 4
          %v990 = vsel %vm909, %v975, %v989
          %v992 = vunpack.c.l.s4 1934713408
          %v993 = vunpack.c.0.s8 %v992
          %v994 = vperm.slane %v988, %v993
          %v996 = vunpack.c.l.s4 1934713408
          %v997 = vunpack.c.0.s8 %v996
          %v998 = vperm.slane %v990, %v997
          %v999 = vrot.slane %v986, 4
          %v1000 = vsel %vm909, %v999, %v980
          %v1001 = vrot.slane %v980, 4
          %v1002 = vsel %vm909, %v986, %v1001
          %v1004 = vunpack.c.l.s4 1934713408
          %v1005 = vunpack.c.0.s8 %v1004
          %v1006 = vperm.slane %v1000, %v1005
          %v1008 = vunpack.c.l.s4 1934713408
          %v1009 = vunpack.c.0.s8 %v1008
          %v1010 = vperm.slane %v1002, %v1009
          %v1011 = vrot.slane %v1006, 4
          %v1012 = vsel %vm909, %v1011, %v994
          %v1013 = vrot.slane %v994, 4
          %v1014 = vsel %vm909, %v1006, %v1013
          %v1015 = vrot.slane %v1010, 4
          %v1016 = vsel %vm909, %v1015, %v998
          %v1017 = vrot.slane %v998, 4
          %v1018 = vsel %vm909, %v1010, %v1017
          %v1019 = vpack.c.bf16 %v1012, %v1012
          %v1020 = vpack.c.bf16 %v1014, %v1014
          %v1021 = vpack.c.bf16 %v1016, %v1016
          %v1022 = vpack.c.bf16 %v1018, %v1018
          %1023 = vrot.lane.b32.xlu0 %v895, 96
          %v1024 = vpop.permute.xlu0 %1023
          %1025 = vrot.lane.b32.xlu0 %v900, 96
          %v1026 = vpop.permute.xlu0 %1025
          %1027 = vrot.lane.b32.xlu0 %v903, 96
          %v1028 = vpop.permute.xlu0 %1027
          %1029 = vrot.lane.b32.xlu0 %v906, 96
          %v1030 = vpop.permute.xlu0 %1029
          %v1035 = vrot.slane %v1028, 4
          %v1036 = vsel %vm909, %v1035, %v1024
          %v1037 = vrot.slane %v1024, 4
          %v1038 = vsel %vm909, %v1028, %v1037
          %v1040 = vunpack.c.l.s4 1983009808
          %v1041 = vunpack.c.0.s8 %v1040
          %v1042 = vperm.slane %v1036, %v1041
          %v1044 = vunpack.c.l.s4 1983009808
          %v1045 = vunpack.c.0.s8 %v1044
          %v1046 = vperm.slane %v1038, %v1045
          %v1047 = vrot.slane %v1030, 4
          %v1048 = vsel %vm909, %v1047, %v1026
          %v1049 = vrot.slane %v1026, 4
          %v1050 = vsel %vm909, %v1030, %v1049
          %v1052 = vunpack.c.l.s4 1983009808
          %v1053 = vunpack.c.0.s8 %v1052
          %v1054 = vperm.slane %v1048, %v1053
          %v1056 = vunpack.c.l.s4 1983009808
          %v1057 = vunpack.c.0.s8 %v1056
          %v1058 = vperm.slane %v1050, %v1057
          %v1059 = vrot.slane %v1054, 4
          %v1060 = vsel %vm909, %v1059, %v1042
          %v1061 = vrot.slane %v1042, 4
          %v1062 = vsel %vm909, %v1054, %v1061
          %v1064 = vunpack.c.l.s4 1934713408
          %v1065 = vunpack.c.0.s8 %v1064
          %v1066 = vperm.slane %v1060, %v1065
          %v1068 = vunpack.c.l.s4 1934713408
          %v1069 = vunpack.c.0.s8 %v1068
          %v1070 = vperm.slane %v1062, %v1069
          %v1071 = vrot.slane %v1058, 4
          %v1072 = vsel %vm909, %v1071, %v1046
          %v1073 = vrot.slane %v1046, 4
          %v1074 = vsel %vm909, %v1058, %v1073
          %v1076 = vunpack.c.l.s4 1934713408
          %v1077 = vunpack.c.0.s8 %v1076
          %v1078 = vperm.slane %v1072, %v1077
          %v1080 = vunpack.c.l.s4 1934713408
          %v1081 = vunpack.c.0.s8 %v1080
          %v1082 = vperm.slane %v1074, %v1081
          %v1083 = vrot.slane %v1066, 4
          %v1084 = vsel %vm909, 0.0, %v1083
          %v1085 = vrot.slane %v1070, 4
          %v1086 = vsel %vm909, 0.0, %v1085
          %v1087 = vrot.slane %v1078, 4
          %v1088 = vsel %vm909, 0.0, %v1087
          %v1089 = vrot.slane %v1082, 4
          %v1090 = vsel %vm909, 0.0, %v1089
          %v1091 = vsel %vm909, %v1085, %v1066
          %v1093 = vunpack.c.l.s4 1983009808
          %v1094 = vunpack.c.0.s8 %v1093
          %v1095 = vperm.slane %v1091, %v1094
          %v1096 = vrot.slane %v1086, 4
          %v1097 = vsel %vm909, %v1096, %v1084
          %v1099 = vunpack.c.l.s4 1983009808
          %v1100 = vunpack.c.0.s8 %v1099
          %v1101 = vperm.slane %v1097, %v1100
          %v1102 = vsel %vm909, %v1089, %v1078
          %v1104 = vunpack.c.l.s4 1983009808
          %v1105 = vunpack.c.0.s8 %v1104
          %v1106 = vperm.slane %v1102, %v1105
          %v1107 = vrot.slane %v1090, 4
          %v1108 = vsel %vm909, %v1107, %v1088
          %v1110 = vunpack.c.l.s4 1983009808
          %v1111 = vunpack.c.0.s8 %v1110
          %v1112 = vperm.slane %v1108, %v1111
          %v1113 = vrot.slane %v1101, 4
          %v1114 = vsel %vm909, %v1113, %v1095
          %v1115 = vrot.slane %v1095, 4
          %v1116 = vsel %vm909, %v1101, %v1115
          %v1118 = vunpack.c.l.s4 1934713408
          %v1119 = vunpack.c.0.s8 %v1118
          %v1120 = vperm.slane %v1114, %v1119
          %v1122 = vunpack.c.l.s4 1934713408
          %v1123 = vunpack.c.0.s8 %v1122
          %v1124 = vperm.slane %v1116, %v1123
          %v1125 = vrot.slane %v1112, 4
          %v1126 = vsel %vm909, %v1125, %v1106
          %v1127 = vrot.slane %v1106, 4
          %v1128 = vsel %vm909, %v1112, %v1127
          %v1130 = vunpack.c.l.s4 1934713408
          %v1131 = vunpack.c.0.s8 %v1130
          %v1132 = vperm.slane %v1126, %v1131
          %v1134 = vunpack.c.l.s4 1934713408
          %v1135 = vunpack.c.0.s8 %v1134
          %v1136 = vperm.slane %v1128, %v1135
          %v1137 = vrot.slane %v1132, 4
          %v1138 = vsel %vm909, %v1137, %v1120
          %v1139 = vrot.slane %v1120, 4
          %v1140 = vsel %vm909, %v1132, %v1139
          %v1141 = vrot.slane %v1136, 4
          %v1142 = vsel %vm909, %v1141, %v1124
          %v1143 = vrot.slane %v1124, 4
          %v1144 = vsel %vm909, %v1136, %v1143
          %v1145 = vpack.c.bf16 %v1138, %v1138
          %v1146 = vpack.c.bf16 %v1140, %v1140
          %v1147 = vpack.c.bf16 %v1142, %v1142
          %v1148 = vpack.c.bf16 %v1144, %v1144
          %1149 = vrot.lane.b32.xlu0 %v895, 64
          %v1150 = vpop.permute.xlu0 %1149
          %1151 = vrot.lane.b32.xlu0 %v900, 64
          %v1152 = vpop.permute.xlu0 %1151
          %1153 = vrot.lane.b32.xlu0 %v903, 64
          %v1154 = vpop.permute.xlu0 %1153
          %1155 = vrot.lane.b32.xlu0 %v906, 64
          %v1156 = vpop.permute.xlu0 %1155
          %v1161 = vrot.slane %v1154, 4
          %v1162 = vsel %vm909, %v1161, %v1150
          %v1163 = vrot.slane %v1150, 4
          %v1164 = vsel %vm909, %v1154, %v1163
          %v1166 = vunpack.c.l.s4 1983009808
          %v1167 = vunpack.c.0.s8 %v1166
          %v1168 = vperm.slane %v1162, %v1167
          %v1170 = vunpack.c.l.s4 1983009808
          %v1171 = vunpack.c.0.s8 %v1170
          %v1172 = vperm.slane %v1164, %v1171
          %v1173 = vrot.slane %v1156, 4
          %v1174 = vsel %vm909, %v1173, %v1152
          %v1175 = vrot.slane %v1152, 4
          %v1176 = vsel %vm909, %v1156, %v1175
          %v1178 = vunpack.c.l.s4 1983009808
          %v1179 = vunpack.c.0.s8 %v1178
          %v1180 = vperm.slane %v1174, %v1179
          %v1182 = vunpack.c.l.s4 1983009808
          %v1183 = vunpack.c.0.s8 %v1182
          %v1184 = vperm.slane %v1176, %v1183
          %v1185 = vrot.slane %v1180, 4
          %v1186 = vsel %vm909, %v1185, %v1168
          %v1187 = vrot.slane %v1168, 4
          %v1188 = vsel %vm909, %v1180, %v1187
          %v1190 = vunpack.c.l.s4 1934713408
          %v1191 = vunpack.c.0.s8 %v1190
          %v1192 = vperm.slane %v1186, %v1191
          %v1194 = vunpack.c.l.s4 1934713408
          %v1195 = vunpack.c.0.s8 %v1194
          %v1196 = vperm.slane %v1188, %v1195
          %v1197 = vrot.slane %v1184, 4
          %v1198 = vsel %vm909, %v1197, %v1172
          %v1199 = vrot.slane %v1172, 4
          %v1200 = vsel %vm909, %v1184, %v1199
          %v1202 = vunpack.c.l.s4 1934713408
          %v1203 = vunpack.c.0.s8 %v1202
          %v1204 = vperm.slane %v1198, %v1203
          %v1206 = vunpack.c.l.s4 1934713408
          %v1207 = vunpack.c.0.s8 %v1206
          %v1208 = vperm.slane %v1200, %v1207
          %v1209 = vrot.slane %v1192, 4
          %v1210 = vsel %vm909, 0.0, %v1209
          %v1211 = vrot.slane %v1196, 4
          %v1212 = vsel %vm909, 0.0, %v1211
          %v1213 = vrot.slane %v1204, 4
          %v1214 = vsel %vm909, 0.0, %v1213
          %v1215 = vrot.slane %v1208, 4
          %v1216 = vsel %vm909, 0.0, %v1215
          %v1217 = vsel %vm909, %v1211, %v1192
          %v1219 = vunpack.c.l.s4 1983009808
          %v1220 = vunpack.c.0.s8 %v1219
          %v1221 = vperm.slane %v1217, %v1220
          %v1222 = vrot.slane %v1212, 4
          %v1223 = vsel %vm909, %v1222, %v1210
          %v1225 = vunpack.c.l.s4 1983009808
          %v1226 = vunpack.c.0.s8 %v1225
          %v1227 = vperm.slane %v1223, %v1226
          %v1228 = vsel %vm909, %v1215, %v1204
          %v1230 = vunpack.c.l.s4 1983009808
          %v1231 = vunpack.c.0.s8 %v1230
          %v1232 = vperm.slane %v1228, %v1231
          %v1233 = vrot.slane %v1216, 4
          %v1234 = vsel %vm909, %v1233, %v1214
          %v1236 = vunpack.c.l.s4 1983009808
          %v1237 = vunpack.c.0.s8 %v1236
          %v1238 = vperm.slane %v1234, %v1237
          %v1239 = vrot.slane %v1227, 4
          %v1240 = vsel %vm909, %v1239, %v1221
          %v1241 = vrot.slane %v1221, 4
          %v1242 = vsel %vm909, %v1227, %v1241
          %v1244 = vunpack.c.l.s4 1934713408
          %v1245 = vunpack.c.0.s8 %v1244
          %v1246 = vperm.slane %v1240, %v1245
          %v1248 = vunpack.c.l.s4 1934713408
          %v1249 = vunpack.c.0.s8 %v1248
          %v1250 = vperm.slane %v1242, %v1249
          %v1251 = vrot.slane %v1238, 4
          %v1252 = vsel %vm909, %v1251, %v1232
          %v1253 = vrot.slane %v1232, 4
          %v1254 = vsel %vm909, %v1238, %v1253
          %v1256 = vunpack.c.l.s4 1934713408
          %v1257 = vunpack.c.0.s8 %v1256
          %v1258 = vperm.slane %v1252, %v1257
          %v1260 = vunpack.c.l.s4 1934713408
          %v1261 = vunpack.c.0.s8 %v1260
          %v1262 = vperm.slane %v1254, %v1261
          %v1263 = vrot.slane %v1258, 4
          %v1264 = vsel %vm909, %v1263, %v1246
          %v1265 = vrot.slane %v1246, 4
          %v1266 = vsel %vm909, %v1258, %v1265
          %v1267 = vrot.slane %v1262, 4
          %v1268 = vsel %vm909, %v1267, %v1250
          %v1269 = vrot.slane %v1250, 4
          %v1270 = vsel %vm909, %v1262, %v1269
          %v1271 = vpack.c.bf16 %v1264, %v1264
          %v1272 = vpack.c.bf16 %v1266, %v1266
          %v1273 = vpack.c.bf16 %v1268, %v1268
          %v1274 = vpack.c.bf16 %v1270, %v1270
          %vm1275 = vcmask 64512
          %v1277 = vsel %vm1275, %v1019, 0
          %v1280 = vsel %vm1275, %v1145, 0
          %1282 = vmatpush.bf16.xpose.msra.mxu0 0
          %1283 = vmatpush.bf16.xpose.msra.mxu0 0
          %1284 = vmatpush.bf16.xpose.msra.mxu0 0
          %1285 = vmatpush.bf16.xpose.msra.mxu0 0
          %1286 = vmatpush.bf16.xpose.msra.mxu0 0
          %1287 = vmatpush.bf16.xpose.msra.mxu0 0
          %1288 = vmatpush.bf16.xpose.msra.mxu0 0
          %1289 = vmatpush.bf16.xpose.msra.mxu0 %v1280
          %1290 = vmatmul.bf16.gmra.mxu0 %v1277
          %v1291 = vpop.f32.mrf.mxu0
          %v1292 = vadd.f32 0.0, %v1291
          %v1293 = vpop.f32.mrf.mxu0
          %1294 = vdwg.mxu0
          %v1296 = vsel %vm1275, %v1020, 0
          %v1299 = vsel %vm1275, %v1146, 0
          %1301 = vmatpush.bf16.xpose.msra.mxu0 0
          %1302 = vmatpush.bf16.xpose.msra.mxu0 0
          %1303 = vmatpush.bf16.xpose.msra.mxu0 0
          %1304 = vmatpush.bf16.xpose.msra.mxu0 0
          %1305 = vmatpush.bf16.xpose.msra.mxu0 0
          %1306 = vmatpush.bf16.xpose.msra.mxu0 0
          %1307 = vmatpush.bf16.xpose.msra.mxu0 0
          %1308 = vmatpush.bf16.xpose.msra.mxu0 %v1299
          %1309 = vmatmul.bf16.gmra.mxu0 %v1296
          %v1310 = vpop.f32.mrf.mxu0
          %v1311 = vadd.f32 0.0, %v1310
          %v1312 = vpop.f32.mrf.mxu0
          %1313 = vdwg.mxu0
          %v1315 = vsel %vm1275, %v1021, 0
          %v1318 = vsel %vm1275, %v1147, 0
          %1320 = vmatpush.bf16.xpose.msra.mxu0 0
          %1321 = vmatpush.bf16.xpose.msra.mxu0 0
          %1322 = vmatpush.bf16.xpose.msra.mxu0 0
          %1323 = vmatpush.bf16.xpose.msra.mxu0 0
          %1324 = vmatpush.bf16.xpose.msra.mxu0 0
          %1325 = vmatpush.bf16.xpose.msra.mxu0 0
          %1326 = vmatpush.bf16.xpose.msra.mxu0 0
          %1327 = vmatpush.bf16.xpose.msra.mxu0 %v1318
          %1328 = vmatmul.bf16.gmra.mxu0 %v1315
          %v1329 = vpop.f32.mrf.mxu0
          %v1330 = vadd.f32 0.0, %v1329
          %v1331 = vpop.f32.mrf.mxu0
          %1332 = vdwg.mxu0
          %v1334 = vsel %vm1275, %v1022, 0
          %v1337 = vsel %vm1275, %v1148, 0
          %1339 = vmatpush.bf16.xpose.msra.mxu0 0
          %1340 = vmatpush.bf16.xpose.msra.mxu0 0
          %1341 = vmatpush.bf16.xpose.msra.mxu0 0
          %1342 = vmatpush.bf16.xpose.msra.mxu0 0
          %1343 = vmatpush.bf16.xpose.msra.mxu0 0
          %1344 = vmatpush.bf16.xpose.msra.mxu0 0
          %1345 = vmatpush.bf16.xpose.msra.mxu0 0
          %1346 = vmatpush.bf16.xpose.msra.mxu0 %v1337
          %1347 = vmatmul.bf16.gmra.mxu0 %v1334
          %v1348 = vpop.f32.mrf.mxu0
          %v1349 = vadd.f32 0.0, %v1348
          %v1350 = vpop.f32.mrf.mxu0
          %1351 = vdwg.mxu0
          %v1352 = vsel %vm1275, %v1292, -inf
          %1353 = vmax.xlane.f32.xlu0 %v1352
          %v1354 = vpop.xlane.xlu0 %1353
          %v1355 = vsel %vm1275, %v1311, -inf
          %1356 = vmax.xlane.f32.xlu0 %v1355
          %v1357 = vpop.xlane.xlu0 %1356
          %v1358 = vsel %vm1275, %v1330, -inf
          %1359 = vmax.xlane.f32.xlu0 %v1358
          %v1360 = vpop.xlane.xlu0 %1359
          %v1361 = vsel %vm1275, %v1349, -inf
          %1362 = vmax.xlane.f32.xlu0 %v1361
          %v1363 = vpop.xlane.xlu0 %1362
          %v1364 = vsub.f32 -inf, %v1354
          %v1365 = vsub.f32 -inf, %v1357
          %v1366 = vsub.f32 -inf, %v1360
          %v1367 = vsub.f32 -inf, %v1363
          %v1368 = vmul.f32 %v1364, 1.442695
          %v1369 = vpow.pop %v1368
          %v1370 = vmul.f32 %v1365, 1.442695
          %v1371 = vpow.pop %v1370
          %v1372 = vmul.f32 %v1366, 1.442695
          %v1373 = vpow.pop %v1372
          %v1374 = vmul.f32 %v1367, 1.442695
          %v1375 = vpow.pop %v1374
          %v1376 = vsub.f32 %v1292, %v1354
          %v1377 = vsub.f32 %v1311, %v1357
          %v1378 = vsub.f32 %v1330, %v1360
          %v1379 = vsub.f32 %v1349, %v1363
          %v1380 = vmul.f32 %v1376, 1.442695
          %v1381 = vpow.pop %v1380
          %v1382 = vmul.f32 %v1377, 1.442695
          %v1383 = vpow.pop %v1382
          %v1384 = vmul.f32 %v1378, 1.442695
          %v1385 = vpow.pop %v1384
          %v1386 = vmul.f32 %v1379, 1.442695
          %v1387 = vpow.pop %v1386
          %v1388 = vmul.f32 %v1369, 0.0
          %v1389 = vmul.f32 %v1371, 0.0
          %v1390 = vmul.f32 %v1373, 0.0
          %v1391 = vmul.f32 %v1375, 0.0
          %v1392 = vsel %vm1275, %v1381, 0.0
          %1393 = vadd.xlane.f32.xlu0 %v1392
          %v1394 = vpop.xlane.xlu0 %1393
          %v1395 = vsel %vm1275, %v1383, 0.0
          %1396 = vadd.xlane.f32.xlu0 %v1395
          %v1397 = vpop.xlane.xlu0 %1396
          %v1398 = vsel %vm1275, %v1385, 0.0
          %1399 = vadd.xlane.f32.xlu0 %v1398
          %v1400 = vpop.xlane.xlu0 %1399
          %v1401 = vsel %vm1275, %v1387, 0.0
          %1402 = vadd.xlane.f32.xlu0 %v1401
          %v1403 = vpop.xlane.xlu0 %1402
          %v1404 = vadd.f32 %v1388, %v1394
          %v1405 = vadd.f32 %v1389, %v1397
          %v1406 = vadd.f32 %v1390, %v1400
          %v1407 = vadd.f32 %v1391, %v1403
          %v1408 = vpack.c.bf16 %v1381, %v1381
          %v1409 = vpack.c.bf16 %v1383, %v1383
          %v1410 = vpack.c.bf16 %v1385, %v1385
          %v1411 = vpack.c.bf16 %v1387, %v1387
          %v1413 = vsel %vm1275, %v1408, 0
          %vm1415 = vcmask 1043456
          %v1417 = vsel %vm1415, %v1271, 0
          %1419 = vmatpush.bf16.msra.mxu0 0
          %1420 = vmatpush.bf16.msra.mxu0 0
          %1421 = vmatpush.bf16.msra.mxu0 0
          %1422 = vmatpush.bf16.msra.mxu0 0
          %1423 = vmatpush.bf16.msra.mxu0 0
          %1424 = vmatpush.bf16.msra.mxu0 0
          %1425 = vmatpush.bf16.msra.mxu0 0
          %1426 = vmatpush.bf16.msra.mxu0 %v1417
          %1427 = vmatmul.bf16.gmra.mxu0 %v1413
          %v1428 = vpop.f32.mrf.mxu0
          %v1429 = vadd.f32 0.0, %v1428
          %v1430 = vpop.f32.mrf.mxu0
          %1431 = vdwg.mxu0
          %v1433 = vsel %vm1275, %v1409, 0
          %v1436 = vsel %vm1415, %v1272, 0
          %1438 = vmatpush.bf16.msra.mxu0 0
          %1439 = vmatpush.bf16.msra.mxu0 0
          %1440 = vmatpush.bf16.msra.mxu0 0
          %1441 = vmatpush.bf16.msra.mxu0 0
          %1442 = vmatpush.bf16.msra.mxu0 0
          %1443 = vmatpush.bf16.msra.mxu0 0
          %1444 = vmatpush.bf16.msra.mxu0 0
          %1445 = vmatpush.bf16.msra.mxu0 %v1436
          %1446 = vmatmul.bf16.gmra.mxu0 %v1433
          %v1447 = vpop.f32.mrf.mxu0
          %v1448 = vadd.f32 0.0, %v1447
          %v1449 = vpop.f32.mrf.mxu0
          %1450 = vdwg.mxu0
          %v1452 = vsel %vm1275, %v1410, 0
          %v1455 = vsel %vm1415, %v1273, 0
          %1457 = vmatpush.bf16.msra.mxu0 0
          %1458 = vmatpush.bf16.msra.mxu0 0
          %1459 = vmatpush.bf16.msra.mxu0 0
          %1460 = vmatpush.bf16.msra.mxu0 0
          %1461 = vmatpush.bf16.msra.mxu0 0
          %1462 = vmatpush.bf16.msra.mxu0 0
          %1463 = vmatpush.bf16.msra.mxu0 0
          %1464 = vmatpush.bf16.msra.mxu0 %v1455
          %1465 = vmatmul.bf16.gmra.mxu0 %v1452
          %v1466 = vpop.f32.mrf.mxu0
          %v1467 = vadd.f32 0.0, %v1466
          %v1468 = vpop.f32.mrf.mxu0
          %1469 = vdwg.mxu0
          %v1471 = vsel %vm1275, %v1411, 0
          %v1474 = vsel %vm1415, %v1274, 0
          %1476 = vmatpush.bf16.msra.mxu0 0
          %1477 = vmatpush.bf16.msra.mxu0 0
          %1478 = vmatpush.bf16.msra.mxu0 0
          %1479 = vmatpush.bf16.msra.mxu0 0
          %1480 = vmatpush.bf16.msra.mxu0 0
          %1481 = vmatpush.bf16.msra.mxu0 0
          %1482 = vmatpush.bf16.msra.mxu0 0
          %1483 = vmatpush.bf16.msra.mxu0 %v1474
          %1484 = vmatmul.bf16.gmra.mxu0 %v1471
          %v1485 = vpop.f32.mrf.mxu0
          %v1486 = vadd.f32 0.0, %v1485
          %v1487 = vpop.f32.mrf.mxu0
          %1488 = vdwg.mxu0
          %v1489 = vadd.f32 %v1388, %v1429
          %v1490 = vadd.f32 %v1389, %v1448
          %v1491 = vadd.f32 %v1390, %v1467
          %v1492 = vadd.f32 %v1391, %v1486
          %v1493 = vrcp.pop %v1404
          %v1494 = vrcp.pop %v1405
          %v1495 = vrcp.pop %v1406
          %v1496 = vrcp.pop %v1407
          %v1497 = vmul.f32 %v1489, %v1493
          %v1498 = vmul.f32 %v1490, %v1494
          %v1499 = vmul.f32 %v1491, %v1495
          %v1500 = vmul.f32 %v1492, %v1496
          %v1501 = vrot.slane %v1499, 4
          %v1502 = vsel %vm909, %v1501, %v1497
          %v1503 = vrot.slane %v1497, 4
          %v1504 = vsel %vm909, %v1499, %v1503
          %v1506 = vunpack.c.l.s4 1983009808
          %v1507 = vunpack.c.0.s8 %v1506
          %v1508 = vperm.slane %v1502, %v1507
          %v1510 = vunpack.c.l.s4 1983009808
          %v1511 = vunpack.c.0.s8 %v1510
          %v1512 = vperm.slane %v1504, %v1511
          %v1513 = vrot.slane %v1500, 4
          %v1514 = vsel %vm909, %v1513, %v1498
          %v1515 = vrot.slane %v1498, 4
          %v1516 = vsel %vm909, %v1500, %v1515
          %v1518 = vunpack.c.l.s4 1983009808
          %v1519 = vunpack.c.0.s8 %v1518
          %v1520 = vperm.slane %v1514, %v1519
          %v1522 = vunpack.c.l.s4 1983009808
          %v1523 = vunpack.c.0.s8 %v1522
          %v1524 = vperm.slane %v1516, %v1523
          %v1525 = vrot.slane %v1520, 4
          %v1526 = vsel %vm909, %v1525, %v1508
          %v1527 = vrot.slane %v1508, 4
          %v1528 = vsel %vm909, %v1520, %v1527
          %v1530 = vunpack.c.l.s4 1934713408
          %v1531 = vunpack.c.0.s8 %v1530
          %v1532 = vperm.slane %v1526, %v1531
          %v1534 = vunpack.c.l.s4 1934713408
          %v1535 = vunpack.c.0.s8 %v1534
          %v1536 = vperm.slane %v1528, %v1535
          %v1537 = vrot.slane %v1524, 4
          %v1538 = vsel %vm909, %v1537, %v1512
          %v1539 = vrot.slane %v1512, 4
          %v1540 = vsel %vm909, %v1524, %v1539
          %v1542 = vunpack.c.l.s4 1934713408
          %v1543 = vunpack.c.0.s8 %v1542
          %v1544 = vperm.slane %v1538, %v1543
          %v1546 = vunpack.c.l.s4 1934713408
          %v1547 = vunpack.c.0.s8 %v1546
          %v1548 = vperm.slane %v1540, %v1547
          %v1549 = vrot.slane %v1532, 4
          %v1550 = vsel %vm909, 0.0, %v1549
          %v1551 = vrot.slane %v1536, 4
          %v1552 = vsel %vm909, 0.0, %v1551
          %v1553 = vrot.slane %v1544, 4
          %v1554 = vsel %vm909, 0.0, %v1553
          %v1555 = vrot.slane %v1548, 4
          %v1556 = vsel %vm909, 0.0, %v1555
          %v1557 = vsel %vm909, %v1551, %v1532
          %v1559 = vunpack.c.l.s4 1983009808
          %v1560 = vunpack.c.0.s8 %v1559
          %v1561 = vperm.slane %v1557, %v1560
          %v1562 = vrot.slane %v1552, 4
          %v1563 = vsel %vm909, %v1562, %v1550
          %v1565 = vunpack.c.l.s4 1983009808
          %v1566 = vunpack.c.0.s8 %v1565
          %v1567 = vperm.slane %v1563, %v1566
          %v1568 = vsel %vm909, %v1555, %v1544
          %v1570 = vunpack.c.l.s4 1983009808
          %v1571 = vunpack.c.0.s8 %v1570
          %v1572 = vperm.slane %v1568, %v1571
          %v1573 = vrot.slane %v1556, 4
          %v1574 = vsel %vm909, %v1573, %v1554
          %v1576 = vunpack.c.l.s4 1983009808
          %v1577 = vunpack.c.0.s8 %v1576
          %v1578 = vperm.slane %v1574, %v1577
          %v1579 = vrot.slane %v1567, 4
          %v1580 = vsel %vm909, %v1579, %v1561
          %v1581 = vrot.slane %v1561, 4
          %v1582 = vsel %vm909, %v1567, %v1581
          %v1584 = vunpack.c.l.s4 1934713408
          %v1585 = vunpack.c.0.s8 %v1584
          %v1586 = vperm.slane %v1580, %v1585
          %v1588 = vunpack.c.l.s4 1934713408
          %v1589 = vunpack.c.0.s8 %v1588
          %v1590 = vperm.slane %v1582, %v1589
          %v1591 = vrot.slane %v1578, 4
          %v1592 = vsel %vm909, %v1591, %v1572
          %v1593 = vrot.slane %v1572, 4
          %v1594 = vsel %vm909, %v1578, %v1593
          %v1596 = vunpack.c.l.s4 1934713408
          %v1597 = vunpack.c.0.s8 %v1596
          %v1598 = vperm.slane %v1592, %v1597
          %v1600 = vunpack.c.l.s4 1934713408
          %v1601 = vunpack.c.0.s8 %v1600
          %v1602 = vperm.slane %v1594, %v1601
          %v1603 = vrot.slane %v1598, 4
          %v1604 = vsel %vm909, %v1603, %v1586
          %v1605 = vrot.slane %v1586, 4
          %v1606 = vsel %vm909, %v1598, %v1605
          %v1607 = vrot.slane %v1602, 4
          %v1608 = vsel %vm909, %v1607, %v1590
          %v1609 = vrot.slane %v1590, 4
          %v1610 = vsel %vm909, %v1602, %v1609
          %1612 = vrot.lane.b32.xlu0 %v1606, 8
          %v1613 = vpop.permute.xlu0 %1612
          %1616 = vrot.lane.b32.xlu0 %v1608, 16
          %v1617 = vpop.permute.xlu0 %1616
          %1620 = vrot.lane.b32.xlu0 %v1610, 24
          %v1621 = vpop.permute.xlu0 %1620
          %v1623 = vsel %vm1275, %v1604, %v1613
          %vm1624 = vcmask 130048
          %v1625 = vsel %vm1624, %v1623, %v1617
          %vm1626 = vcmask 195584
          %v1627 = vsel %vm1626, %v1625, %v1621
          %v1628 = vpack.c.bf16 %v1627, %v1627
          %v1630 = vperm.slane %v838, 0
          %v1636 = vunpack.c.l.b16 %v834
          %v1637 = vunpack.c.l.b16 %v835
          %v1638 = vunpack.c.l.b16 %v836
          %v1639 = vunpack.c.l.b16 %v837
          %v1640 = vpack.c.b16 %v1637, %v1636
          %v1641 = vpack.c.b16 %v1639, %v1638
          %v1645 = vsel %vm881, %v1628, 0
          %1647 = vmatpush.bf16.msra.mxu0 0
          %1648 = vmatpush.bf16.msra.mxu0 0
          %1649 = vmatpush.bf16.msra.mxu0 0
          %1650 = vmatpush.bf16.msra.mxu0 0
          %1651 = vmatpush.bf16.msra.mxu0 0
          %1652 = vmatpush.bf16.msra.mxu0 0
          %1653 = vmatpush.bf16.msra.mxu0 %v1641
          %1654 = vmatpush.bf16.msra.mxu0 %v1640
          %1655 = vmatmul.bf16.gmra.mxu0 %v1645
          %v1656 = vpop.f32.mrf.mxu0
          %v1657 = vadd.f32 %v1630, %v1656
          %v1658 = vpop.f32.mrf.mxu0
          %1659 = vdwg.mxu0
          %v1660 = vadd.f32 %v1657, %v862
          %v1661 = vsel %vm881, %v1660, 0.0
          %1662 = vadd.xlane.f32.xlu0 %v1661
          %v1663 = vpop.xlane.xlu0 %1662
          %v1664 = vrcp.pop 32.0
          %v1665 = vmul.f32 32.0, %v1664
          %v1666 = vsub.f32 1.0, %v1665
          %v1667 = vmul.f32 %v1664, %v1666
          %v1668 = vadd.f32 %v1664, %v1667
          %vm1669 = vweird.f32 %v1664
          %v1670 = vsel %vm1669, %v1664, %v1668
          %v1671 = vmul.f32 %v1663, %v1670
          %v1672 = vsub.f32 %v1660, %v1671
          %v1673 = vmul.f32 %v1672, %v1672
          %v1674 = vsel %vm881, %v1673, 0.0
          %1675 = vadd.xlane.f32.xlu0 %v1674
          %v1676 = vpop.xlane.xlu0 %1675
          %v1677 = vmul.f32 %v1676, %v1670
          %v1678 = vadd.f32 %v1677, 1e-05
          %v1679 = vrsqrt.pop %v1678
          %v1680 = vmul.f32 %v1679, %v1678
          %v1681 = vmul.f32 %v1680, %v1679
          %v1682 = vmul.f32 0.5, %v1681
          %v1683 = vsub.f32 1.5, %v1682
          %v1684 = vmul.f32 %v1679, %v1683
          %vm1685 = vweird.f32 %v1678
          %vm1686 = vweird.f32 %v1679
          %vm1687 = vmor %vm1685, %vm1686
          %v1688 = vsel %vm1687, %v1679, %v1684
          %v1689 = vmul.f32 %v1672, %v1688
          %v1691 = vperm.slane %v839, 0
          %v1693 = vmul.f32 %v1689, %v1691
          %v1695 = vperm.slane %v840, 0
          %v1697 = vadd.f32 %v1693, %v1695
          %v1698 = vpack.c.bf16 %v1697, %v1697
          %v1700 = vperm.slane %v845, 0
          %v1706 = vunpack.c.l.b16 %v841
          %v1707 = vunpack.c.l.b16 %v842
          %v1708 = vunpack.c.l.b16 %v843
          %v1709 = vunpack.c.l.b16 %v844
          %v1710 = vpack.c.b16 %v1707, %v1706
          %v1711 = vpack.c.b16 %v1709, %v1708
          %v1715 = vsel %vm881, %v1698, 0
          %1717 = vmatpush.bf16.msra.mxu0 0
          %1718 = vmatpush.bf16.msra.mxu0 0
          %1719 = vmatpush.bf16.msra.mxu0 0
          %1720 = vmatpush.bf16.msra.mxu0 0
          %1721 = vmatpush.bf16.msra.mxu0 0
          %1722 = vmatpush.bf16.msra.mxu0 0
          %1723 = vmatpush.bf16.msra.mxu0 %v1711
          %1724 = vmatpush.bf16.msra.mxu0 %v1710
          %1725 = vmatmul.bf16.gmra.mxu0 %v1715
          %v1726 = vpop.f32.mrf.mxu0
          %v1727 = vadd.f32 %v1700, %v1726
          %v1728 = vpop.f32.mrf.mxu0
          %1729 = vdwg.mxu0
          %v1730 = vmax.f32 %v1727, 0.0
          %v1731 = vpack.c.bf16 %v1730, %v1730
          %v1733 = vperm.slane %v854, 0
          %v1743 = vunpack.c.l.b16 %v846
          %v1744 = vunpack.c.l.b16 %v847
          %v1745 = vunpack.c.l.b16 %v848
          %v1746 = vunpack.c.l.b16 %v849
          %v1747 = vunpack.c.l.b16 %v850
          %v1748 = vunpack.c.l.b16 %v851
          %v1749 = vunpack.c.l.b16 %v852
          %v1750 = vunpack.c.l.b16 %v853
          %v1751 = vpack.c.b16 %v1744, %v1743
          %v1752 = vpack.c.b16 %v1746, %v1745
          %v1753 = vpack.c.b16 %v1748, %v1747
          %v1754 = vpack.c.b16 %v1750, %v1749
          %vm1759 = vcmask 523264
          %v1761 = vsel %vm1759, %v1731, 0
          %1763 = vmatpush.bf16.msra.mxu0 0
          %1764 = vmatpush.bf16.msra.mxu0 0
          %1765 = vmatpush.bf16.msra.mxu0 0
          %1766 = vmatpush.bf16.msra.mxu0 0
          %1767 = vmatpush.bf16.msra.mxu0 %v1754
          %1768 = vmatpush.bf16.msra.mxu0 %v1753
          %1769 = vmatpush.bf16.msra.mxu0 %v1752
          %1770 = vmatpush.bf16.msra.mxu0 %v1751
          %1771 = vmatmul.bf16.gmra.mxu0 %v1761
          %v1772 = vpop.f32.mrf.mxu0
          %v1773 = vadd.f32 %v1733, %v1772
          %v1774 = vpop.f32.mrf.mxu0
          %1775 = vdwg.mxu0
          %v1776 = vadd.f32 %v1697, %v1773
          %v1777 = vsel %vm881, %v1776, 0.0
          %1778 = vadd.xlane.f32.xlu0 %v1777
          %v1779 = vpop.xlane.xlu0 %1778
          %v1780 = vmul.f32 %v1779, %v1670
          %v1781 = vsub.f32 %v1776, %v1780
          %v1782 = vmul.f32 %v1781, %v1781
          %v1783 = vsel %vm881, %v1782, 0.0
          %1784 = vadd.xlane.f32.xlu0 %v1783
          %v1785 = vpop.xlane.xlu0 %1784
          %v1786 = vmul.f32 %v1785, %v1670
          %v1787 = vadd.f32 %v1786, 1e-05
          %v1788 = vrsqrt.pop %v1787
          %v1789 = vmul.f32 %v1788, %v1787
          %v1790 = vmul.f32 %v1789, %v1788
          %v1791 = vmul.f32 0.5, %v1790
          %v1792 = vsub.f32 1.5, %v1791
          %v1793 = vmul.f32 %v1788, %v1792
          %vm1794 = vweird.f32 %v1787
          %vm1795 = vweird.f32 %v1788
          %vm1796 = vmor %vm1794, %vm1795
          %v1797 = vsel %vm1796, %v1788, %v1793
          %v1798 = vmul.f32 %v1781, %v1797
          %v1800 = vperm.slane %v855, 0
          %v1802 = vmul.f32 %v1798, %v1800
          %v1804 = vperm.slane %v856, 0
          %v1806 = vadd.f32 %v1802, %v1804
          %1807 = vst.msk [vmem:[%s771] sm:$0xff] %vm881, %v1806
          %v1808 = vpack.c.bf16 %v864, %v863
          %v1810 = vsel %vm881, %v1808, 0
          %1812 = vmatpush.bf16.msra.mxu0 0
          %1813 = vmatpush.bf16.msra.mxu0 0
          %1814 = vmatpush.bf16.msra.mxu0 0
          %1815 = vmatpush.bf16.msra.mxu0 0
          %1816 = vmatpush.bf16.msra.mxu0 0
          %1817 = vmatpush.bf16.msra.mxu0 0
          %1818 = vmatpush.bf16.msra.mxu0 %v878
          %1819 = vmatpush.bf16.msra.mxu0 %v877
          %1820 = vmatmul.bf16.gmra.mxu0 %v1810
          %v1821 = vpop.f32.mrf.mxu0
          %v1822 = vadd.f32 %v867, %v1821
          %v1823 = vpop.f32.mrf.mxu0
          %v1824 = vadd.f32 %v867, %v1823
          %1825 = vdwg.mxu0
          %1828 = vrot.lane.b32.xlu0 %v1822, 120
          %v1829 = vpop.permute.xlu0 %1828
          %1830 = vrot.lane.b32.xlu0 %v1824, 120
          %v1831 = vpop.permute.xlu0 %1830
          %1834 = vrot.lane.b32.xlu0 %v1822, 112
          %v1835 = vpop.permute.xlu0 %1834
          %1836 = vrot.lane.b32.xlu0 %v1824, 112
          %v1837 = vpop.permute.xlu0 %1836
          %1840 = vrot.lane.b32.xlu0 %v1822, 104
          %v1841 = vpop.permute.xlu0 %1840
          %1842 = vrot.lane.b32.xlu0 %v1824, 104
          %v1843 = vpop.permute.xlu0 %1842
          %v1846 = vrot.slane %v1835, 4
          %v1847 = vsel %vm909, %v1846, %v1822
          %v1848 = vrot.slane %v1822, 4
          %v1849 = vsel %vm909, %v1835, %v1848
          %v1851 = vunpack.c.l.s4 1983009808
          %v1852 = vunpack.c.0.s8 %v1851
          %v1853 = vperm.slane %v1847, %v1852
          %v1855 = vunpack.c.l.s4 1983009808
          %v1856 = vunpack.c.0.s8 %v1855
          %v1857 = vperm.slane %v1849, %v1856
          %v1858 = vrot.slane %v1841, 4
          %v1859 = vsel %vm909, %v1858, %v1829
          %v1860 = vrot.slane %v1829, 4
          %v1861 = vsel %vm909, %v1841, %v1860
          %v1863 = vunpack.c.l.s4 1983009808
          %v1864 = vunpack.c.0.s8 %v1863
          %v1865 = vperm.slane %v1859, %v1864
          %v1867 = vunpack.c.l.s4 1983009808
          %v1868 = vunpack.c.0.s8 %v1867
          %v1869 = vperm.slane %v1861, %v1868
          %v1870 = vrot.slane %v1865, 4
          %v1871 = vsel %vm909, %v1870, %v1853
          %v1872 = vrot.slane %v1853, 4
          %v1873 = vsel %vm909, %v1865, %v1872
          %v1875 = vunpack.c.l.s4 1934713408
          %v1876 = vunpack.c.0.s8 %v1875
          %v1877 = vperm.slane %v1871, %v1876
          %v1879 = vunpack.c.l.s4 1934713408
          %v1880 = vunpack.c.0.s8 %v1879
          %v1881 = vperm.slane %v1873, %v1880
          %v1882 = vrot.slane %v1869, 4
          %v1883 = vsel %vm909, %v1882, %v1857
          %v1884 = vrot.slane %v1857, 4
          %v1885 = vsel %vm909, %v1869, %v1884
          %v1887 = vunpack.c.l.s4 1934713408
          %v1888 = vunpack.c.0.s8 %v1887
          %v1889 = vperm.slane %v1883, %v1888
          %v1891 = vunpack.c.l.s4 1934713408
          %v1892 = vunpack.c.0.s8 %v1891
          %v1893 = vperm.slane %v1885, %v1892
          %v1894 = vrot.slane %v1877, 4
          %v1895 = vsel %vm909, 0.0, %v1894
          %v1896 = vrot.slane %v1881, 4
          %v1897 = vsel %vm909, 0.0, %v1896
          %v1898 = vrot.slane %v1889, 4
          %v1899 = vsel %vm909, 0.0, %v1898
          %v1900 = vrot.slane %v1893, 4
          %v1901 = vsel %vm909, 0.0, %v1900
          %v1902 = vrot.slane %v1837, 4
          %v1903 = vsel %vm909, %v1902, %v1824
          %v1904 = vrot.slane %v1824, 4
          %v1905 = vsel %vm909, %v1837, %v1904
          %v1907 = vunpack.c.l.s4 1983009808
          %v1908 = vunpack.c.0.s8 %v1907
          %v1909 = vperm.slane %v1903, %v1908
          %v1911 = vunpack.c.l.s4 1983009808
          %v1912 = vunpack.c.0.s8 %v1911
          %v1913 = vperm.slane %v1905, %v1912
          %v1914 = vrot.slane %v1843, 4
          %v1915 = vsel %vm909, %v1914, %v1831
          %v1916 = vrot.slane %v1831, 4
          %v1917 = vsel %vm909, %v1843, %v1916
          %v1919 = vunpack.c.l.s4 1983009808
          %v1920 = vunpack.c.0.s8 %v1919
          %v1921 = vperm.slane %v1915, %v1920
          %v1923 = vunpack.c.l.s4 1983009808
          %v1924 = vunpack.c.0.s8 %v1923
          %v1925 = vperm.slane %v1917, %v1924
          %v1926 = vrot.slane %v1921, 4
          %v1927 = vsel %vm909, %v1926, %v1909
          %v1928 = vrot.slane %v1909, 4
          %v1929 = vsel %vm909, %v1921, %v1928
          %v1931 = vunpack.c.l.s4 1934713408
          %v1932 = vunpack.c.0.s8 %v1931
          %v1933 = vperm.slane %v1927, %v1932
          %v1935 = vunpack.c.l.s4 1934713408
          %v1936 = vunpack.c.0.s8 %v1935
          %v1937 = vperm.slane %v1929, %v1936
          %v1938 = vrot.slane %v1925, 4
          %v1939 = vsel %vm909, %v1938, %v1913
          %v1940 = vrot.slane %v1913, 4
          %v1941 = vsel %vm909, %v1925, %v1940
          %v1943 = vunpack.c.l.s4 1934713408
          %v1944 = vunpack.c.0.s8 %v1943
          %v1945 = vperm.slane %v1939, %v1944
          %v1947 = vunpack.c.l.s4 1934713408
          %v1948 = vunpack.c.0.s8 %v1947
          %v1949 = vperm.slane %v1941, %v1948
          %v1950 = vrot.slane %v1933, 4
          %v1951 = vsel %vm909, 0.0, %v1950
          %v1952 = vrot.slane %v1937, 4
          %v1953 = vsel %vm909, 0.0, %v1952
          %v1954 = vrot.slane %v1945, 4
          %v1955 = vsel %vm909, 0.0, %v1954
          %v1956 = vrot.slane %v1949, 4
          %v1957 = vsel %vm909, 0.0, %v1956
          %v1958 = vsel %vm909, %v1896, %v1877
          %v1960 = vunpack.c.l.s4 1983009808
          %v1961 = vunpack.c.0.s8 %v1960
          %v1962 = vperm.slane %v1958, %v1961
          %v1963 = vrot.slane %v1897, 4
          %v1964 = vsel %vm909, %v1963, %v1895
          %v1966 = vunpack.c.l.s4 1983009808
          %v1967 = vunpack.c.0.s8 %v1966
          %v1968 = vperm.slane %v1964, %v1967
          %v1969 = vsel %vm909, %v1900, %v1889
          %v1971 = vunpack.c.l.s4 1983009808
          %v1972 = vunpack.c.0.s8 %v1971
          %v1973 = vperm.slane %v1969, %v1972
          %v1974 = vrot.slane %v1901, 4
          %v1975 = vsel %vm909, %v1974, %v1899
          %v1977 = vunpack.c.l.s4 1983009808
          %v1978 = vunpack.c.0.s8 %v1977
          %v1979 = vperm.slane %v1975, %v1978
          %v1980 = vrot.slane %v1968, 4
          %v1981 = vsel %vm909, %v1980, %v1962
          %v1982 = vrot.slane %v1962, 4
          %v1983 = vsel %vm909, %v1968, %v1982
          %v1985 = vunpack.c.l.s4 1934713408
          %v1986 = vunpack.c.0.s8 %v1985
          %v1987 = vperm.slane %v1981, %v1986
          %v1989 = vunpack.c.l.s4 1934713408
          %v1990 = vunpack.c.0.s8 %v1989
          %v1991 = vperm.slane %v1983, %v1990
          %v1992 = vrot.slane %v1979, 4
          %v1993 = vsel %vm909, %v1992, %v1973
          %v1994 = vrot.slane %v1973, 4
          %v1995 = vsel %vm909, %v1979, %v1994
          %v1997 = vunpack.c.l.s4 1934713408
          %v1998 = vunpack.c.0.s8 %v1997
          %v1999 = vperm.slane %v1993, %v1998
          %v2001 = vunpack.c.l.s4 1934713408
          %v2002 = vunpack.c.0.s8 %v2001
          %v2003 = vperm.slane %v1995, %v2002
          %v2004 = vrot.slane %v1999, 4
          %v2005 = vsel %vm909, %v2004, %v1987
          %v2006 = vrot.slane %v1987, 4
          %v2007 = vsel %vm909, %v1999, %v2006
          %v2008 = vrot.slane %v2003, 4
          %v2009 = vsel %vm909, %v2008, %v1991
          %v2010 = vrot.slane %v1991, 4
          %v2011 = vsel %vm909, %v2003, %v2010
          %v2012 = vsel %vm909, %v1952, %v1933
          %v2014 = vunpack.c.l.s4 1983009808
          %v2015 = vunpack.c.0.s8 %v2014
          %v2016 = vperm.slane %v2012, %v2015
          %v2017 = vrot.slane %v1953, 4
          %v2018 = vsel %vm909, %v2017, %v1951
          %v2020 = vunpack.c.l.s4 1983009808
          %v2021 = vunpack.c.0.s8 %v2020
          %v2022 = vperm.slane %v2018, %v2021
          %v2023 = vsel %vm909, %v1956, %v1945
          %v2025 = vunpack.c.l.s4 1983009808
          %v2026 = vunpack.c.0.s8 %v2025
          %v2027 = vperm.slane %v2023, %v2026
          %v2028 = vrot.slane %v1957, 4
          %v2029 = vsel %vm909, %v2028, %v1955
          %v2031 = vunpack.c.l.s4 1983009808
          %v2032 = vunpack.c.0.s8 %v2031
          %v2033 = vperm.slane %v2029, %v2032
          %v2034 = vrot.slane %v2022, 4
          %v2035 = vsel %vm909, %v2034, %v2016
          %v2036 = vrot.slane %v2016, 4
          %v2037 = vsel %vm909, %v2022, %v2036
          %v2039 = vunpack.c.l.s4 1934713408
          %v2040 = vunpack.c.0.s8 %v2039
          %v2041 = vperm.slane %v2035, %v2040
          %v2043 = vunpack.c.l.s4 1934713408
          %v2044 = vunpack.c.0.s8 %v2043
          %v2045 = vperm.slane %v2037, %v2044
          %v2046 = vrot.slane %v2033, 4
          %v2047 = vsel %vm909, %v2046, %v2027
          %v2048 = vrot.slane %v2027, 4
          %v2049 = vsel %vm909, %v2033, %v2048
          %v2051 = vunpack.c.l.s4 1934713408
          %v2052 = vunpack.c.0.s8 %v2051
          %v2053 = vperm.slane %v2047, %v2052
          %v2055 = vunpack.c.l.s4 1934713408
          %v2056 = vunpack.c.0.s8 %v2055
          %v2057 = vperm.slane %v2049, %v2056
          %v2058 = vrot.slane %v2053, 4
          %v2059 = vsel %vm909, %v2058, %v2041
          %v2060 = vrot.slane %v2041, 4
          %v2061 = vsel %vm909, %v2053, %v2060
          %v2062 = vrot.slane %v2057, 4
          %v2063 = vsel %vm909, %v2062, %v2045
          %v2064 = vrot.slane %v2045, 4
          %v2065 = vsel %vm909, %v2057, %v2064
          %v2066 = vpack.c.bf16 %v2005, %v2005
          %v2067 = vpack.c.bf16 %v2059, %v2059
          %v2068 = vpack.c.bf16 %v2007, %v2007
          %v2069 = vpack.c.bf16 %v2061, %v2061
          %v2070 = vpack.c.bf16 %v2009, %v2009
          %v2071 = vpack.c.bf16 %v2063, %v2063
          %v2072 = vpack.c.bf16 %v2011, %v2011
          %v2073 = vpack.c.bf16 %v2065, %v2065
          %2074 = vrot.lane.b32.xlu0 %v1822, 96
          %v2075 = vpop.permute.xlu0 %2074
          %2076 = vrot.lane.b32.xlu0 %v1824, 96
          %v2077 = vpop.permute.xlu0 %2076
          %2078 = vrot.lane.b32.xlu0 %v1829, 96
          %v2079 = vpop.permute.xlu0 %2078
          %2080 = vrot.lane.b32.xlu0 %v1831, 96
          %v2081 = vpop.permute.xlu0 %2080
          %2082 = vrot.lane.b32.xlu0 %v1835, 96
          %v2083 = vpop.permute.xlu0 %2082
          %2084 = vrot.lane.b32.xlu0 %v1837, 96
          %v2085 = vpop.permute.xlu0 %2084
          %2086 = vrot.lane.b32.xlu0 %v1841, 96
          %v2087 = vpop.permute.xlu0 %2086
          %2088 = vrot.lane.b32.xlu0 %v1843, 96
          %v2089 = vpop.permute.xlu0 %2088
          %v2098 = vrot.slane %v2083, 4
          %v2099 = vsel %vm909, %v2098, %v2075
          %v2100 = vrot.slane %v2075, 4
          %v2101 = vsel %vm909, %v2083, %v2100
          %v2103 = vunpack.c.l.s4 1983009808
          %v2104 = vunpack.c.0.s8 %v2103
          %v2105 = vperm.slane %v2099, %v2104
          %v2107 = vunpack.c.l.s4 1983009808
          %v2108 = vunpack.c.0.s8 %v2107
          %v2109 = vperm.slane %v2101, %v2108
          %v2110 = vrot.slane %v2087, 4
          %v2111 = vsel %vm909, %v2110, %v2079
          %v2112 = vrot.slane %v2079, 4
          %v2113 = vsel %vm909, %v2087, %v2112
          %v2115 = vunpack.c.l.s4 1983009808
          %v2116 = vunpack.c.0.s8 %v2115
          %v2117 = vperm.slane %v2111, %v2116
          %v2119 = vunpack.c.l.s4 1983009808
          %v2120 = vunpack.c.0.s8 %v2119
          %v2121 = vperm.slane %v2113, %v2120
          %v2122 = vrot.slane %v2117, 4
          %v2123 = vsel %vm909, %v2122, %v2105
          %v2124 = vrot.slane %v2105, 4
          %v2125 = vsel %vm909, %v2117, %v2124
          %v2127 = vunpack.c.l.s4 1934713408
          %v2128 = vunpack.c.0.s8 %v2127
          %v2129 = vperm.slane %v2123, %v2128
          %v2131 = vunpack.c.l.s4 1934713408
          %v2132 = vunpack.c.0.s8 %v2131
          %v2133 = vperm.slane %v2125, %v2132
          %v2134 = vrot.slane %v2121, 4
          %v2135 = vsel %vm909, %v2134, %v2109
          %v2136 = vrot.slane %v2109, 4
          %v2137 = vsel %vm909, %v2121, %v2136
          %v2139 = vunpack.c.l.s4 1934713408
          %v2140 = vunpack.c.0.s8 %v2139
          %v2141 = vperm.slane %v2135, %v2140
          %v2143 = vunpack.c.l.s4 1934713408
          %v2144 = vunpack.c.0.s8 %v2143
          %v2145 = vperm.slane %v2137, %v2144
          %v2146 = vrot.slane %v2129, 4
          %v2147 = vsel %vm909, 0.0, %v2146
          %v2148 = vrot.slane %v2133, 4
          %v2149 = vsel %vm909, 0.0, %v2148
          %v2150 = vrot.slane %v2141, 4
          %v2151 = vsel %vm909, 0.0, %v2150
          %v2152 = vrot.slane %v2145, 4
          %v2153 = vsel %vm909, 0.0, %v2152
          %v2154 = vrot.slane %v2085, 4
          %v2155 = vsel %vm909, %v2154, %v2077
          %v2156 = vrot.slane %v2077, 4
          %v2157 = vsel %vm909, %v2085, %v2156
          %v2159 = vunpack.c.l.s4 1983009808
          %v2160 = vunpack.c.0.s8 %v2159
          %v2161 = vperm.slane %v2155, %v2160
          %v2163 = vunpack.c.l.s4 1983009808
          %v2164 = vunpack.c.0.s8 %v2163
          %v2165 = vperm.slane %v2157, %v2164
          %v2166 = vrot.slane %v2089, 4
          %v2167 = vsel %vm909, %v2166, %v2081
          %v2168 = vrot.slane %v2081, 4
          %v2169 = vsel %vm909, %v2089, %v2168
          %v2171 = vunpack.c.l.s4 1983009808
          %v2172 = vunpack.c.0.s8 %v2171
          %v2173 = vperm.slane %v2167, %v2172
          %v2175 = vunpack.c.l.s4 1983009808
          %v2176 = vunpack.c.0.s8 %v2175
          %v2177 = vperm.slane %v2169, %v2176
          %v2178 = vrot.slane %v2173, 4
          %v2179 = vsel %vm909, %v2178, %v2161
          %v2180 = vrot.slane %v2161, 4
          %v2181 = vsel %vm909, %v2173, %v2180
          %v2183 = vunpack.c.l.s4 1934713408
          %v2184 = vunpack.c.0.s8 %v2183
          %v2185 = vperm.slane %v2179, %v2184
          %v2187 = vunpack.c.l.s4 1934713408
          %v2188 = vunpack.c.0.s8 %v2187
          %v2189 = vperm.slane %v2181, %v2188
          %v2190 = vrot.slane %v2177, 4
          %v2191 = vsel %vm909, %v2190, %v2165
          %v2192 = vrot.slane %v2165, 4
          %v2193 = vsel %vm909, %v2177, %v2192
          %v2195 = vunpack.c.l.s4 1934713408
          %v2196 = vunpack.c.0.s8 %v2195
          %v2197 = vperm.slane %v2191, %v2196
          %v2199 = vunpack.c.l.s4 1934713408
          %v2200 = vunpack.c.0.s8 %v2199
          %v2201 = vperm.slane %v2193, %v2200
          %v2202 = vrot.slane %v2185, 4
          %v2203 = vsel %vm909, 0.0, %v2202
          %v2204 = vrot.slane %v2189, 4
          %v2205 = vsel %vm909, 0.0, %v2204
          %v2206 = vrot.slane %v2197, 4
          %v2207 = vsel %vm909, 0.0, %v2206
          %v2208 = vrot.slane %v2201, 4
          %v2209 = vsel %vm909, 0.0, %v2208
          %v2210 = vsel %vm909, %v2148, %v2129
          %v2212 = vunpack.c.l.s4 1983009808
          %v2213 = vunpack.c.0.s8 %v2212
          %v2214 = vperm.slane %v2210, %v2213
          %v2215 = vrot.slane %v2149, 4
          %v2216 = vsel %vm909, %v2215, %v2147
          %v2218 = vunpack.c.l.s4 1983009808
          %v2219 = vunpack.c.0.s8 %v2218
          %v2220 = vperm.slane %v2216, %v2219
          %v2221 = vsel %vm909, %v2152, %v2141
          %v2223 = vunpack.c.l.s4 1983009808
          %v2224 = vunpack.c.0.s8 %v2223
          %v2225 = vperm.slane %v2221, %v2224
          %v2226 = vrot.slane %v2153, 4
          %v2227 = vsel %vm909, %v2226, %v2151
          %v2229 = vunpack.c.l.s4 1983009808
          %v2230 = vunpack.c.0.s8 %v2229
          %v2231 = vperm.slane %v2227, %v2230
          %v2232 = vrot.slane %v2220, 4
          %v2233 = vsel %vm909, %v2232, %v2214
          %v2234 = vrot.slane %v2214, 4
          %v2235 = vsel %vm909, %v2220, %v2234
          %v2237 = vunpack.c.l.s4 1934713408
          %v2238 = vunpack.c.0.s8 %v2237
          %v2239 = vperm.slane %v2233, %v2238
          %v2241 = vunpack.c.l.s4 1934713408
          %v2242 = vunpack.c.0.s8 %v2241
          %v2243 = vperm.slane %v2235, %v2242
          %v2244 = vrot.slane %v2231, 4
          %v2245 = vsel %vm909, %v2244, %v2225
          %v2246 = vrot.slane %v2225, 4
          %v2247 = vsel %vm909, %v2231, %v2246
          %v2249 = vunpack.c.l.s4 1934713408
          %v2250 = vunpack.c.0.s8 %v2249
          %v2251 = vperm.slane %v2245, %v2250
          %v2253 = vunpack.c.l.s4 1934713408
          %v2254 = vunpack.c.0.s8 %v2253
          %v2255 = vperm.slane %v2247, %v2254
          %v2256 = vrot.slane %v2251, 4
          %v2257 = vsel %vm909, %v2256, %v2239
          %v2258 = vrot.slane %v2239, 4
          %v2259 = vsel %vm909, %v2251, %v2258
          %v2260 = vrot.slane %v2255, 4
          %v2261 = vsel %vm909, %v2260, %v2243
          %v2262 = vrot.slane %v2243, 4
          %v2263 = vsel %vm909, %v2255, %v2262
          %v2264 = vsel %vm909, %v2204, %v2185
          %v2266 = vunpack.c.l.s4 1983009808
          %v2267 = vunpack.c.0.s8 %v2266
          %v2268 = vperm.slane %v2264, %v2267
          %v2269 = vrot.slane %v2205, 4
          %v2270 = vsel %vm909, %v2269, %v2203
          %v2272 = vunpack.c.l.s4 1983009808
          %v2273 = vunpack.c.0.s8 %v2272
          %v2274 = vperm.slane %v2270, %v2273
          %v2275 = vsel %vm909, %v2208, %v2197
          %v2277 = vunpack.c.l.s4 1983009808
          %v2278 = vunpack.c.0.s8 %v2277
          %v2279 = vperm.slane %v2275, %v2278
          %v2280 = vrot.slane %v2209, 4
          %v2281 = vsel %vm909, %v2280, %v2207
          %v2283 = vunpack.c.l.s4 1983009808
          %v2284 = vunpack.c.0.s8 %v2283
          %v2285 = vperm.slane %v2281, %v2284
          %v2286 = vrot.slane %v2274, 4
          %v2287 = vsel %vm909, %v2286, %v2268
          %v2288 = vrot.slane %v2268, 4
          %v2289 = vsel %vm909, %v2274, %v2288
          %v2291 = vunpack.c.l.s4 1934713408
          %v2292 = vunpack.c.0.s8 %v2291
          %v2293 = vperm.slane %v2287, %v2292
          %v2295 = vunpack.c.l.s4 1934713408
          %v2296 = vunpack.c.0.s8 %v2295
          %v2297 = vperm.slane %v2289, %v2296
          %v2298 = vrot.slane %v2285, 4
          %v2299 = vsel %vm909, %v2298, %v2279
          %v2300 = vrot.slane %v2279, 4
          %v2301 = vsel %vm909, %v2285, %v2300
          %v2303 = vunpack.c.l.s4 1934713408
          %v2304 = vunpack.c.0.s8 %v2303
          %v2305 = vperm.slane %v2299, %v2304
          %v2307 = vunpack.c.l.s4 1934713408
          %v2308 = vunpack.c.0.s8 %v2307
          %v2309 = vperm.slane %v2301, %v2308
          %v2310 = vrot.slane %v2305, 4
          %v2311 = vsel %vm909, %v2310, %v2293
          %v2312 = vrot.slane %v2293, 4
          %v2313 = vsel %vm909, %v2305, %v2312
          %v2314 = vrot.slane %v2309, 4
          %v2315 = vsel %vm909, %v2314, %v2297
          %v2316 = vrot.slane %v2297, 4
          %v2317 = vsel %vm909, %v2309, %v2316
          %v2318 = vpack.c.bf16 %v2257, %v2257
          %v2319 = vpack.c.bf16 %v2311, %v2311
          %v2320 = vpack.c.bf16 %v2259, %v2259
          %v2321 = vpack.c.bf16 %v2313, %v2313
          %v2322 = vpack.c.bf16 %v2261, %v2261
          %v2323 = vpack.c.bf16 %v2315, %v2315
          %v2324 = vpack.c.bf16 %v2263, %v2263
          %v2325 = vpack.c.bf16 %v2317, %v2317
          %2326 = vrot.lane.b32.xlu0 %v1822, 64
          %v2327 = vpop.permute.xlu0 %2326
          %2328 = vrot.lane.b32.xlu0 %v1824, 64
          %v2329 = vpop.permute.xlu0 %2328
          %2330 = vrot.lane.b32.xlu0 %v1829, 64
          %v2331 = vpop.permute.xlu0 %2330
          %2332 = vrot.lane.b32.xlu0 %v1831, 64
          %v2333 = vpop.permute.xlu0 %2332
          %2334 = vrot.lane.b32.xlu0 %v1835, 64
          %v2335 = vpop.permute.xlu0 %2334
          %2336 = vrot.lane.b32.xlu0 %v1837, 64
          %v2337 = vpop.permute.xlu0 %2336
          %2338 = vrot.lane.b32.xlu0 %v1841, 64
          %v2339 = vpop.permute.xlu0 %2338
          %2340 = vrot.lane.b32.xlu0 %v1843, 64
          %v2341 = vpop.permute.xlu0 %2340
          %v2350 = vrot.slane %v2335, 4
          %v2351 = vsel %vm909, %v2350, %v2327
          %v2352 = vrot.slane %v2327, 4
          %v2353 = vsel %vm909, %v2335, %v2352
          %v2355 = vunpack.c.l.s4 1983009808
          %v2356 = vunpack.c.0.s8 %v2355
          %v2357 = vperm.slane %v2351, %v2356
          %v2359 = vunpack.c.l.s4 1983009808
          %v2360 = vunpack.c.0.s8 %v2359
          %v2361 = vperm.slane %v2353, %v2360
          %v2362 = vrot.slane %v2339, 4
          %v2363 = vsel %vm909, %v2362, %v2331
          %v2364 = vrot.slane %v2331, 4
          %v2365 = vsel %vm909, %v2339, %v2364
          %v2367 = vunpack.c.l.s4 1983009808
          %v2368 = vunpack.c.0.s8 %v2367
          %v2369 = vperm.slane %v2363, %v2368
          %v2371 = vunpack.c.l.s4 1983009808
          %v2372 = vunpack.c.0.s8 %v2371
          %v2373 = vperm.slane %v2365, %v2372
          %v2374 = vrot.slane %v2369, 4
          %v2375 = vsel %vm909, %v2374, %v2357
          %v2376 = vrot.slane %v2357, 4
          %v2377 = vsel %vm909, %v2369, %v2376
          %v2379 = vunpack.c.l.s4 1934713408
          %v2380 = vunpack.c.0.s8 %v2379
          %v2381 = vperm.slane %v2375, %v2380
          %v2383 = vunpack.c.l.s4 1934713408
          %v2384 = vunpack.c.0.s8 %v2383
          %v2385 = vperm.slane %v2377, %v2384
          %v2386 = vrot.slane %v2373, 4
          %v2387 = vsel %vm909, %v2386, %v2361
          %v2388 = vrot.slane %v2361, 4
          %v2389 = vsel %vm909, %v2373, %v2388
          %v2391 = vunpack.c.l.s4 1934713408
          %v2392 = vunpack.c.0.s8 %v2391
          %v2393 = vperm.slane %v2387, %v2392
          %v2395 = vunpack.c.l.s4 1934713408
          %v2396 = vunpack.c.0.s8 %v2395
          %v2397 = vperm.slane %v2389, %v2396
          %v2398 = vrot.slane %v2381, 4
          %v2399 = vsel %vm909, 0.0, %v2398
          %v2400 = vrot.slane %v2385, 4
          %v2401 = vsel %vm909, 0.0, %v2400
          %v2402 = vrot.slane %v2393, 4
          %v2403 = vsel %vm909, 0.0, %v2402
          %v2404 = vrot.slane %v2397, 4
          %v2405 = vsel %vm909, 0.0, %v2404
          %v2406 = vrot.slane %v2337, 4
          %v2407 = vsel %vm909, %v2406, %v2329
          %v2408 = vrot.slane %v2329, 4
          %v2409 = vsel %vm909, %v2337, %v2408
          %v2411 = vunpack.c.l.s4 1983009808
          %v2412 = vunpack.c.0.s8 %v2411
          %v2413 = vperm.slane %v2407, %v2412
          %v2415 = vunpack.c.l.s4 1983009808
          %v2416 = vunpack.c.0.s8 %v2415
          %v2417 = vperm.slane %v2409, %v2416
          %v2418 = vrot.slane %v2341, 4
          %v2419 = vsel %vm909, %v2418, %v2333
          %v2420 = vrot.slane %v2333, 4
          %v2421 = vsel %vm909, %v2341, %v2420
          %v2423 = vunpack.c.l.s4 1983009808
          %v2424 = vunpack.c.0.s8 %v2423
          %v2425 = vperm.slane %v2419, %v2424
          %v2427 = vunpack.c.l.s4 1983009808
          %v2428 = vunpack.c.0.s8 %v2427
          %v2429 = vperm.slane %v2421, %v2428
          %v2430 = vrot.slane %v2425, 4
          %v2431 = vsel %vm909, %v2430, %v2413
          %v2432 = vrot.slane %v2413, 4
          %v2433 = vsel %vm909, %v2425, %v2432
          %v2435 = vunpack.c.l.s4 1934713408
          %v2436 = vunpack.c.0.s8 %v2435
          %v2437 = vperm.slane %v2431, %v2436
          %v2439 = vunpack.c.l.s4 1934713408
          %v2440 = vunpack.c.0.s8 %v2439
          %v2441 = vperm.slane %v2433, %v2440
          %v2442 = vrot.slane %v2429, 4
          %v2443 = vsel %vm909, %v2442, %v2417
          %v2444 = vrot.slane %v2417, 4
          %v2445 = vsel %vm909, %v2429, %v2444
          %v2447 = vunpack.c.l.s4 1934713408
          %v2448 = vunpack.c.0.s8 %v2447
          %v2449 = vperm.slane %v2443, %v2448
          %v2451 = vunpack.c.l.s4 1934713408
          %v2452 = vunpack.c.0.s8 %v2451
          %v2453 = vperm.slane %v2445, %v2452
          %v2454 = vrot.slane %v2437, 4
          %v2455 = vsel %vm909, 0.0, %v2454
          %v2456 = vrot.slane %v2441, 4
          %v2457 = vsel %vm909, 0.0, %v2456
          %v2458 = vrot.slane %v2449, 4
          %v2459 = vsel %vm909, 0.0, %v2458
          %v2460 = vrot.slane %v2453, 4
          %v2461 = vsel %vm909, 0.0, %v2460
          %v2462 = vsel %vm909, %v2400, %v2381
          %v2464 = vunpack.c.l.s4 1983009808
          %v2465 = vunpack.c.0.s8 %v2464
          %v2466 = vperm.slane %v2462, %v2465
          %v2467 = vrot.slane %v2401, 4
          %v2468 = vsel %vm909, %v2467, %v2399
          %v2470 = vunpack.c.l.s4 1983009808
          %v2471 = vunpack.c.0.s8 %v2470
          %v2472 = vperm.slane %v2468, %v2471
          %v2473 = vsel %vm909, %v2404, %v2393
          %v2475 = vunpack.c.l.s4 1983009808
          %v2476 = vunpack.c.0.s8 %v2475
          %v2477 = vperm.slane %v2473, %v2476
          %v2478 = vrot.slane %v2405, 4
          %v2479 = vsel %vm909, %v2478, %v2403
          %v2481 = vunpack.c.l.s4 1983009808
          %v2482 = vunpack.c.0.s8 %v2481
          %v2483 = vperm.slane %v2479, %v2482
          %v2484 = vrot.slane %v2472, 4
          %v2485 = vsel %vm909, %v2484, %v2466
          %v2486 = vrot.slane %v2466, 4
          %v2487 = vsel %vm909, %v2472, %v2486
          %v2489 = vunpack.c.l.s4 1934713408
          %v2490 = vunpack.c.0.s8 %v2489
          %v2491 = vperm.slane %v2485, %v2490
          %v2493 = vunpack.c.l.s4 1934713408
          %v2494 = vunpack.c.0.s8 %v2493
          %v2495 = vperm.slane %v2487, %v2494
          %v2496 = vrot.slane %v2483, 4
          %v2497 = vsel %vm909, %v2496, %v2477
          %v2498 = vrot.slane %v2477, 4
          %v2499 = vsel %vm909, %v2483, %v2498
          %v2501 = vunpack.c.l.s4 1934713408
          %v2502 = vunpack.c.0.s8 %v2501
          %v2503 = vperm.slane %v2497, %v2502
          %v2505 = vunpack.c.l.s4 1934713408
          %v2506 = vunpack.c.0.s8 %v2505
          %v2507 = vperm.slane %v2499, %v2506
          %v2508 = vrot.slane %v2503, 4
          %v2509 = vsel %vm909, %v2508, %v2491
          %v2510 = vrot.slane %v2491, 4
          %v2511 = vsel %vm909, %v2503, %v2510
          %v2512 = vrot.slane %v2507, 4
          %v2513 = vsel %vm909, %v2512, %v2495
          %v2514 = vrot.slane %v2495, 4
          %v2515 = vsel %vm909, %v2507, %v2514
          %v2516 = vsel %vm909, %v2456, %v2437
          %v2518 = vunpack.c.l.s4 1983009808
          %v2519 = vunpack.c.0.s8 %v2518
          %v2520 = vperm.slane %v2516, %v2519
          %v2521 = vrot.slane %v2457, 4
          %v2522 = vsel %vm909, %v2521, %v2455
          %v2524 = vunpack.c.l.s4 1983009808
          %v2525 = vunpack.c.0.s8 %v2524
          %v2526 = vperm.slane %v2522, %v2525
          %v2527 = vsel %vm909, %v2460, %v2449
          %v2529 = vunpack.c.l.s4 1983009808
          %v2530 = vunpack.c.0.s8 %v2529
          %v2531 = vperm.slane %v2527, %v2530
          %v2532 = vrot.slane %v2461, 4
          %v2533 = vsel %vm909, %v2532, %v2459
          %v2535 = vunpack.c.l.s4 1983009808
          %v2536 = vunpack.c.0.s8 %v2535
          %v2537 = vperm.slane %v2533, %v2536
          %v2538 = vrot.slane %v2526, 4
          %v2539 = vsel %vm909, %v2538, %v2520
          %v2540 = vrot.slane %v2520, 4
          %v2541 = vsel %vm909, %v2526, %v2540
          %v2543 = vunpack.c.l.s4 1934713408
          %v2544 = vunpack.c.0.s8 %v2543
          %v2545 = vperm.slane %v2539, %v2544
          %v2547 = vunpack.c.l.s4 1934713408
          %v2548 = vunpack.c.0.s8 %v2547
          %v2549 = vperm.slane %v2541, %v2548
          %v2550 = vrot.slane %v2537, 4
          %v2551 = vsel %vm909, %v2550, %v2531
          %v2552 = vrot.slane %v2531, 4
          %v2553 = vsel %vm909, %v2537, %v2552
          %v2555 = vunpack.c.l.s4 1934713408
          %v2556 = vunpack.c.0.s8 %v2555
          %v2557 = vperm.slane %v2551, %v2556
          %v2559 = vunpack.c.l.s4 1934713408
          %v2560 = vunpack.c.0.s8 %v2559
          %v2561 = vperm.slane %v2553, %v2560
          %v2562 = vrot.slane %v2557, 4
          %v2563 = vsel %vm909, %v2562, %v2545
          %v2564 = vrot.slane %v2545, 4
          %v2565 = vsel %vm909, %v2557, %v2564
          %v2566 = vrot.slane %v2561, 4
          %v2567 = vsel %vm909, %v2566, %v2549
          %v2568 = vrot.slane %v2549, 4
          %v2569 = vsel %vm909, %v2561, %v2568
          %v2570 = vpack.c.bf16 %v2509, %v2509
          %v2571 = vpack.c.bf16 %v2563, %v2563
          %v2572 = vpack.c.bf16 %v2511, %v2511
          %v2573 = vpack.c.bf16 %v2565, %v2565
          %v2574 = vpack.c.bf16 %v2513, %v2513
          %v2575 = vpack.c.bf16 %v2567, %v2567
          %v2576 = vpack.c.bf16 %v2515, %v2515
          %v2577 = vpack.c.bf16 %v2569, %v2569
          %v2580 = vunpack.c.l.b16 %v2066
          %v2581 = vunpack.c.l.b16 %v2067
          %v2582 = vpack.c.b16 %v2581, %v2580
          %v2585 = vunpack.c.l.b16 %v2318
          %v2586 = vunpack.c.l.b16 %v2319
          %v2587 = vpack.c.b16 %v2586, %v2585
          %v2589 = vsel %vm1275, %v2582, 0
          %v2592 = vsel %vm1275, %v2587, 0
          %2594 = vmatpush.bf16.xpose.msra.mxu0 0
          %2595 = vmatpush.bf16.xpose.msra.mxu0 0
          %2596 = vmatpush.bf16.xpose.msra.mxu0 0
          %2597 = vmatpush.bf16.xpose.msra.mxu0 0
          %2598 = vmatpush.bf16.xpose.msra.mxu0 0
          %2599 = vmatpush.bf16.xpose.msra.mxu0 0
          %2600 = vmatpush.bf16.xpose.msra.mxu0 0
          %2601 = vmatpush.bf16.xpose.msra.mxu0 %v2592
          %2602 = vmatmul.bf16.gmra.mxu0 %v2589
          %v2603 = vpop.f32.mrf.mxu0
          %v2604 = vadd.f32 0.0, %v2603
          %v2605 = vpop.f32.mrf.mxu0
          %v2606 = vadd.f32 0.0, %v2605
          %2607 = vdwg.mxu0
          %v2610 = vunpack.c.l.b16 %v2068
          %v2611 = vunpack.c.l.b16 %v2069
          %v2612 = vpack.c.b16 %v2611, %v2610
          %v2615 = vunpack.c.l.b16 %v2320
          %v2616 = vunpack.c.l.b16 %v2321
          %v2617 = vpack.c.b16 %v2616, %v2615
          %v2619 = vsel %vm1275, %v2612, 0
          %v2622 = vsel %vm1275, %v2617, 0
          %2624 = vmatpush.bf16.xpose.msra.mxu0 0
          %2625 = vmatpush.bf16.xpose.msra.mxu0 0
          %2626 = vmatpush.bf16.xpose.msra.mxu0 0
          %2627 = vmatpush.bf16.xpose.msra.mxu0 0
          %2628 = vmatpush.bf16.xpose.msra.mxu0 0
          %2629 = vmatpush.bf16.xpose.msra.mxu0 0
          %2630 = vmatpush.bf16.xpose.msra.mxu0 0
          %2631 = vmatpush.bf16.xpose.msra.mxu0 %v2622
          %2632 = vmatmul.bf16.gmra.mxu0 %v2619
          %v2633 = vpop.f32.mrf.mxu0
          %v2634 = vadd.f32 0.0, %v2633
          %v2635 = vpop.f32.mrf.mxu0
          %v2636 = vadd.f32 0.0, %v2635
          %2637 = vdwg.mxu0
          %v2640 = vunpack.c.l.b16 %v2070
          %v2641 = vunpack.c.l.b16 %v2071
          %v2642 = vpack.c.b16 %v2641, %v2640
          %v2645 = vunpack.c.l.b16 %v2322
          %v2646 = vunpack.c.l.b16 %v2323
          %v2647 = vpack.c.b16 %v2646, %v2645
          %v2649 = vsel %vm1275, %v2642, 0
          %v2652 = vsel %vm1275, %v2647, 0
          %2654 = vmatpush.bf16.xpose.msra.mxu0 0
          %2655 = vmatpush.bf16.xpose.msra.mxu0 0
          %2656 = vmatpush.bf16.xpose.msra.mxu0 0
          %2657 = vmatpush.bf16.xpose.msra.mxu0 0
          %2658 = vmatpush.bf16.xpose.msra.mxu0 0
          %2659 = vmatpush.bf16.xpose.msra.mxu0 0
          %2660 = vmatpush.bf16.xpose.msra.mxu0 0
          %2661 = vmatpush.bf16.xpose.msra.mxu0 %v2652
          %2662 = vmatmul.bf16.gmra.mxu0 %v2649
          %v2663 = vpop.f32.mrf.mxu0
          %v2664 = vadd.f32 0.0, %v2663
          %v2665 = vpop.f32.mrf.mxu0
          %v2666 = vadd.f32 0.0, %v2665
          %2667 = vdwg.mxu0
          %v2670 = vunpack.c.l.b16 %v2072
          %v2671 = vunpack.c.l.b16 %v2073
          %v2672 = vpack.c.b16 %v2671, %v2670
          %v2675 = vunpack.c.l.b16 %v2324
          %v2676 = vunpack.c.l.b16 %v2325
          %v2677 = vpack.c.b16 %v2676, %v2675
          %v2679 = vsel %vm1275, %v2672, 0
          %v2682 = vsel %vm1275, %v2677, 0
          %2684 = vmatpush.bf16.xpose.msra.mxu0 0
          %2685 = vmatpush.bf16.xpose.msra.mxu0 0
          %2686 = vmatpush.bf16.xpose.msra.mxu0 0
          %2687 = vmatpush.bf16.xpose.msra.mxu0 0
          %2688 = vmatpush.bf16.xpose.msra.mxu0 0
          %2689 = vmatpush.bf16.xpose.msra.mxu0 0
          %2690 = vmatpush.bf16.xpose.msra.mxu0 0
          %2691 = vmatpush.bf16.xpose.msra.mxu0 %v2682
          %2692 = vmatmul.bf16.gmra.mxu0 %v2679
          %v2693 = vpop.f32.mrf.mxu0
          %v2694 = vadd.f32 0.0, %v2693
          %v2695 = vpop.f32.mrf.mxu0
          %v2696 = vadd.f32 0.0, %v2695
          %2697 = vdwg.mxu0
          %v2698 = vsel %vm1624, %v2604, -inf
          %2699 = vmax.xlane.f32.xlu0 %v2698
          %v2700 = vpop.xlane.xlu0 %2699
          %v2701 = vsel %vm1624, %v2606, -inf
          %2702 = vmax.xlane.f32.xlu0 %v2701
          %v2703 = vpop.xlane.xlu0 %2702
          %v2704 = vsel %vm1624, %v2634, -inf
          %2705 = vmax.xlane.f32.xlu0 %v2704
          %v2706 = vpop.xlane.xlu0 %2705
          %v2707 = vsel %vm1624, %v2636, -inf
          %2708 = vmax.xlane.f32.xlu0 %v2707
          %v2709 = vpop.xlane.xlu0 %2708
          %v2710 = vsel %vm1624, %v2664, -inf
          %2711 = vmax.xlane.f32.xlu0 %v2710
          %v2712 = vpop.xlane.xlu0 %2711
          %v2713 = vsel %vm1624, %v2666, -inf
          %2714 = vmax.xlane.f32.xlu0 %v2713
          %v2715 = vpop.xlane.xlu0 %2714
          %v2716 = vsel %vm1624, %v2694, -inf
          %2717 = vmax.xlane.f32.xlu0 %v2716
          %v2718 = vpop.xlane.xlu0 %2717
          %v2719 = vsel %vm1624, %v2696, -inf
          %2720 = vmax.xlane.f32.xlu0 %v2719
          %v2721 = vpop.xlane.xlu0 %2720
          %v2722 = vsub.f32 -inf, %v2700
          %v2723 = vsub.f32 -inf, %v2703
          %v2724 = vsub.f32 -inf, %v2706
          %v2725 = vsub.f32 -inf, %v2709
          %v2726 = vsub.f32 -inf, %v2712
          %v2727 = vsub.f32 -inf, %v2715
          %v2728 = vsub.f32 -inf, %v2718
          %v2729 = vsub.f32 -inf, %v2721
          %v2730 = vmul.f32 %v2722, 1.442695
          %v2731 = vpow.pop %v2730
          %v2732 = vmul.f32 %v2723, 1.442695
          %v2733 = vpow.pop %v2732
          %v2734 = vmul.f32 %v2724, 1.442695
          %v2735 = vpow.pop %v2734
          %v2736 = vmul.f32 %v2725, 1.442695
          %v2737 = vpow.pop %v2736
          %v2738 = vmul.f32 %v2726, 1.442695
          %v2739 = vpow.pop %v2738
          %v2740 = vmul.f32 %v2727, 1.442695
          %v2741 = vpow.pop %v2740
          %v2742 = vmul.f32 %v2728, 1.442695
          %v2743 = vpow.pop %v2742
          %v2744 = vmul.f32 %v2729, 1.442695
          %v2745 = vpow.pop %v2744
          %v2746 = vsub.f32 %v2604, %v2700
          %v2747 = vsub.f32 %v2606, %v2703
          %v2748 = vsub.f32 %v2634, %v2706
          %v2749 = vsub.f32 %v2636, %v2709
          %v2750 = vsub.f32 %v2664, %v2712
          %v2751 = vsub.f32 %v2666, %v2715
          %v2752 = vsub.f32 %v2694, %v2718
          %v2753 = vsub.f32 %v2696, %v2721
          %v2754 = vmul.f32 %v2746, 1.442695
          %v2755 = vpow.pop %v2754
          %v2756 = vmul.f32 %v2747, 1.442695
          %v2757 = vpow.pop %v2756
          %v2758 = vmul.f32 %v2748, 1.442695
          %v2759 = vpow.pop %v2758
          %v2760 = vmul.f32 %v2749, 1.442695
          %v2761 = vpow.pop %v2760
          %v2762 = vmul.f32 %v2750, 1.442695
          %v2763 = vpow.pop %v2762
          %v2764 = vmul.f32 %v2751, 1.442695
          %v2765 = vpow.pop %v2764
          %v2766 = vmul.f32 %v2752, 1.442695
          %v2767 = vpow.pop %v2766
          %v2768 = vmul.f32 %v2753, 1.442695
          %v2769 = vpow.pop %v2768
          %v2770 = vmul.f32 %v2731, 0.0
          %v2771 = vmul.f32 %v2733, 0.0
          %v2772 = vmul.f32 %v2735, 0.0
          %v2773 = vmul.f32 %v2737, 0.0
          %v2774 = vmul.f32 %v2739, 0.0
          %v2775 = vmul.f32 %v2741, 0.0
          %v2776 = vmul.f32 %v2743, 0.0
          %v2777 = vmul.f32 %v2745, 0.0
          %v2778 = vsel %vm1624, %v2755, 0.0
          %2779 = vadd.xlane.f32.xlu0 %v2778
          %v2780 = vpop.xlane.xlu0 %2779
          %v2781 = vsel %vm1624, %v2757, 0.0
          %2782 = vadd.xlane.f32.xlu0 %v2781
          %v2783 = vpop.xlane.xlu0 %2782
          %v2784 = vsel %vm1624, %v2759, 0.0
          %2785 = vadd.xlane.f32.xlu0 %v2784
          %v2786 = vpop.xlane.xlu0 %2785
          %v2787 = vsel %vm1624, %v2761, 0.0
          %2788 = vadd.xlane.f32.xlu0 %v2787
          %v2789 = vpop.xlane.xlu0 %2788
          %v2790 = vsel %vm1624, %v2763, 0.0
          %2791 = vadd.xlane.f32.xlu0 %v2790
          %v2792 = vpop.xlane.xlu0 %2791
          %v2793 = vsel %vm1624, %v2765, 0.0
          %2794 = vadd.xlane.f32.xlu0 %v2793
          %v2795 = vpop.xlane.xlu0 %2794
          %v2796 = vsel %vm1624, %v2767, 0.0
          %2797 = vadd.xlane.f32.xlu0 %v2796
          %v2798 = vpop.xlane.xlu0 %2797
          %v2799 = vsel %vm1624, %v2769, 0.0
          %2800 = vadd.xlane.f32.xlu0 %v2799
          %v2801 = vpop.xlane.xlu0 %2800
          %v2802 = vadd.f32 %v2770, %v2780
          %v2803 = vadd.f32 %v2771, %v2783
          %v2804 = vadd.f32 %v2772, %v2786
          %v2805 = vadd.f32 %v2773, %v2789
          %v2806 = vadd.f32 %v2774, %v2792
          %v2807 = vadd.f32 %v2775, %v2795
          %v2808 = vadd.f32 %v2776, %v2798
          %v2809 = vadd.f32 %v2777, %v2801
          %v2810 = vpack.c.bf16 %v2755, %v2755
          %v2811 = vpack.c.bf16 %v2757, %v2757
          %v2812 = vpack.c.bf16 %v2759, %v2759
          %v2813 = vpack.c.bf16 %v2761, %v2761
          %v2814 = vpack.c.bf16 %v2763, %v2763
          %v2815 = vpack.c.bf16 %v2765, %v2765
          %v2816 = vpack.c.bf16 %v2767, %v2767
          %v2817 = vpack.c.bf16 %v2769, %v2769
          %v2820 = vunpack.c.l.b16 %v2810
          %v2821 = vunpack.c.l.b16 %v2811
          %v2822 = vpack.c.b16 %v2821, %v2820
          %v2825 = vunpack.c.l.b16 %v2570
          %v2826 = vunpack.c.l.b16 %v2571
          %v2827 = vpack.c.b16 %v2826, %v2825
          %v2830 = vsel %vm1624, %v2822, 0
          %2832 = vmatpush.bf16.msra.mxu0 0
          %2833 = vmatpush.bf16.msra.mxu0 0
          %2834 = vmatpush.bf16.msra.mxu0 0
          %2835 = vmatpush.bf16.msra.mxu0 0
          %2836 = vmatpush.bf16.msra.mxu0 0
          %2837 = vmatpush.bf16.msra.mxu0 0
          %2838 = vmatpush.bf16.msra.mxu0 0
          %2839 = vmatpush.bf16.msra.mxu0 %v2827
          %2840 = vmatmul.bf16.gmra.mxu0 %v2830
          %v2841 = vpop.f32.mrf.mxu0
          %v2842 = vadd.f32 0.0, %v2841
          %v2843 = vpop.f32.mrf.mxu0
          %v2844 = vadd.f32 0.0, %v2843
          %2845 = vdwg.mxu0
          %v2848 = vunpack.c.l.b16 %v2812
          %v2849 = vunpack.c.l.b16 %v2813
          %v2850 = vpack.c.b16 %v2849, %v2848
          %v2853 = vunpack.c.l.b16 %v2572
          %v2854 = vunpack.c.l.b16 %v2573
          %v2855 = vpack.c.b16 %v2854, %v2853
          %v2858 = vsel %vm1624, %v2850, 0
          %2860 = vmatpush.bf16.msra.mxu0 0
          %2861 = vmatpush.bf16.msra.mxu0 0
          %2862 = vmatpush.bf16.msra.mxu0 0
          %2863 = vmatpush.bf16.msra.mxu0 0
          %2864 = vmatpush.bf16.msra.mxu0 0
          %2865 = vmatpush.bf16.msra.mxu0 0
          %2866 = vmatpush.bf16.msra.mxu0 0
          %2867 = vmatpush.bf16.msra.mxu0 %v2855
          %2868 = vmatmul.bf16.gmra.mxu0 %v2858
          %v2869 = vpop.f32.mrf.mxu0
          %v2870 = vadd.f32 0.0, %v2869
          %v2871 = vpop.f32.mrf.mxu0
          %v2872 = vadd.f32 0.0, %v2871
          %2873 = vdwg.mxu0
          %v2876 = vunpack.c.l.b16 %v2814
          %v2877 = vunpack.c.l.b16 %v2815
          %v2878 = vpack.c.b16 %v2877, %v2876
          %v2881 = vunpack.c.l.b16 %v2574
          %v2882 = vunpack.c.l.b16 %v2575
          %v2883 = vpack.c.b16 %v2882, %v2881
          %v2886 = vsel %vm1624, %v2878, 0
          %2888 = vmatpush.bf16.msra.mxu0 0
          %2889 = vmatpush.bf16.msra.mxu0 0
          %2890 = vmatpush.bf16.msra.mxu0 0
          %2891 = vmatpush.bf16.msra.mxu0 0
          %2892 = vmatpush.bf16.msra.mxu0 0
          %2893 = vmatpush.bf16.msra.mxu0 0
          %2894 = vmatpush.bf16.msra.mxu0 0
          %2895 = vmatpush.bf16.msra.mxu0 %v2883
          %2896 = vmatmul.bf16.gmra.mxu0 %v2886
          %v2897 = vpop.f32.mrf.mxu0
          %v2898 = vadd.f32 0.0, %v2897
          %v2899 = vpop.f32.mrf.mxu0
          %v2900 = vadd.f32 0.0, %v2899
          %2901 = vdwg.mxu0
          %v2904 = vunpack.c.l.b16 %v2816
          %v2905 = vunpack.c.l.b16 %v2817
          %v2906 = vpack.c.b16 %v2905, %v2904
          %v2909 = vunpack.c.l.b16 %v2576
          %v2910 = vunpack.c.l.b16 %v2577
          %v2911 = vpack.c.b16 %v2910, %v2909
          %v2914 = vsel %vm1624, %v2906, 0
          %2916 = vmatpush.bf16.msra.mxu0 0
          %2917 = vmatpush.bf16.msra.mxu0 0
          %2918 = vmatpush.bf16.msra.mxu0 0
          %2919 = vmatpush.bf16.msra.mxu0 0
          %2920 = vmatpush.bf16.msra.mxu0 0
          %2921 = vmatpush.bf16.msra.mxu0 0
          %2922 = vmatpush.bf16.msra.mxu0 0
          %2923 = vmatpush.bf16.msra.mxu0 %v2911
          %2924 = vmatmul.bf16.gmra.mxu0 %v2914
          %v2925 = vpop.f32.mrf.mxu0
          %v2926 = vadd.f32 0.0, %v2925
          %v2927 = vpop.f32.mrf.mxu0
          %v2928 = vadd.f32 0.0, %v2927
          %2929 = vdwg.mxu0
          %v2930 = vadd.f32 %v2770, %v2842
          %v2931 = vadd.f32 %v2771, %v2844
          %v2932 = vadd.f32 %v2772, %v2870
          %v2933 = vadd.f32 %v2773, %v2872
          %v2934 = vadd.f32 %v2774, %v2898
          %v2935 = vadd.f32 %v2775, %v2900
          %v2936 = vadd.f32 %v2776, %v2926
          %v2937 = vadd.f32 %v2777, %v2928
          %v2938 = vrcp.pop %v2802
          %v2939 = vrcp.pop %v2803
          %v2940 = vrcp.pop %v2804
          %v2941 = vrcp.pop %v2805
          %v2942 = vrcp.pop %v2806
          %v2943 = vrcp.pop %v2807
          %v2944 = vrcp.pop %v2808
          %v2945 = vrcp.pop %v2809
          %v2946 = vmul.f32 %v2930, %v2938
          %v2947 = vmul.f32 %v2931, %v2939
          %v2948 = vmul.f32 %v2932, %v2940
          %v2949 = vmul.f32 %v2933, %v2941
          %v2950 = vmul.f32 %v2934, %v2942
          %v2951 = vmul.f32 %v2935, %v2943
          %v2952 = vmul.f32 %v2936, %v2944
          %v2953 = vmul.f32 %v2937, %v2945
          %v2954 = vrot.slane %v2950, 4
          %v2955 = vsel %vm909, %v2954, %v2946
          %v2956 = vrot.slane %v2946, 4
          %v2957 = vsel %vm909, %v2950, %v2956
          %v2959 = vunpack.c.l.s4 1983009808
          %v2960 = vunpack.c.0.s8 %v2959
          %v2961 = vperm.slane %v2955, %v2960
          %v2963 = vunpack.c.l.s4 1983009808
          %v2964 = vunpack.c.0.s8 %v2963
          %v2965 = vperm.slane %v2957, %v2964
          %v2966 = vrot.slane %v2952, 4
          %v2967 = vsel %vm909, %v2966, %v2948
          %v2968 = vrot.slane %v2948, 4
          %v2969 = vsel %vm909, %v2952, %v2968
          %v2971 = vunpack.c.l.s4 1983009808
          %v2972 = vunpack.c.0.s8 %v2971
          %v2973 = vperm.slane %v2967, %v2972
          %v2975 = vunpack.c.l.s4 1983009808
          %v2976 = vunpack.c.0.s8 %v2975
          %v2977 = vperm.slane %v2969, %v2976
          %v2978 = vrot.slane %v2973, 4
          %v2979 = vsel %vm909, %v2978, %v2961
          %v2980 = vrot.slane %v2961, 4
          %v2981 = vsel %vm909, %v2973, %v2980
          %v2983 = vunpack.c.l.s4 1934713408
          %v2984 = vunpack.c.0.s8 %v2983
          %v2985 = vperm.slane %v2979, %v2984
          %v2987 = vunpack.c.l.s4 1934713408
          %v2988 = vunpack.c.0.s8 %v2987
          %v2989 = vperm.slane %v2981, %v2988
          %v2990 = vrot.slane %v2977, 4
          %v2991 = vsel %vm909, %v2990, %v2965
          %v2992 = vrot.slane %v2965, 4
          %v2993 = vsel %vm909, %v2977, %v2992
          %v2995 = vunpack.c.l.s4 1934713408
          %v2996 = vunpack.c.0.s8 %v2995
          %v2997 = vperm.slane %v2991, %v2996
          %v2999 = vunpack.c.l.s4 1934713408
          %v3000 = vunpack.c.0.s8 %v2999
          %v3001 = vperm.slane %v2993, %v3000
          %v3002 = vrot.slane %v2985, 4
          %v3003 = vsel %vm909, 0.0, %v3002
          %v3004 = vrot.slane %v2989, 4
          %v3005 = vsel %vm909, 0.0, %v3004
          %v3006 = vrot.slane %v2997, 4
          %v3007 = vsel %vm909, 0.0, %v3006
          %v3008 = vrot.slane %v3001, 4
          %v3009 = vsel %vm909, 0.0, %v3008
          %v3010 = vrot.slane %v2951, 4
          %v3011 = vsel %vm909, %v3010, %v2947
          %v3012 = vrot.slane %v2947, 4
          %v3013 = vsel %vm909, %v2951, %v3012
          %v3015 = vunpack.c.l.s4 1983009808
          %v3016 = vunpack.c.0.s8 %v3015
          %v3017 = vperm.slane %v3011, %v3016
          %v3019 = vunpack.c.l.s4 1983009808
          %v3020 = vunpack.c.0.s8 %v3019
          %v3021 = vperm.slane %v3013, %v3020
          %v3022 = vrot.slane %v2953, 4
          %v3023 = vsel %vm909, %v3022, %v2949
          %v3024 = vrot.slane %v2949, 4
          %v3025 = vsel %vm909, %v2953, %v3024
          %v3027 = vunpack.c.l.s4 1983009808
          %v3028 = vunpack.c.0.s8 %v3027
          %v3029 = vperm.slane %v3023, %v3028
          %v3031 = vunpack.c.l.s4 1983009808
          %v3032 = vunpack.c.0.s8 %v3031
          %v3033 = vperm.slane %v3025, %v3032
          %v3034 = vrot.slane %v3029, 4
          %v3035 = vsel %vm909, %v3034, %v3017
          %v3036 = vrot.slane %v3017, 4
          %v3037 = vsel %vm909, %v3029, %v3036
          %v3039 = vunpack.c.l.s4 1934713408
          %v3040 = vunpack.c.0.s8 %v3039
          %v3041 = vperm.slane %v3035, %v3040
          %v3043 = vunpack.c.l.s4 1934713408
          %v3044 = vunpack.c.0.s8 %v3043
          %v3045 = vperm.slane %v3037, %v3044
          %v3046 = vrot.slane %v3033, 4
          %v3047 = vsel %vm909, %v3046, %v3021
          %v3048 = vrot.slane %v3021, 4
          %v3049 = vsel %vm909, %v3033, %v3048
          %v3051 = vunpack.c.l.s4 1934713408
          %v3052 = vunpack.c.0.s8 %v3051
          %v3053 = vperm.slane %v3047, %v3052
          %v3055 = vunpack.c.l.s4 1934713408
          %v3056 = vunpack.c.0.s8 %v3055
          %v3057 = vperm.slane %v3049, %v3056
          %v3058 = vrot.slane %v3041, 4
          %v3059 = vsel %vm909, 0.0, %v3058
          %v3060 = vrot.slane %v3045, 4
          %v3061 = vsel %vm909, 0.0, %v3060
          %v3062 = vrot.slane %v3053, 4
          %v3063 = vsel %vm909, 0.0, %v3062
          %v3064 = vrot.slane %v3057, 4
          %v3065 = vsel %vm909, 0.0, %v3064
          %v3066 = vsel %vm909, %v3004, %v2985
          %v3068 = vunpack.c.l.s4 1983009808
          %v3069 = vunpack.c.0.s8 %v3068
          %v3070 = vperm.slane %v3066, %v3069
          %v3071 = vrot.slane %v3005, 4
          %v3072 = vsel %vm909, %v3071, %v3003
          %v3074 = vunpack.c.l.s4 1983009808
          %v3075 = vunpack.c.0.s8 %v3074
          %v3076 = vperm.slane %v3072, %v3075
          %v3077 = vsel %vm909, %v3008, %v2997
          %v3079 = vunpack.c.l.s4 1983009808
          %v3080 = vunpack.c.0.s8 %v3079
          %v3081 = vperm.slane %v3077, %v3080
          %v3082 = vrot.slane %v3009, 4
          %v3083 = vsel %vm909, %v3082, %v3007
          %v3085 = vunpack.c.l.s4 1983009808
          %v3086 = vunpack.c.0.s8 %v3085
          %v3087 = vperm.slane %v3083, %v3086
          %v3088 = vrot.slane %v3076, 4
          %v3089 = vsel %vm909, %v3088, %v3070
          %v3090 = vrot.slane %v3070, 4
          %v3091 = vsel %vm909, %v3076, %v3090
          %v3093 = vunpack.c.l.s4 1934713408
          %v3094 = vunpack.c.0.s8 %v3093
          %v3095 = vperm.slane %v3089, %v3094
          %v3097 = vunpack.c.l.s4 1934713408
          %v3098 = vunpack.c.0.s8 %v3097
          %v3099 = vperm.slane %v3091, %v3098
          %v3100 = vrot.slane %v3087, 4
          %v3101 = vsel %vm909, %v3100, %v3081
          %v3102 = vrot.slane %v3081, 4
          %v3103 = vsel %vm909, %v3087, %v3102
          %v3105 = vunpack.c.l.s4 1934713408
          %v3106 = vunpack.c.0.s8 %v3105
          %v3107 = vperm.slane %v3101, %v3106
          %v3109 = vunpack.c.l.s4 1934713408
          %v3110 = vunpack.c.0.s8 %v3109
          %v3111 = vperm.slane %v3103, %v3110
          %v3112 = vrot.slane %v3107, 4
          %v3113 = vsel %vm909, %v3112, %v3095
          %v3114 = vrot.slane %v3095, 4
          %v3115 = vsel %vm909, %v3107, %v3114
          %v3116 = vrot.slane %v3111, 4
          %v3117 = vsel %vm909, %v3116, %v3099
          %v3118 = vrot.slane %v3099, 4
          %v3119 = vsel %vm909, %v3111, %v3118
          %v3120 = vsel %vm909, %v3060, %v3041
          %v3122 = vunpack.c.l.s4 1983009808
          %v3123 = vunpack.c.0.s8 %v3122
          %v3124 = vperm.slane %v3120, %v3123
          %v3125 = vrot.slane %v3061, 4
          %v3126 = vsel %vm909, %v3125, %v3059
          %v3128 = vunpack.c.l.s4 1983009808
          %v3129 = vunpack.c.0.s8 %v3128
          %v3130 = vperm.slane %v3126, %v3129
          %v3131 = vsel %vm909, %v3064, %v3053
          %v3133 = vunpack.c.l.s4 1983009808
          %v3134 = vunpack.c.0.s8 %v3133
          %v3135 = vperm.slane %v3131, %v3134
          %v3136 = vrot.slane %v3065, 4
          %v3137 = vsel %vm909, %v3136, %v3063
          %v3139 = vunpack.c.l.s4 1983009808
          %v3140 = vunpack.c.0.s8 %v3139
          %v3141 = vperm.slane %v3137, %v3140
          %v3142 = vrot.slane %v3130, 4
          %v3143 = vsel %vm909, %v3142, %v3124
          %v3144 = vrot.slane %v3124, 4
          %v3145 = vsel %vm909, %v3130, %v3144
          %v3147 = vunpack.c.l.s4 1934713408
          %v3148 = vunpack.c.0.s8 %v3147
          %v3149 = vperm.slane %v3143, %v3148
          %v3151 = vunpack.c.l.s4 1934713408
          %v3152 = vunpack.c.0.s8 %v3151
          %v3153 = vperm.slane %v3145, %v3152
          %v3154 = vrot.slane %v3141, 4
          %v3155 = vsel %vm909, %v3154, %v3135
          %v3156 = vrot.slane %v3135, 4
          %v3157 = vsel %vm909, %v3141, %v3156
          %v3159 = vunpack.c.l.s4 1934713408
          %v3160 = vunpack.c.0.s8 %v3159
          %v3161 = vperm.slane %v3155, %v3160
          %v3163 = vunpack.c.l.s4 1934713408
          %v3164 = vunpack.c.0.s8 %v3163
          %v3165 = vperm.slane %v3157, %v3164
          %v3166 = vrot.slane %v3161, 4
          %v3167 = vsel %vm909, %v3166, %v3149
          %v3168 = vrot.slane %v3149, 4
          %v3169 = vsel %vm909, %v3161, %v3168
          %v3170 = vrot.slane %v3165, 4
          %v3171 = vsel %vm909, %v3170, %v3153
          %v3172 = vrot.slane %v3153, 4
          %v3173 = vsel %vm909, %v3165, %v3172
          %3176 = vrot.lane.b32.xlu0 %v3115, 8
          %v3177 = vpop.permute.xlu0 %3176
          %3178 = vrot.lane.b32.xlu0 %v3169, 8
          %v3179 = vpop.permute.xlu0 %3178
          %3184 = vrot.lane.b32.xlu0 %v3117, 16
          %v3185 = vpop.permute.xlu0 %3184
          %3186 = vrot.lane.b32.xlu0 %v3171, 16
          %v3187 = vpop.permute.xlu0 %3186
          %3192 = vrot.lane.b32.xlu0 %v3119, 24
          %v3193 = vpop.permute.xlu0 %3192
          %3194 = vrot.lane.b32.xlu0 %v3173, 24
          %v3195 = vpop.permute.xlu0 %3194
          %v3198 = vsel %vm1275, %v3113, %v3177
          %v3199 = vsel %vm1275, %v3167, %v3179
          %v3200 = vsel %vm1624, %v3198, %v3185
          %v3201 = vsel %vm1624, %v3199, %v3187
          %v3202 = vsel %vm1626, %v3200, %v3193
          %v3203 = vsel %vm1626, %v3201, %v3195
          %v3204 = vpack.c.bf16 %v3203, %v3202
          %v3206 = vsel %vm881, %v3204, 0
          %3208 = vmatpush.bf16.msra.mxu0 0
          %3209 = vmatpush.bf16.msra.mxu0 0
          %3210 = vmatpush.bf16.msra.mxu0 0
          %3211 = vmatpush.bf16.msra.mxu0 0
          %3212 = vmatpush.bf16.msra.mxu0 0
          %3213 = vmatpush.bf16.msra.mxu0 0
          %3214 = vmatpush.bf16.msra.mxu0 %v1641
          %3215 = vmatpush.bf16.msra.mxu0 %v1640
          %3216 = vmatmul.bf16.gmra.mxu0 %v3206
          %v3217 = vpop.f32.mrf.mxu0
          %v3218 = vadd.f32 %v1630, %v3217
          %v3219 = vpop.f32.mrf.mxu0
          %v3220 = vadd.f32 %v1630, %v3219
          %3221 = vdwg.mxu0
          %v3222 = vadd.f32 %v3218, %v863
          %v3223 = vadd.f32 %v3220, %v864
          %v3224 = vsel %vm881, %v3222, 0.0
          %3225 = vadd.xlane.f32.xlu0 %v3224
          %v3226 = vpop.xlane.xlu0 %3225
          %v3227 = vsel %vm881, %v3223, 0.0
          %3228 = vadd.xlane.f32.xlu0 %v3227
          %v3229 = vpop.xlane.xlu0 %3228
          %v3230 = vmul.f32 %v3226, %v1670
          %v3231 = vmul.f32 %v3229, %v1670
          %v3232 = vsub.f32 %v3222, %v3230
          %v3233 = vsub.f32 %v3223, %v3231
          %v3234 = vmul.f32 %v3232, %v3232
          %v3235 = vmul.f32 %v3233, %v3233
          %v3236 = vsel %vm881, %v3234, 0.0
          %3237 = vadd.xlane.f32.xlu0 %v3236
          %v3238 = vpop.xlane.xlu0 %3237
          %v3239 = vsel %vm881, %v3235, 0.0
          %3240 = vadd.xlane.f32.xlu0 %v3239
          %v3241 = vpop.xlane.xlu0 %3240
          %v3242 = vmul.f32 %v3238, %v1670
          %v3243 = vmul.f32 %v3241, %v1670
          %v3244 = vadd.f32 %v3242, 1e-05
          %v3245 = vadd.f32 %v3243, 1e-05
          %v3246 = vrsqrt.pop %v3244
          %v3247 = vmul.f32 %v3246, %v3244
          %v3248 = vmul.f32 %v3247, %v3246
          %v3249 = vmul.f32 0.5, %v3248
          %v3250 = vsub.f32 1.5, %v3249
          %v3251 = vmul.f32 %v3246, %v3250
          %vm3252 = vweird.f32 %v3244
          %vm3253 = vweird.f32 %v3246
          %vm3254 = vmor %vm3252, %vm3253
          %v3255 = vsel %vm3254, %v3246, %v3251
          %v3256 = vrsqrt.pop %v3245
          %v3257 = vmul.f32 %v3256, %v3245
          %v3258 = vmul.f32 %v3257, %v3256
          %v3259 = vmul.f32 0.5, %v3258
          %v3260 = vsub.f32 1.5, %v3259
          %v3261 = vmul.f32 %v3256, %v3260
          %vm3262 = vweird.f32 %v3245
          %vm3263 = vweird.f32 %v3256
          %vm3264 = vmor %vm3262, %vm3263
          %v3265 = vsel %vm3264, %v3256, %v3261
          %v3266 = vmul.f32 %v3232, %v3255
          %v3267 = vmul.f32 %v3233, %v3265
          %v3268 = vmul.f32 %v3266, %v1691
          %v3269 = vmul.f32 %v3267, %v1691
          %v3270 = vadd.f32 %v3268, %v1695
          %v3271 = vadd.f32 %v3269, %v1695
          %v3272 = vpack.c.bf16 %v3271, %v3270
          %v3274 = vsel %vm881, %v3272, 0
          %3276 = vmatpush.bf16.msra.mxu0 0
          %3277 = vmatpush.bf16.msra.mxu0 0
          %3278 = vmatpush.bf16.msra.mxu0 0
          %3279 = vmatpush.bf16.msra.mxu0 0
          %3280 = vmatpush.bf16.msra.mxu0 0
          %3281 = vmatpush.bf16.msra.mxu0 0
          %3282 = vmatpush.bf16.msra.mxu0 %v1711
          %3283 = vmatpush.bf16.msra.mxu0 %v1710
          %3284 = vmatmul.bf16.gmra.mxu0 %v3274
          %v3285 = vpop.f32.mrf.mxu0
          %v3286 = vadd.f32 %v1700, %v3285
          %v3287 = vpop.f32.mrf.mxu0
          %v3288 = vadd.f32 %v1700, %v3287
          %3289 = vdwg.mxu0
          %v3290 = vmax.f32 %v3286, 0.0
          %v3291 = vmax.f32 %v3288, 0.0
          %v3292 = vpack.c.bf16 %v3291, %v3290
          %v3294 = vsel %vm1759, %v3292, 0
          %3296 = vmatpush.bf16.msra.mxu0 0
          %3297 = vmatpush.bf16.msra.mxu0 0
          %3298 = vmatpush.bf16.msra.mxu0 0
          %3299 = vmatpush.bf16.msra.mxu0 0
          %3300 = vmatpush.bf16.msra.mxu0 %v1754
          %3301 = vmatpush.bf16.msra.mxu0 %v1753
          %3302 = vmatpush.bf16.msra.mxu0 %v1752
          %3303 = vmatpush.bf16.msra.mxu0 %v1751
          %3304 = vmatmul.bf16.gmra.mxu0 %v3294
          %v3305 = vpop.f32.mrf.mxu0
          %v3306 = vadd.f32 %v1733, %v3305
          %v3307 = vpop.f32.mrf.mxu0
          %v3308 = vadd.f32 %v1733, %v3307
          %3309 = vdwg.mxu0
          %v3310 = vadd.f32 %v3270, %v3306
          %v3311 = vadd.f32 %v3271, %v3308
          %v3312 = vsel %vm881, %v3310, 0.0
          %3313 = vadd.xlane.f32.xlu0 %v3312
          %v3314 = vpop.xlane.xlu0 %3313
          %v3315 = vsel %vm881, %v3311, 0.0
          %3316 = vadd.xlane.f32.xlu0 %v3315
          %v3317 = vpop.xlane.xlu0 %3316
          %v3318 = vmul.f32 %v3314, %v1670
          %v3319 = vmul.f32 %v3317, %v1670
          %v3320 = vsub.f32 %v3310, %v3318
          %v3321 = vsub.f32 %v3311, %v3319
          %v3322 = vmul.f32 %v3320, %v3320
          %v3323 = vmul.f32 %v3321, %v3321
          %v3324 = vsel %vm881, %v3322, 0.0
          %3325 = vadd.xlane.f32.xlu0 %v3324
          %v3326 = vpop.xlane.xlu0 %3325
          %v3327 = vsel %vm881, %v3323, 0.0
          %3328 = vadd.xlane.f32.xlu0 %v3327
          %v3329 = vpop.xlane.xlu0 %3328
          %v3330 = vmul.f32 %v3326, %v1670
          %v3331 = vmul.f32 %v3329, %v1670
          %v3332 = vadd.f32 %v3330, 1e-05
          %v3333 = vadd.f32 %v3331, 1e-05
          %v3334 = vrsqrt.pop %v3332
          %v3335 = vmul.f32 %v3334, %v3332
          %v3336 = vmul.f32 %v3335, %v3334
          %v3337 = vmul.f32 0.5, %v3336
          %v3338 = vsub.f32 1.5, %v3337
          %v3339 = vmul.f32 %v3334, %v3338
          %vm3340 = vweird.f32 %v3332
          %vm3341 = vweird.f32 %v3334
          %vm3342 = vmor %vm3340, %vm3341
          %v3343 = vsel %vm3342, %v3334, %v3339
          %v3344 = vrsqrt.pop %v3333
          %v3345 = vmul.f32 %v3344, %v3333
          %v3346 = vmul.f32 %v3345, %v3344
          %v3347 = vmul.f32 0.5, %v3346
          %v3348 = vsub.f32 1.5, %v3347
          %v3349 = vmul.f32 %v3344, %v3348
          %vm3350 = vweird.f32 %v3333
          %vm3351 = vweird.f32 %v3344
          %vm3352 = vmor %vm3350, %vm3351
          %v3353 = vsel %vm3352, %v3344, %v3349
          %v3354 = vmul.f32 %v3320, %v3343
          %v3355 = vmul.f32 %v3321, %v3353
          %v3356 = vmul.f32 %v3354, %v1800
          %v3357 = vmul.f32 %v3355, %v1800
          %v3358 = vadd.f32 %v3356, %v1804
          %v3359 = vadd.f32 %v3357, %v1804
          %3360 = vst.msk [vmem:[%s778] sm:$0xff] %vm881, %v3358
          %3361 = vst.msk [vmem:[%s778 + $0x8] sm:$0xff] %vm881, %v3359
        $region100: #{tpu_custom_call.1} parent=75 // pred_fallthru
          _
        %p3362 = scmp.ne.s32.totalorder %s857, 0
        // Predicated region
        $region101: #{tpu_custom_call.1} parent=75 // pred_check
          %p3363 = pneg %p3362
        $region102: #{tpu_custom_call.1} parent=75 // pred_check_branch
          %3365 = sbr.rel (%p3363) target = $region104
        $region103: #{tpu_custom_call.1} parent=75 // pred_region
          %v3366 = vld [vmem:[%s771] sm:$0xff]
          %v3367 = vld [vmem:[%s778] sm:$0xff]
          %v3368 = vld [vmem:[%s778 + $0x8] sm:$0xff]
          %v3369 = vpack.c.bf16 %v3366, %v3366
          %v3370 = vpack.c.bf16 %v3368, %v3367
          %v3372 = vperm.slane %v833, 0
          %v3378 = vunpack.c.l.b16 %v829
          %v3379 = vunpack.c.l.b16 %v830
          %v3380 = vunpack.c.l.b16 %v831
          %v3381 = vunpack.c.l.b16 %v832
          %v3382 = vpack.c.b16 %v3379, %v3378
          %v3383 = vpack.c.b16 %v3381, %v3380
          %vm3386 = vcmask 261120
          %v3388 = vsel %vm3386, %v3369, 0
          %3390 = vmatpush.bf16.msra.mxu0 0
          %3391 = vmatpush.bf16.msra.mxu0 0
          %3392 = vmatpush.bf16.msra.mxu0 0
          %3393 = vmatpush.bf16.msra.mxu0 0
          %3394 = vmatpush.bf16.msra.mxu0 0
          %3395 = vmatpush.bf16.msra.mxu0 0
          %3396 = vmatpush.bf16.msra.mxu0 %v3383
          %3397 = vmatpush.bf16.msra.mxu0 %v3382
          %3398 = vmatmul.bf16.gmra.mxu0 %v3388
          %v3399 = vpop.f32.mrf.mxu0
          %v3400 = vadd.f32 %v3372, %v3399
          %v3401 = vpop.f32.mrf.mxu0
          %3402 = vdwg.mxu0
          %3403 = vrot.lane.b32.xlu0 %v3382, 96
          %v3404 = vpop.permute.xlu0 %3403
          %3405 = vrot.lane.b32.xlu0 %v3383, 96
          %v3406 = vpop.permute.xlu0 %3405
          %3409 = vrot.lane.b32.xlu0 %v3372, 96
          %v3410 = vpop.permute.xlu0 %3409
          %v3413 = vsel %vm3386, %v3370, 0
          %3415 = vmatpush.bf16.msra.mxu0 0
          %3416 = vmatpush.bf16.msra.mxu0 0
          %3417 = vmatpush.bf16.msra.mxu0 0
          %3418 = vmatpush.bf16.msra.mxu0 0
          %3419 = vmatpush.bf16.msra.mxu0 0
          %3420 = vmatpush.bf16.msra.mxu0 0
          %3421 = vmatpush.bf16.msra.mxu0 %v3406
          %3422 = vmatpush.bf16.msra.mxu0 %v3404
          %3423 = vmatmul.bf16.gmra.mxu0 %v3413
          %v3424 = vpop.f32.mrf.mxu0
          %v3425 = vadd.f32 %v3410, %v3424
          %v3426 = vpop.f32.mrf.mxu0
          %v3427 = vadd.f32 %v3410, %v3426
          %3428 = vdwg.mxu0
          %3430 = vrot.lane.b32.xlu0 %v3400, 120
          %v3431 = vpop.permute.xlu0 %3430
          %3433 = vrot.lane.b32.xlu0 %v3400, 112
          %v3434 = vpop.permute.xlu0 %3433
          %3436 = vrot.lane.b32.xlu0 %v3400, 104
          %v3437 = vpop.permute.xlu0 %3436
          %v3439 = vrot.slane %v3434, 4
          %vm3440 = vcmask 1047556
          %v3441 = vsel %vm3440, %v3439, %v3400
          %v3442 = vrot.slane %v3400, 4
          %v3443 = vsel %vm3440, %v3434, %v3442
          %v3445 = vunpack.c.l.s4 1983009808
          %v3446 = vunpack.c.0.s8 %v3445
          %v3447 = vperm.slane %v3441, %v3446
          %v3449 = vunpack.c.l.s4 1983009808
          %v3450 = vunpack.c.0.s8 %v3449
          %v3451 = vperm.slane %v3443, %v3450
          %v3452 = vrot.slane %v3437, 4
          %v3453 = vsel %vm3440, %v3452, %v3431
          %v3454 = vrot.slane %v3431, 4
          %v3455 = vsel %vm3440, %v3437, %v3454
          %v3457 = vunpack.c.l.s4 1983009808
          %v3458 = vunpack.c.0.s8 %v3457
          %v3459 = vperm.slane %v3453, %v3458
          %v3461 = vunpack.c.l.s4 1983009808
          %v3462 = vunpack.c.0.s8 %v3461
          %v3463 = vperm.slane %v3455, %v3462
          %v3464 = vrot.slane %v3459, 4
          %v3465 = vsel %vm3440, %v3464, %v3447
          %v3466 = vrot.slane %v3447, 4
          %v3467 = vsel %vm3440, %v3459, %v3466
          %v3469 = vunpack.c.l.s4 1934713408
          %v3470 = vunpack.c.0.s8 %v3469
          %v3471 = vperm.slane %v3465, %v3470
          %v3473 = vunpack.c.l.s4 1934713408
          %v3474 = vunpack.c.0.s8 %v3473
          %v3475 = vperm.slane %v3467, %v3474
          %v3476 = vrot.slane %v3463, 4
          %v3477 = vsel %vm3440, %v3476, %v3451
          %v3478 = vrot.slane %v3451, 4
          %v3479 = vsel %vm3440, %v3463, %v3478
          %v3481 = vunpack.c.l.s4 1934713408
          %v3482 = vunpack.c.0.s8 %v3481
          %v3483 = vperm.slane %v3477, %v3482
          %v3485 = vunpack.c.l.s4 1934713408
          %v3486 = vunpack.c.0.s8 %v3485
          %v3487 = vperm.slane %v3479, %v3486
          %v3488 = vrot.slane %v3471, 4
          %v3489 = vsel %vm3440, 0.0, %v3488
          %v3490 = vrot.slane %v3475, 4
          %v3491 = vsel %vm3440, 0.0, %v3490
          %v3492 = vrot.slane %v3483, 4
          %v3493 = vsel %vm3440, 0.0, %v3492
          %v3494 = vrot.slane %v3487, 4
          %v3495 = vsel %vm3440, 0.0, %v3494
          %v3496 = vsel %vm3440, %v3490, %v3471
          %v3498 = vunpack.c.l.s4 1983009808
          %v3499 = vunpack.c.0.s8 %v3498
          %v3500 = vperm.slane %v3496, %v3499
          %v3501 = vrot.slane %v3491, 4
          %v3502 = vsel %vm3440, %v3501, %v3489
          %v3504 = vunpack.c.l.s4 1983009808
          %v3505 = vunpack.c.0.s8 %v3504
          %v3506 = vperm.slane %v3502, %v3505
          %v3507 = vsel %vm3440, %v3494, %v3483
          %v3509 = vunpack.c.l.s4 1983009808
          %v3510 = vunpack.c.0.s8 %v3509
          %v3511 = vperm.slane %v3507, %v3510
          %v3512 = vrot.slane %v3495, 4
          %v3513 = vsel %vm3440, %v3512, %v3493
          %v3515 = vunpack.c.l.s4 1983009808
          %v3516 = vunpack.c.0.s8 %v3515
          %v3517 = vperm.slane %v3513, %v3516
          %v3518 = vrot.slane %v3506, 4
          %v3519 = vsel %vm3440, %v3518, %v3500
          %v3520 = vrot.slane %v3500, 4
          %v3521 = vsel %vm3440, %v3506, %v3520
          %v3523 = vunpack.c.l.s4 1934713408
          %v3524 = vunpack.c.0.s8 %v3523
          %v3525 = vperm.slane %v3519, %v3524
          %v3527 = vunpack.c.l.s4 1934713408
          %v3528 = vunpack.c.0.s8 %v3527
          %v3529 = vperm.slane %v3521, %v3528
          %v3530 = vrot.slane %v3517, 4
          %v3531 = vsel %vm3440, %v3530, %v3511
          %v3532 = vrot.slane %v3511, 4
          %v3533 = vsel %vm3440, %v3517, %v3532
          %v3535 = vunpack.c.l.s4 1934713408
          %v3536 = vunpack.c.0.s8 %v3535
          %v3537 = vperm.slane %v3531, %v3536
          %v3539 = vunpack.c.l.s4 1934713408
          %v3540 = vunpack.c.0.s8 %v3539
          %v3541 = vperm.slane %v3533, %v3540
          %v3542 = vrot.slane %v3537, 4
          %v3543 = vsel %vm3440, %v3542, %v3525
          %v3544 = vrot.slane %v3525, 4
          %v3545 = vsel %vm3440, %v3537, %v3544
          %v3546 = vrot.slane %v3541, 4
          %v3547 = vsel %vm3440, %v3546, %v3529
          %v3548 = vrot.slane %v3529, 4
          %v3549 = vsel %vm3440, %v3541, %v3548
          %v3550 = vpack.c.bf16 %v3543, %v3543
          %v3551 = vpack.c.bf16 %v3545, %v3545
          %v3552 = vpack.c.bf16 %v3547, %v3547
          %v3553 = vpack.c.bf16 %v3549, %v3549
          %3556 = vrot.lane.b32.xlu0 %v3425, 120
          %v3557 = vpop.permute.xlu0 %3556
          %3558 = vrot.lane.b32.xlu0 %v3427, 120
          %v3559 = vpop.permute.xlu0 %3558
          %3562 = vrot.lane.b32.xlu0 %v3425, 112
          %v3563 = vpop.permute.xlu0 %3562
          %3564 = vrot.lane.b32.xlu0 %v3427, 112
          %v3565 = vpop.permute.xlu0 %3564
          %3568 = vrot.lane.b32.xlu0 %v3425, 104
          %v3569 = vpop.permute.xlu0 %3568
          %3570 = vrot.lane.b32.xlu0 %v3427, 104
          %v3571 = vpop.permute.xlu0 %3570
          %v3574 = vrot.slane %v3563, 4
          %v3575 = vsel %vm3440, %v3574, %v3425
          %v3576 = vrot.slane %v3425, 4
          %v3577 = vsel %vm3440, %v3563, %v3576
          %v3579 = vunpack.c.l.s4 1983009808
          %v3580 = vunpack.c.0.s8 %v3579
          %v3581 = vperm.slane %v3575, %v3580
          %v3583 = vunpack.c.l.s4 1983009808
          %v3584 = vunpack.c.0.s8 %v3583
          %v3585 = vperm.slane %v3577, %v3584
          %v3586 = vrot.slane %v3569, 4
          %v3587 = vsel %vm3440, %v3586, %v3557
          %v3588 = vrot.slane %v3557, 4
          %v3589 = vsel %vm3440, %v3569, %v3588
          %v3591 = vunpack.c.l.s4 1983009808
          %v3592 = vunpack.c.0.s8 %v3591
          %v3593 = vperm.slane %v3587, %v3592
          %v3595 = vunpack.c.l.s4 1983009808
          %v3596 = vunpack.c.0.s8 %v3595
          %v3597 = vperm.slane %v3589, %v3596
          %v3598 = vrot.slane %v3593, 4
          %v3599 = vsel %vm3440, %v3598, %v3581
          %v3600 = vrot.slane %v3581, 4
          %v3601 = vsel %vm3440, %v3593, %v3600
          %v3603 = vunpack.c.l.s4 1934713408
          %v3604 = vunpack.c.0.s8 %v3603
          %v3605 = vperm.slane %v3599, %v3604
          %v3607 = vunpack.c.l.s4 1934713408
          %v3608 = vunpack.c.0.s8 %v3607
          %v3609 = vperm.slane %v3601, %v3608
          %v3610 = vrot.slane %v3597, 4
          %v3611 = vsel %vm3440, %v3610, %v3585
          %v3612 = vrot.slane %v3585, 4
          %v3613 = vsel %vm3440, %v3597, %v3612
          %v3615 = vunpack.c.l.s4 1934713408
          %v3616 = vunpack.c.0.s8 %v3615
          %v3617 = vperm.slane %v3611, %v3616
          %v3619 = vunpack.c.l.s4 1934713408
          %v3620 = vunpack.c.0.s8 %v3619
          %v3621 = vperm.slane %v3613, %v3620
          %v3622 = vrot.slane %v3605, 4
          %v3623 = vsel %vm3440, 0.0, %v3622
          %v3624 = vrot.slane %v3609, 4
          %v3625 = vsel %vm3440, 0.0, %v3624
          %v3626 = vrot.slane %v3617, 4
          %v3627 = vsel %vm3440, 0.0, %v3626
          %v3628 = vrot.slane %v3621, 4
          %v3629 = vsel %vm3440, 0.0, %v3628
          %v3630 = vrot.slane %v3565, 4
          %v3631 = vsel %vm3440, %v3630, %v3427
          %v3632 = vrot.slane %v3427, 4
          %v3633 = vsel %vm3440, %v3565, %v3632
          %v3635 = vunpack.c.l.s4 1983009808
          %v3636 = vunpack.c.0.s8 %v3635
          %v3637 = vperm.slane %v3631, %v3636
          %v3639 = vunpack.c.l.s4 1983009808
          %v3640 = vunpack.c.0.s8 %v3639
          %v3641 = vperm.slane %v3633, %v3640
          %v3642 = vrot.slane %v3571, 4
          %v3643 = vsel %vm3440, %v3642, %v3559
          %v3644 = vrot.slane %v3559, 4
          %v3645 = vsel %vm3440, %v3571, %v3644
          %v3647 = vunpack.c.l.s4 1983009808
          %v3648 = vunpack.c.0.s8 %v3647
          %v3649 = vperm.slane %v3643, %v3648
          %v3651 = vunpack.c.l.s4 1983009808
          %v3652 = vunpack.c.0.s8 %v3651
          %v3653 = vperm.slane %v3645, %v3652
          %v3654 = vrot.slane %v3649, 4
          %v3655 = vsel %vm3440, %v3654, %v3637
          %v3656 = vrot.slane %v3637, 4
          %v3657 = vsel %vm3440, %v3649, %v3656
          %v3659 = vunpack.c.l.s4 1934713408
          %v3660 = vunpack.c.0.s8 %v3659
          %v3661 = vperm.slane %v3655, %v3660
          %v3663 = vunpack.c.l.s4 1934713408
          %v3664 = vunpack.c.0.s8 %v3663
          %v3665 = vperm.slane %v3657, %v3664
          %v3666 = vrot.slane %v3653, 4
          %v3667 = vsel %vm3440, %v3666, %v3641
          %v3668 = vrot.slane %v3641, 4
          %v3669 = vsel %vm3440, %v3653, %v3668
          %v3671 = vunpack.c.l.s4 1934713408
          %v3672 = vunpack.c.0.s8 %v3671
          %v3673 = vperm.slane %v3667, %v3672
          %v3675 = vunpack.c.l.s4 1934713408
          %v3676 = vunpack.c.0.s8 %v3675
          %v3677 = vperm.slane %v3669, %v3676
          %v3678 = vrot.slane %v3661, 4
          %v3679 = vsel %vm3440, 0.0, %v3678
          %v3680 = vrot.slane %v3665, 4
          %v3681 = vsel %vm3440, 0.0, %v3680
          %v3682 = vrot.slane %v3673, 4
          %v3683 = vsel %vm3440, 0.0, %v3682
          %v3684 = vrot.slane %v3677, 4
          %v3685 = vsel %vm3440, 0.0, %v3684
          %v3686 = vsel %vm3440, %v3624, %v3605
          %v3688 = vunpack.c.l.s4 1983009808
          %v3689 = vunpack.c.0.s8 %v3688
          %v3690 = vperm.slane %v3686, %v3689
          %v3691 = vrot.slane %v3625, 4
          %v3692 = vsel %vm3440, %v3691, %v3623
          %v3694 = vunpack.c.l.s4 1983009808
          %v3695 = vunpack.c.0.s8 %v3694
          %v3696 = vperm.slane %v3692, %v3695
          %v3697 = vsel %vm3440, %v3628, %v3617
          %v3699 = vunpack.c.l.s4 1983009808
          %v3700 = vunpack.c.0.s8 %v3699
          %v3701 = vperm.slane %v3697, %v3700
          %v3702 = vrot.slane %v3629, 4
          %v3703 = vsel %vm3440, %v3702, %v3627
          %v3705 = vunpack.c.l.s4 1983009808
          %v3706 = vunpack.c.0.s8 %v3705
          %v3707 = vperm.slane %v3703, %v3706
          %v3708 = vrot.slane %v3696, 4
          %v3709 = vsel %vm3440, %v3708, %v3690
          %v3710 = vrot.slane %v3690, 4
          %v3711 = vsel %vm3440, %v3696, %v3710
          %v3713 = vunpack.c.l.s4 1934713408
          %v3714 = vunpack.c.0.s8 %v3713
          %v3715 = vperm.slane %v3709, %v3714
          %v3717 = vunpack.c.l.s4 1934713408
          %v3718 = vunpack.c.0.s8 %v3717
          %v3719 = vperm.slane %v3711, %v3718
          %v3720 = vrot.slane %v3707, 4
          %v3721 = vsel %vm3440, %v3720, %v3701
          %v3722 = vrot.slane %v3701, 4
          %v3723 = vsel %vm3440, %v3707, %v3722
          %v3725 = vunpack.c.l.s4 1934713408
          %v3726 = vunpack.c.0.s8 %v3725
          %v3727 = vperm.slane %v3721, %v3726
          %v3729 = vunpack.c.l.s4 1934713408
          %v3730 = vunpack.c.0.s8 %v3729
          %v3731 = vperm.slane %v3723, %v3730
          %v3732 = vrot.slane %v3727, 4
          %v3733 = vsel %vm3440, %v3732, %v3715
          %v3734 = vrot.slane %v3715, 4
          %v3735 = vsel %vm3440, %v3727, %v3734
          %v3736 = vrot.slane %v3731, 4
          %v3737 = vsel %vm3440, %v3736, %v3719
          %v3738 = vrot.slane %v3719, 4
          %v3739 = vsel %vm3440, %v3731, %v3738
          %v3740 = vsel %vm3440, %v3680, %v3661
          %v3742 = vunpack.c.l.s4 1983009808
          %v3743 = vunpack.c.0.s8 %v3742
          %v3744 = vperm.slane %v3740, %v3743
          %v3745 = vrot.slane %v3681, 4
          %v3746 = vsel %vm3440, %v3745, %v3679
          %v3748 = vunpack.c.l.s4 1983009808
          %v3749 = vunpack.c.0.s8 %v3748
          %v3750 = vperm.slane %v3746, %v3749
          %v3751 = vsel %vm3440, %v3684, %v3673
          %v3753 = vunpack.c.l.s4 1983009808
          %v3754 = vunpack.c.0.s8 %v3753
          %v3755 = vperm.slane %v3751, %v3754
          %v3756 = vrot.slane %v3685, 4
          %v3757 = vsel %vm3440, %v3756, %v3683
          %v3759 = vunpack.c.l.s4 1983009808
          %v3760 = vunpack.c.0.s8 %v3759
          %v3761 = vperm.slane %v3757, %v3760
          %v3762 = vrot.slane %v3750, 4
          %v3763 = vsel %vm3440, %v3762, %v3744
          %v3764 = vrot.slane %v3744, 4
          %v3765 = vsel %vm3440, %v3750, %v3764
          %v3767 = vunpack.c.l.s4 1934713408
          %v3768 = vunpack.c.0.s8 %v3767
          %v3769 = vperm.slane %v3763, %v3768
          %v3771 = vunpack.c.l.s4 1934713408
          %v3772 = vunpack.c.0.s8 %v3771
          %v3773 = vperm.slane %v3765, %v3772
          %v3774 = vrot.slane %v3761, 4
          %v3775 = vsel %vm3440, %v3774, %v3755
          %v3776 = vrot.slane %v3755, 4
          %v3777 = vsel %vm3440, %v3761, %v3776
          %v3779 = vunpack.c.l.s4 1934713408
          %v3780 = vunpack.c.0.s8 %v3779
          %v3781 = vperm.slane %v3775, %v3780
          %v3783 = vunpack.c.l.s4 1934713408
          %v3784 = vunpack.c.0.s8 %v3783
          %v3785 = vperm.slane %v3777, %v3784
          %v3786 = vrot.slane %v3781, 4
          %v3787 = vsel %vm3440, %v3786, %v3769
          %v3788 = vrot.slane %v3769, 4
          %v3789 = vsel %vm3440, %v3781, %v3788
          %v3790 = vrot.slane %v3785, 4
          %v3791 = vsel %vm3440, %v3790, %v3773
          %v3792 = vrot.slane %v3773, 4
          %v3793 = vsel %vm3440, %v3785, %v3792
          %v3794 = vpack.c.bf16 %v3733, %v3733
          %v3795 = vpack.c.bf16 %v3787, %v3787
          %v3796 = vpack.c.bf16 %v3735, %v3735
          %v3797 = vpack.c.bf16 %v3789, %v3789
          %v3798 = vpack.c.bf16 %v3737, %v3737
          %v3799 = vpack.c.bf16 %v3791, %v3791
          %v3800 = vpack.c.bf16 %v3739, %v3739
          %v3801 = vpack.c.bf16 %v3793, %v3793
          %3802 = vrot.lane.b32.xlu0 %v3425, 96
          %v3803 = vpop.permute.xlu0 %3802
          %3804 = vrot.lane.b32.xlu0 %v3427, 96
          %v3805 = vpop.permute.xlu0 %3804
          %3806 = vrot.lane.b32.xlu0 %v3557, 96
          %v3807 = vpop.permute.xlu0 %3806
          %3808 = vrot.lane.b32.xlu0 %v3559, 96
          %v3809 = vpop.permute.xlu0 %3808
          %3810 = vrot.lane.b32.xlu0 %v3563, 96
          %v3811 = vpop.permute.xlu0 %3810
          %3812 = vrot.lane.b32.xlu0 %v3565, 96
          %v3813 = vpop.permute.xlu0 %3812
          %3814 = vrot.lane.b32.xlu0 %v3569, 96
          %v3815 = vpop.permute.xlu0 %3814
          %3816 = vrot.lane.b32.xlu0 %v3571, 96
          %v3817 = vpop.permute.xlu0 %3816
          %v3826 = vrot.slane %v3811, 4
          %v3827 = vsel %vm3440, %v3826, %v3803
          %v3828 = vrot.slane %v3803, 4
          %v3829 = vsel %vm3440, %v3811, %v3828
          %v3831 = vunpack.c.l.s4 1983009808
          %v3832 = vunpack.c.0.s8 %v3831
          %v3833 = vperm.slane %v3827, %v3832
          %v3835 = vunpack.c.l.s4 1983009808
          %v3836 = vunpack.c.0.s8 %v3835
          %v3837 = vperm.slane %v3829, %v3836
          %v3838 = vrot.slane %v3815, 4
          %v3839 = vsel %vm3440, %v3838, %v3807
          %v3840 = vrot.slane %v3807, 4
          %v3841 = vsel %vm3440, %v3815, %v3840
          %v3843 = vunpack.c.l.s4 1983009808
          %v3844 = vunpack.c.0.s8 %v3843
          %v3845 = vperm.slane %v3839, %v3844
          %v3847 = vunpack.c.l.s4 1983009808
          %v3848 = vunpack.c.0.s8 %v3847
          %v3849 = vperm.slane %v3841, %v3848
          %v3850 = vrot.slane %v3845, 4
          %v3851 = vsel %vm3440, %v3850, %v3833
          %v3852 = vrot.slane %v3833, 4
          %v3853 = vsel %vm3440, %v3845, %v3852
          %v3855 = vunpack.c.l.s4 1934713408
          %v3856 = vunpack.c.0.s8 %v3855
          %v3857 = vperm.slane %v3851, %v3856
          %v3859 = vunpack.c.l.s4 1934713408
          %v3860 = vunpack.c.0.s8 %v3859
          %v3861 = vperm.slane %v3853, %v3860
          %v3862 = vrot.slane %v3849, 4
          %v3863 = vsel %vm3440, %v3862, %v3837
          %v3864 = vrot.slane %v3837, 4
          %v3865 = vsel %vm3440, %v3849, %v3864
          %v3867 = vunpack.c.l.s4 1934713408
          %v3868 = vunpack.c.0.s8 %v3867
          %v3869 = vperm.slane %v3863, %v3868
          %v3871 = vunpack.c.l.s4 1934713408
          %v3872 = vunpack.c.0.s8 %v3871
          %v3873 = vperm.slane %v3865, %v3872
          %v3874 = vrot.slane %v3857, 4
          %v3875 = vsel %vm3440, 0.0, %v3874
          %v3876 = vrot.slane %v3861, 4
          %v3877 = vsel %vm3440, 0.0, %v3876
          %v3878 = vrot.slane %v3869, 4
          %v3879 = vsel %vm3440, 0.0, %v3878
          %v3880 = vrot.slane %v3873, 4
          %v3881 = vsel %vm3440, 0.0, %v3880
          %v3882 = vrot.slane %v3813, 4
          %v3883 = vsel %vm3440, %v3882, %v3805
          %v3884 = vrot.slane %v3805, 4
          %v3885 = vsel %vm3440, %v3813, %v3884
          %v3887 = vunpack.c.l.s4 1983009808
          %v3888 = vunpack.c.0.s8 %v3887
          %v3889 = vperm.slane %v3883, %v3888
          %v3891 = vunpack.c.l.s4 1983009808
          %v3892 = vunpack.c.0.s8 %v3891
          %v3893 = vperm.slane %v3885, %v3892
          %v3894 = vrot.slane %v3817, 4
          %v3895 = vsel %vm3440, %v3894, %v3809
          %v3896 = vrot.slane %v3809, 4
          %v3897 = vsel %vm3440, %v3817, %v3896
          %v3899 = vunpack.c.l.s4 1983009808
          %v3900 = vunpack.c.0.s8 %v3899
          %v3901 = vperm.slane %v3895, %v3900
          %v3903 = vunpack.c.l.s4 1983009808
          %v3904 = vunpack.c.0.s8 %v3903
          %v3905 = vperm.slane %v3897, %v3904
          %v3906 = vrot.slane %v3901, 4
          %v3907 = vsel %vm3440, %v3906, %v3889
          %v3908 = vrot.slane %v3889, 4
          %v3909 = vsel %vm3440, %v3901, %v3908
          %v3911 = vunpack.c.l.s4 1934713408
          %v3912 = vunpack.c.0.s8 %v3911
          %v3913 = vperm.slane %v3907, %v3912
          %v3915 = vunpack.c.l.s4 1934713408
          %v3916 = vunpack.c.0.s8 %v3915
          %v3917 = vperm.slane %v3909, %v3916
          %v3918 = vrot.slane %v3905, 4
          %v3919 = vsel %vm3440, %v3918, %v3893
          %v3920 = vrot.slane %v3893, 4
          %v3921 = vsel %vm3440, %v3905, %v3920
          %v3923 = vunpack.c.l.s4 1934713408
          %v3924 = vunpack.c.0.s8 %v3923
          %v3925 = vperm.slane %v3919, %v3924
          %v3927 = vunpack.c.l.s4 1934713408
          %v3928 = vunpack.c.0.s8 %v3927
          %v3929 = vperm.slane %v3921, %v3928
          %v3930 = vrot.slane %v3913, 4
          %v3931 = vsel %vm3440, 0.0, %v3930
          %v3932 = vrot.slane %v3917, 4
          %v3933 = vsel %vm3440, 0.0, %v3932
          %v3934 = vrot.slane %v3925, 4
          %v3935 = vsel %vm3440, 0.0, %v3934
          %v3936 = vrot.slane %v3929, 4
          %v3937 = vsel %vm3440, 0.0, %v3936
          %v3938 = vsel %vm3440, %v3876, %v3857
          %v3940 = vunpack.c.l.s4 1983009808
          %v3941 = vunpack.c.0.s8 %v3940
          %v3942 = vperm.slane %v3938, %v3941
          %v3943 = vrot.slane %v3877, 4
          %v3944 = vsel %vm3440, %v3943, %v3875
          %v3946 = vunpack.c.l.s4 1983009808
          %v3947 = vunpack.c.0.s8 %v3946
          %v3948 = vperm.slane %v3944, %v3947
          %v3949 = vsel %vm3440, %v3880, %v3869
          %v3951 = vunpack.c.l.s4 1983009808
          %v3952 = vunpack.c.0.s8 %v3951
          %v3953 = vperm.slane %v3949, %v3952
          %v3954 = vrot.slane %v3881, 4
          %v3955 = vsel %vm3440, %v3954, %v3879
          %v3957 = vunpack.c.l.s4 1983009808
          %v3958 = vunpack.c.0.s8 %v3957
          %v3959 = vperm.slane %v3955, %v3958
          %v3960 = vrot.slane %v3948, 4
          %v3961 = vsel %vm3440, %v3960, %v3942
          %v3962 = vrot.slane %v3942, 4
          %v3963 = vsel %vm3440, %v3948, %v3962
          %v3965 = vunpack.c.l.s4 1934713408
          %v3966 = vunpack.c.0.s8 %v3965
          %v3967 = vperm.slane %v3961, %v3966
          %v3969 = vunpack.c.l.s4 1934713408
          %v3970 = vunpack.c.0.s8 %v3969
          %v3971 = vperm.slane %v3963, %v3970
          %v3972 = vrot.slane %v3959, 4
          %v3973 = vsel %vm3440, %v3972, %v3953
          %v3974 = vrot.slane %v3953, 4
          %v3975 = vsel %vm3440, %v3959, %v3974
          %v3977 = vunpack.c.l.s4 1934713408
          %v3978 = vunpack.c.0.s8 %v3977
          %v3979 = vperm.slane %v3973, %v3978
          %v3981 = vunpack.c.l.s4 1934713408
          %v3982 = vunpack.c.0.s8 %v3981
          %v3983 = vperm.slane %v3975, %v3982
          %v3984 = vrot.slane %v3979, 4
          %v3985 = vsel %vm3440, %v3984, %v3967
          %v3986 = vrot.slane %v3967, 4
          %v3987 = vsel %vm3440, %v3979, %v3986
          %v3988 = vrot.slane %v3983, 4
          %v3989 = vsel %vm3440, %v3988, %v3971
          %v3990 = vrot.slane %v3971, 4
          %v3991 = vsel %vm3440, %v3983, %v3990
          %v3992 = vsel %vm3440, %v3932, %v3913
          %v3994 = vunpack.c.l.s4 1983009808
          %v3995 = vunpack.c.0.s8 %v3994
          %v3996 = vperm.slane %v3992, %v3995
          %v3997 = vrot.slane %v3933, 4
          %v3998 = vsel %vm3440, %v3997, %v3931
          %v4000 = vunpack.c.l.s4 1983009808
          %v4001 = vunpack.c.0.s8 %v4000
          %v4002 = vperm.slane %v3998, %v4001
          %v4003 = vsel %vm3440, %v3936, %v3925
          %v4005 = vunpack.c.l.s4 1983009808
          %v4006 = vunpack.c.0.s8 %v4005
          %v4007 = vperm.slane %v4003, %v4006
          %v4008 = vrot.slane %v3937, 4
          %v4009 = vsel %vm3440, %v4008, %v3935
          %v4011 = vunpack.c.l.s4 1983009808
          %v4012 = vunpack.c.0.s8 %v4011
          %v4013 = vperm.slane %v4009, %v4012
          %v4014 = vrot.slane %v4002, 4
          %v4015 = vsel %vm3440, %v4014, %v3996
          %v4016 = vrot.slane %v3996, 4
          %v4017 = vsel %vm3440, %v4002, %v4016
          %v4019 = vunpack.c.l.s4 1934713408
          %v4020 = vunpack.c.0.s8 %v4019
          %v4021 = vperm.slane %v4015, %v4020
          %v4023 = vunpack.c.l.s4 1934713408
          %v4024 = vunpack.c.0.s8 %v4023
          %v4025 = vperm.slane %v4017, %v4024
          %v4026 = vrot.slane %v4013, 4
          %v4027 = vsel %vm3440, %v4026, %v4007
          %v4028 = vrot.slane %v4007, 4
          %v4029 = vsel %vm3440, %v4013, %v4028
          %v4031 = vunpack.c.l.s4 1934713408
          %v4032 = vunpack.c.0.s8 %v4031
          %v4033 = vperm.slane %v4027, %v4032
          %v4035 = vunpack.c.l.s4 1934713408
          %v4036 = vunpack.c.0.s8 %v4035
          %v4037 = vperm.slane %v4029, %v4036
          %v4038 = vrot.slane %v4033, 4
          %v4039 = vsel %vm3440, %v4038, %v4021
          %v4040 = vrot.slane %v4021, 4
          %v4041 = vsel %vm3440, %v4033, %v4040
          %v4042 = vrot.slane %v4037, 4
          %v4043 = vsel %vm3440, %v4042, %v4025
          %v4044 = vrot.slane %v4025, 4
          %v4045 = vsel %vm3440, %v4037, %v4044
          %v4046 = vpack.c.bf16 %v3985, %v3985
          %v4047 = vpack.c.bf16 %v4039, %v4039
          %v4048 = vpack.c.bf16 %v3987, %v3987
          %v4049 = vpack.c.bf16 %v4041, %v4041
          %v4050 = vpack.c.bf16 %v3989, %v3989
          %v4051 = vpack.c.bf16 %v4043, %v4043
          %v4052 = vpack.c.bf16 %v3991, %v3991
          %v4053 = vpack.c.bf16 %v4045, %v4045
          %v4056 = vunpack.c.l.b16 %v3794
          %v4057 = vunpack.c.l.b16 %v3795
          %v4058 = vpack.c.b16 %v4057, %v4056
          %vm4059 = vcmask 64512
          %v4061 = vsel %vm4059, %v3550, 0
          %v4064 = vsel %vm4059, %v4058, 0
          %4066 = vmatpush.bf16.xpose.msra.mxu0 0
          %4067 = vmatpush.bf16.xpose.msra.mxu0 0
          %4068 = vmatpush.bf16.xpose.msra.mxu0 0
          %4069 = vmatpush.bf16.xpose.msra.mxu0 0
          %4070 = vmatpush.bf16.xpose.msra.mxu0 0
          %4071 = vmatpush.bf16.xpose.msra.mxu0 0
          %4072 = vmatpush.bf16.xpose.msra.mxu0 0
          %4073 = vmatpush.bf16.xpose.msra.mxu0 %v4064
          %4074 = vmatmul.bf16.gmra.mxu0 %v4061
          %v4075 = vpop.f32.mrf.mxu0
          %v4076 = vadd.f32 0.0, %v4075
          %v4077 = vpop.f32.mrf.mxu0
          %4078 = vdwg.mxu0
          %v4081 = vunpack.c.l.b16 %v3796
          %v4082 = vunpack.c.l.b16 %v3797
          %v4083 = vpack.c.b16 %v4082, %v4081
          %v4085 = vsel %vm4059, %v3551, 0
          %v4088 = vsel %vm4059, %v4083, 0
          %4090 = vmatpush.bf16.xpose.msra.mxu0 0
          %4091 = vmatpush.bf16.xpose.msra.mxu0 0
          %4092 = vmatpush.bf16.xpose.msra.mxu0 0
          %4093 = vmatpush.bf16.xpose.msra.mxu0 0
          %4094 = vmatpush.bf16.xpose.msra.mxu0 0
          %4095 = vmatpush.bf16.xpose.msra.mxu0 0
          %4096 = vmatpush.bf16.xpose.msra.mxu0 0
          %4097 = vmatpush.bf16.xpose.msra.mxu0 %v4088
          %4098 = vmatmul.bf16.gmra.mxu0 %v4085
          %v4099 = vpop.f32.mrf.mxu0
          %v4100 = vadd.f32 0.0, %v4099
          %v4101 = vpop.f32.mrf.mxu0
          %4102 = vdwg.mxu0
          %v4105 = vunpack.c.l.b16 %v3798
          %v4106 = vunpack.c.l.b16 %v3799
          %v4107 = vpack.c.b16 %v4106, %v4105
          %v4109 = vsel %vm4059, %v3552, 0
          %v4112 = vsel %vm4059, %v4107, 0
          %4114 = vmatpush.bf16.xpose.msra.mxu0 0
          %4115 = vmatpush.bf16.xpose.msra.mxu0 0
          %4116 = vmatpush.bf16.xpose.msra.mxu0 0
          %4117 = vmatpush.bf16.xpose.msra.mxu0 0
          %4118 = vmatpush.bf16.xpose.msra.mxu0 0
          %4119 = vmatpush.bf16.xpose.msra.mxu0 0
          %4120 = vmatpush.bf16.xpose.msra.mxu0 0
          %4121 = vmatpush.bf16.xpose.msra.mxu0 %v4112
          %4122 = vmatmul.bf16.gmra.mxu0 %v4109
          %v4123 = vpop.f32.mrf.mxu0
          %v4124 = vadd.f32 0.0, %v4123
          %v4125 = vpop.f32.mrf.mxu0
          %4126 = vdwg.mxu0
          %v4129 = vunpack.c.l.b16 %v3800
          %v4130 = vunpack.c.l.b16 %v3801
          %v4131 = vpack.c.b16 %v4130, %v4129
          %v4133 = vsel %vm4059, %v3553, 0
          %v4136 = vsel %vm4059, %v4131, 0
          %4138 = vmatpush.bf16.xpose.msra.mxu0 0
          %4139 = vmatpush.bf16.xpose.msra.mxu0 0
          %4140 = vmatpush.bf16.xpose.msra.mxu0 0
          %4141 = vmatpush.bf16.xpose.msra.mxu0 0
          %4142 = vmatpush.bf16.xpose.msra.mxu0 0
          %4143 = vmatpush.bf16.xpose.msra.mxu0 0
          %4144 = vmatpush.bf16.xpose.msra.mxu0 0
          %4145 = vmatpush.bf16.xpose.msra.mxu0 %v4136
          %4146 = vmatmul.bf16.gmra.mxu0 %v4133
          %v4147 = vpop.f32.mrf.mxu0
          %v4148 = vadd.f32 0.0, %v4147
          %v4149 = vpop.f32.mrf.mxu0
          %4150 = vdwg.mxu0
          %vm4151 = vcmask 130048
          %v4152 = vsel %vm4151, %v4076, -inf
          %4153 = vmax.xlane.f32.xlu0 %v4152
          %v4154 = vpop.xlane.xlu0 %4153
          %v4155 = vsel %vm4151, %v4100, -inf
          %4156 = vmax.xlane.f32.xlu0 %v4155
          %v4157 = vpop.xlane.xlu0 %4156
          %v4158 = vsel %vm4151, %v4124, -inf
          %4159 = vmax.xlane.f32.xlu0 %v4158
          %v4160 = vpop.xlane.xlu0 %4159
          %v4161 = vsel %vm4151, %v4148, -inf
          %4162 = vmax.xlane.f32.xlu0 %v4161
          %v4163 = vpop.xlane.xlu0 %4162
          %v4164 = vsub.f32 -inf, %v4154
          %v4165 = vsub.f32 -inf, %v4157
          %v4166 = vsub.f32 -inf, %v4160
          %v4167 = vsub.f32 -inf, %v4163
          %v4168 = vmul.f32 %v4164, 1.442695
          %v4169 = vpow.pop %v4168
          %v4170 = vmul.f32 %v4165, 1.442695
          %v4171 = vpow.pop %v4170
          %v4172 = vmul.f32 %v4166, 1.442695
          %v4173 = vpow.pop %v4172
          %v4174 = vmul.f32 %v4167, 1.442695
          %v4175 = vpow.pop %v4174
          %v4176 = vsub.f32 %v4076, %v4154
          %v4177 = vsub.f32 %v4100, %v4157
          %v4178 = vsub.f32 %v4124, %v4160
          %v4179 = vsub.f32 %v4148, %v4163
          %v4180 = vmul.f32 %v4176, 1.442695
          %v4181 = vpow.pop %v4180
          %v4182 = vmul.f32 %v4177, 1.442695
          %v4183 = vpow.pop %v4182
          %v4184 = vmul.f32 %v4178, 1.442695
          %v4185 = vpow.pop %v4184
          %v4186 = vmul.f32 %v4179, 1.442695
          %v4187 = vpow.pop %v4186
          %v4188 = vmul.f32 %v4169, 0.0
          %v4189 = vmul.f32 %v4171, 0.0
          %v4190 = vmul.f32 %v4173, 0.0
          %v4191 = vmul.f32 %v4175, 0.0
          %v4192 = vsel %vm4151, %v4181, 0.0
          %4193 = vadd.xlane.f32.xlu0 %v4192
          %v4194 = vpop.xlane.xlu0 %4193
          %v4195 = vsel %vm4151, %v4183, 0.0
          %4196 = vadd.xlane.f32.xlu0 %v4195
          %v4197 = vpop.xlane.xlu0 %4196
          %v4198 = vsel %vm4151, %v4185, 0.0
          %4199 = vadd.xlane.f32.xlu0 %v4198
          %v4200 = vpop.xlane.xlu0 %4199
          %v4201 = vsel %vm4151, %v4187, 0.0
          %4202 = vadd.xlane.f32.xlu0 %v4201
          %v4203 = vpop.xlane.xlu0 %4202
          %v4204 = vadd.f32 %v4188, %v4194
          %v4205 = vadd.f32 %v4189, %v4197
          %v4206 = vadd.f32 %v4190, %v4200
          %v4207 = vadd.f32 %v4191, %v4203
          %v4208 = vpack.c.bf16 %v4181, %v4181
          %v4209 = vpack.c.bf16 %v4183, %v4183
          %v4210 = vpack.c.bf16 %v4185, %v4185
          %v4211 = vpack.c.bf16 %v4187, %v4187
          %v4214 = vunpack.c.l.b16 %v4046
          %v4215 = vunpack.c.l.b16 %v4047
          %v4216 = vpack.c.b16 %v4215, %v4214
          %v4219 = vsel %vm4151, %v4208, 0
          %4221 = vmatpush.bf16.msra.mxu0 0
          %4222 = vmatpush.bf16.msra.mxu0 0
          %4223 = vmatpush.bf16.msra.mxu0 0
          %4224 = vmatpush.bf16.msra.mxu0 0
          %4225 = vmatpush.bf16.msra.mxu0 0
          %4226 = vmatpush.bf16.msra.mxu0 0
          %4227 = vmatpush.bf16.msra.mxu0 0
          %4228 = vmatpush.bf16.msra.mxu0 %v4216
          %4229 = vmatmul.bf16.gmra.mxu0 %v4219
          %v4230 = vpop.f32.mrf.mxu0
          %v4231 = vadd.f32 0.0, %v4230
          %v4232 = vpop.f32.mrf.mxu0
          %4233 = vdwg.mxu0
          %v4236 = vunpack.c.l.b16 %v4048
          %v4237 = vunpack.c.l.b16 %v4049
          %v4238 = vpack.c.b16 %v4237, %v4236
          %v4241 = vsel %vm4151, %v4209, 0
          %4243 = vmatpush.bf16.msra.mxu0 0
          %4244 = vmatpush.bf16.msra.mxu0 0
          %4245 = vmatpush.bf16.msra.mxu0 0
          %4246 = vmatpush.bf16.msra.mxu0 0
          %4247 = vmatpush.bf16.msra.mxu0 0
          %4248 = vmatpush.bf16.msra.mxu0 0
          %4249 = vmatpush.bf16.msra.mxu0 0
          %4250 = vmatpush.bf16.msra.mxu0 %v4238
          %4251 = vmatmul.bf16.gmra.mxu0 %v4241
          %v4252 = vpop.f32.mrf.mxu0
          %v4253 = vadd.f32 0.0, %v4252
          %v4254 = vpop.f32.mrf.mxu0
          %4255 = vdwg.mxu0
          %v4258 = vunpack.c.l.b16 %v4050
          %v4259 = vunpack.c.l.b16 %v4051
          %v4260 = vpack.c.b16 %v4259, %v4258
          %v4263 = vsel %vm4151, %v4210, 0
          %4265 = vmatpush.bf16.msra.mxu0 0
          %4266 = vmatpush.bf16.msra.mxu0 0
          %4267 = vmatpush.bf16.msra.mxu0 0
          %4268 = vmatpush.bf16.msra.mxu0 0
          %4269 = vmatpush.bf16.msra.mxu0 0
          %4270 = vmatpush.bf16.msra.mxu0 0
          %4271 = vmatpush.bf16.msra.mxu0 0
          %4272 = vmatpush.bf16.msra.mxu0 %v4260
          %4273 = vmatmul.bf16.gmra.mxu0 %v4263
          %v4274 = vpop.f32.mrf.mxu0
          %v4275 = vadd.f32 0.0, %v4274
          %v4276 = vpop.f32.mrf.mxu0
          %4277 = vdwg.mxu0
          %v4280 = vunpack.c.l.b16 %v4052
          %v4281 = vunpack.c.l.b16 %v4053
          %v4282 = vpack.c.b16 %v4281, %v4280
          %v4285 = vsel %vm4151, %v4211, 0
          %4287 = vmatpush.bf16.msra.mxu0 0
          %4288 = vmatpush.bf16.msra.mxu0 0
          %4289 = vmatpush.bf16.msra.mxu0 0
          %4290 = vmatpush.bf16.msra.mxu0 0
          %4291 = vmatpush.bf16.msra.mxu0 0
          %4292 = vmatpush.bf16.msra.mxu0 0
          %4293 = vmatpush.bf16.msra.mxu0 0
          %4294 = vmatpush.bf16.msra.mxu0 %v4282
          %4295 = vmatmul.bf16.gmra.mxu0 %v4285
          %v4296 = vpop.f32.mrf.mxu0
          %v4297 = vadd.f32 0.0, %v4296
          %v4298 = vpop.f32.mrf.mxu0
          %4299 = vdwg.mxu0
          %v4300 = vadd.f32 %v4188, %v4231
          %v4301 = vadd.f32 %v4189, %v4253
          %v4302 = vadd.f32 %v4190, %v4275
          %v4303 = vadd.f32 %v4191, %v4297
          %v4304 = vrcp.pop %v4204
          %v4305 = vrcp.pop %v4205
          %v4306 = vrcp.pop %v4206
          %v4307 = vrcp.pop %v4207
          %v4308 = vmul.f32 %v4300, %v4304
          %v4309 = vmul.f32 %v4301, %v4305
          %v4310 = vmul.f32 %v4302, %v4306
          %v4311 = vmul.f32 %v4303, %v4307
          %v4312 = vrot.slane %v4310, 4
          %v4313 = vsel %vm3440, %v4312, %v4308
          %v4314 = vrot.slane %v4308, 4
          %v4315 = vsel %vm3440, %v4310, %v4314
          %v4317 = vunpack.c.l.s4 1983009808
          %v4318 = vunpack.c.0.s8 %v4317
          %v4319 = vperm.slane %v4313, %v4318
          %v4321 = vunpack.c.l.s4 1983009808
          %v4322 = vunpack.c.0.s8 %v4321
          %v4323 = vperm.slane %v4315, %v4322
          %v4324 = vrot.slane %v4311, 4
          %v4325 = vsel %vm3440, %v4324, %v4309
          %v4326 = vrot.slane %v4309, 4
          %v4327 = vsel %vm3440, %v4311, %v4326
          %v4329 = vunpack.c.l.s4 1983009808
          %v4330 = vunpack.c.0.s8 %v4329
          %v4331 = vperm.slane %v4325, %v4330
          %v4333 = vunpack.c.l.s4 1983009808
          %v4334 = vunpack.c.0.s8 %v4333
          %v4335 = vperm.slane %v4327, %v4334
          %v4336 = vrot.slane %v4331, 4
          %v4337 = vsel %vm3440, %v4336, %v4319
          %v4338 = vrot.slane %v4319, 4
          %v4339 = vsel %vm3440, %v4331, %v4338
          %v4341 = vunpack.c.l.s4 1934713408
          %v4342 = vunpack.c.0.s8 %v4341
          %v4343 = vperm.slane %v4337, %v4342
          %v4345 = vunpack.c.l.s4 1934713408
          %v4346 = vunpack.c.0.s8 %v4345
          %v4347 = vperm.slane %v4339, %v4346
          %v4348 = vrot.slane %v4335, 4
          %v4349 = vsel %vm3440, %v4348, %v4323
          %v4350 = vrot.slane %v4323, 4
          %v4351 = vsel %vm3440, %v4335, %v4350
          %v4353 = vunpack.c.l.s4 1934713408
          %v4354 = vunpack.c.0.s8 %v4353
          %v4355 = vperm.slane %v4349, %v4354
          %v4357 = vunpack.c.l.s4 1934713408
          %v4358 = vunpack.c.0.s8 %v4357
          %v4359 = vperm.slane %v4351, %v4358
          %v4360 = vrot.slane %v4343, 4
          %v4361 = vsel %vm3440, 0.0, %v4360
          %v4362 = vrot.slane %v4347, 4
          %v4363 = vsel %vm3440, 0.0, %v4362
          %v4364 = vrot.slane %v4355, 4
          %v4365 = vsel %vm3440, 0.0, %v4364
          %v4366 = vrot.slane %v4359, 4
          %v4367 = vsel %vm3440, 0.0, %v4366
          %v4368 = vsel %vm3440, %v4362, %v4343
          %v4370 = vunpack.c.l.s4 1983009808
          %v4371 = vunpack.c.0.s8 %v4370
          %v4372 = vperm.slane %v4368, %v4371
          %v4373 = vrot.slane %v4363, 4
          %v4374 = vsel %vm3440, %v4373, %v4361
          %v4376 = vunpack.c.l.s4 1983009808
          %v4377 = vunpack.c.0.s8 %v4376
          %v4378 = vperm.slane %v4374, %v4377
          %v4379 = vsel %vm3440, %v4366, %v4355
          %v4381 = vunpack.c.l.s4 1983009808
          %v4382 = vunpack.c.0.s8 %v4381
          %v4383 = vperm.slane %v4379, %v4382
          %v4384 = vrot.slane %v4367, 4
          %v4385 = vsel %vm3440, %v4384, %v4365
          %v4387 = vunpack.c.l.s4 1983009808
          %v4388 = vunpack.c.0.s8 %v4387
          %v4389 = vperm.slane %v4385, %v4388
          %v4390 = vrot.slane %v4378, 4
          %v4391 = vsel %vm3440, %v4390, %v4372
          %v4392 = vrot.slane %v4372, 4
          %v4393 = vsel %vm3440, %v4378, %v4392
          %v4395 = vunpack.c.l.s4 1934713408
          %v4396 = vunpack.c.0.s8 %v4395
          %v4397 = vperm.slane %v4391, %v4396
          %v4399 = vunpack.c.l.s4 1934713408
          %v4400 = vunpack.c.0.s8 %v4399
          %v4401 = vperm.slane %v4393, %v4400
          %v4402 = vrot.slane %v4389, 4
          %v4403 = vsel %vm3440, %v4402, %v4383
          %v4404 = vrot.slane %v4383, 4
          %v4405 = vsel %vm3440, %v4389, %v4404
          %v4407 = vunpack.c.l.s4 1934713408
          %v4408 = vunpack.c.0.s8 %v4407
          %v4409 = vperm.slane %v4403, %v4408
          %v4411 = vunpack.c.l.s4 1934713408
          %v4412 = vunpack.c.0.s8 %v4411
          %v4413 = vperm.slane %v4405, %v4412
          %v4414 = vrot.slane %v4409, 4
          %v4415 = vsel %vm3440, %v4414, %v4397
          %v4416 = vrot.slane %v4397, 4
          %v4417 = vsel %vm3440, %v4409, %v4416
          %v4418 = vrot.slane %v4413, 4
          %v4419 = vsel %vm3440, %v4418, %v4401
          %v4420 = vrot.slane %v4401, 4
          %v4421 = vsel %vm3440, %v4413, %v4420
          %4423 = vrot.lane.b32.xlu0 %v4417, 8
          %v4424 = vpop.permute.xlu0 %4423
          %4427 = vrot.lane.b32.xlu0 %v4419, 16
          %v4428 = vpop.permute.xlu0 %4427
          %4431 = vrot.lane.b32.xlu0 %v4421, 24
          %v4432 = vpop.permute.xlu0 %4431
          %v4434 = vsel %vm4059, %v4415, %v4424
          %v4435 = vsel %vm4151, %v4434, %v4428
          %vm4436 = vcmask 195584
          %v4437 = vsel %vm4436, %v4435, %v4432
          %v4438 = vpack.c.bf16 %v4437, %v4437
          %v4440 = vperm.slane %v838, 0
          %v4446 = vunpack.c.l.b16 %v834
          %v4447 = vunpack.c.l.b16 %v835
          %v4448 = vunpack.c.l.b16 %v836
          %v4449 = vunpack.c.l.b16 %v837
          %v4450 = vpack.c.b16 %v4447, %v4446
          %v4451 = vpack.c.b16 %v4449, %v4448
          %v4455 = vsel %vm3386, %v4438, 0
          %4457 = vmatpush.bf16.msra.mxu0 0
          %4458 = vmatpush.bf16.msra.mxu0 0
          %4459 = vmatpush.bf16.msra.mxu0 0
          %4460 = vmatpush.bf16.msra.mxu0 0
          %4461 = vmatpush.bf16.msra.mxu0 0
          %4462 = vmatpush.bf16.msra.mxu0 0
          %4463 = vmatpush.bf16.msra.mxu0 %v4451
          %4464 = vmatpush.bf16.msra.mxu0 %v4450
          %4465 = vmatmul.bf16.gmra.mxu0 %v4455
          %v4466 = vpop.f32.mrf.mxu0
          %v4467 = vadd.f32 %v4440, %v4466
          %v4468 = vpop.f32.mrf.mxu0
          %4469 = vdwg.mxu0
          %v4470 = vadd.f32 %v4467, %v3366
          %v4471 = vsel %vm3386, %v4470, 0.0
          %4472 = vadd.xlane.f32.xlu0 %v4471
          %v4473 = vpop.xlane.xlu0 %4472
          %v4474 = vrcp.pop 32.0
          %v4475 = vmul.f32 32.0, %v4474
          %v4476 = vsub.f32 1.0, %v4475
          %v4477 = vmul.f32 %v4474, %v4476
          %v4478 = vadd.f32 %v4474, %v4477
          %vm4479 = vweird.f32 %v4474
          %v4480 = vsel %vm4479, %v4474, %v4478
          %v4481 = vmul.f32 %v4473, %v4480
          %v4482 = vsub.f32 %v4470, %v4481
          %v4483 = vmul.f32 %v4482, %v4482
          %v4484 = vsel %vm3386, %v4483, 0.0
          %4485 = vadd.xlane.f32.xlu0 %v4484
          %v4486 = vpop.xlane.xlu0 %4485
          %v4487 = vmul.f32 %v4486, %v4480
          %v4488 = vadd.f32 %v4487, 1e-05
          %v4489 = vrsqrt.pop %v4488
          %v4490 = vmul.f32 %v4489, %v4488
          %v4491 = vmul.f32 %v4490, %v4489
          %v4492 = vmul.f32 0.5, %v4491
          %v4493 = vsub.f32 1.5, %v4492
          %v4494 = vmul.f32 %v4489, %v4493
          %vm4495 = vweird.f32 %v4488
          %vm4496 = vweird.f32 %v4489
          %vm4497 = vmor %vm4495, %vm4496
          %v4498 = vsel %vm4497, %v4489, %v4494
          %v4499 = vmul.f32 %v4482, %v4498
          %v4501 = vperm.slane %v839, 0
          %v4503 = vmul.f32 %v4499, %v4501
          %v4505 = vperm.slane %v840, 0
          %v4507 = vadd.f32 %v4503, %v4505
          %v4508 = vpack.c.bf16 %v4507, %v4507
          %v4510 = vperm.slane %v845, 0
          %v4516 = vunpack.c.l.b16 %v841
          %v4517 = vunpack.c.l.b16 %v842
          %v4518 = vunpack.c.l.b16 %v843
          %v4519 = vunpack.c.l.b16 %v844
          %v4520 = vpack.c.b16 %v4517, %v4516
          %v4521 = vpack.c.b16 %v4519, %v4518
          %v4525 = vsel %vm3386, %v4508, 0
          %4527 = vmatpush.bf16.msra.mxu0 0
          %4528 = vmatpush.bf16.msra.mxu0 0
          %4529 = vmatpush.bf16.msra.mxu0 0
          %4530 = vmatpush.bf16.msra.mxu0 0
          %4531 = vmatpush.bf16.msra.mxu0 0
          %4532 = vmatpush.bf16.msra.mxu0 0
          %4533 = vmatpush.bf16.msra.mxu0 %v4521
          %4534 = vmatpush.bf16.msra.mxu0 %v4520
          %4535 = vmatmul.bf16.gmra.mxu0 %v4525
          %v4536 = vpop.f32.mrf.mxu0
          %v4537 = vadd.f32 %v4510, %v4536
          %v4538 = vpop.f32.mrf.mxu0
          %4539 = vdwg.mxu0
          %v4540 = vmax.f32 %v4537, 0.0
          %v4541 = vpack.c.bf16 %v4540, %v4540
          %v4543 = vperm.slane %v854, 0
          %v4553 = vunpack.c.l.b16 %v846
          %v4554 = vunpack.c.l.b16 %v847
          %v4555 = vunpack.c.l.b16 %v848
          %v4556 = vunpack.c.l.b16 %v849
          %v4557 = vunpack.c.l.b16 %v850
          %v4558 = vunpack.c.l.b16 %v851
          %v4559 = vunpack.c.l.b16 %v852
          %v4560 = vunpack.c.l.b16 %v853
          %v4561 = vpack.c.b16 %v4554, %v4553
          %v4562 = vpack.c.b16 %v4556, %v4555
          %v4563 = vpack.c.b16 %v4558, %v4557
          %v4564 = vpack.c.b16 %v4560, %v4559
          %vm4569 = vcmask 523264
          %v4571 = vsel %vm4569, %v4541, 0
          %4573 = vmatpush.bf16.msra.mxu0 0
          %4574 = vmatpush.bf16.msra.mxu0 0
          %4575 = vmatpush.bf16.msra.mxu0 0
          %4576 = vmatpush.bf16.msra.mxu0 0
          %4577 = vmatpush.bf16.msra.mxu0 %v4564
          %4578 = vmatpush.bf16.msra.mxu0 %v4563
          %4579 = vmatpush.bf16.msra.mxu0 %v4562
          %4580 = vmatpush.bf16.msra.mxu0 %v4561
          %4581 = vmatmul.bf16.gmra.mxu0 %v4571
          %v4582 = vpop.f32.mrf.mxu0
          %v4583 = vadd.f32 %v4543, %v4582
          %v4584 = vpop.f32.mrf.mxu0
          %4585 = vdwg.mxu0
          %v4586 = vadd.f32 %v4507, %v4583
          %v4587 = vsel %vm3386, %v4586, 0.0
          %4588 = vadd.xlane.f32.xlu0 %v4587
          %v4589 = vpop.xlane.xlu0 %4588
          %v4590 = vmul.f32 %v4589, %v4480
          %v4591 = vsub.f32 %v4586, %v4590
          %v4592 = vmul.f32 %v4591, %v4591
          %v4593 = vsel %vm3386, %v4592, 0.0
          %4594 = vadd.xlane.f32.xlu0 %v4593
          %v4595 = vpop.xlane.xlu0 %4594
          %v4596 = vmul.f32 %v4595, %v4480
          %v4597 = vadd.f32 %v4596, 1e-05
          %v4598 = vrsqrt.pop %v4597
          %v4599 = vmul.f32 %v4598, %v4597
          %v4600 = vmul.f32 %v4599, %v4598
          %v4601 = vmul.f32 0.5, %v4600
          %v4602 = vsub.f32 1.5, %v4601
          %v4603 = vmul.f32 %v4598, %v4602
          %vm4604 = vweird.f32 %v4597
          %vm4605 = vweird.f32 %v4598
          %vm4606 = vmor %vm4604, %vm4605
          %v4607 = vsel %vm4606, %v4598, %v4603
          %v4608 = vmul.f32 %v4591, %v4607
          %v4610 = vperm.slane %v855, 0
          %v4612 = vmul.f32 %v4608, %v4610
          %v4614 = vperm.slane %v856, 0
          %v4616 = vadd.f32 %v4612, %v4614
          %4617 = vst.msk [vmem:[%s771] sm:$0xff] %vm3386, %v4616
          %v4618 = vpack.c.bf16 %v4616, %v4616
          %4619 = vmatpush.bf16.msra.mxu0 0
          %4620 = vmatpush.bf16.msra.mxu0 0
          %4621 = vmatpush.bf16.msra.mxu0 0
          %4622 = vmatpush.bf16.msra.mxu0 0
          %4623 = vmatpush.bf16.msra.mxu0 0
          %4624 = vmatpush.bf16.msra.mxu0 0
          %4625 = vmatpush.bf16.msra.mxu0 %v3383
          %4626 = vmatpush.bf16.msra.mxu0 %v3382
          %4627 = vmatmul.bf16.gmra.mxu0 %v3413
          %v4628 = vpop.f32.mrf.mxu0
          %v4629 = vadd.f32 %v3372, %v4628
          %v4630 = vpop.f32.mrf.mxu0
          %v4631 = vadd.f32 %v3372, %v4630
          %4632 = vdwg.mxu0
          %v4634 = vsel %vm3386, %v4618, 0
          %4636 = vmatpush.bf16.msra.mxu0 0
          %4637 = vmatpush.bf16.msra.mxu0 0
          %4638 = vmatpush.bf16.msra.mxu0 0
          %4639 = vmatpush.bf16.msra.mxu0 0
          %4640 = vmatpush.bf16.msra.mxu0 0
          %4641 = vmatpush.bf16.msra.mxu0 0
          %4642 = vmatpush.bf16.msra.mxu0 %v3406
          %4643 = vmatpush.bf16.msra.mxu0 %v3404
          %4644 = vmatmul.bf16.gmra.mxu0 %v4634
          %v4645 = vpop.f32.mrf.mxu0
          %v4646 = vadd.f32 %v3410, %v4645
          %v4647 = vpop.f32.mrf.mxu0
          %4648 = vdwg.mxu0
          %4651 = vrot.lane.b32.xlu0 %v4629, 120
          %v4652 = vpop.permute.xlu0 %4651
          %4653 = vrot.lane.b32.xlu0 %v4631, 120
          %v4654 = vpop.permute.xlu0 %4653
          %4657 = vrot.lane.b32.xlu0 %v4629, 112
          %v4658 = vpop.permute.xlu0 %4657
          %4659 = vrot.lane.b32.xlu0 %v4631, 112
          %v4660 = vpop.permute.xlu0 %4659
          %4663 = vrot.lane.b32.xlu0 %v4629, 104
          %v4664 = vpop.permute.xlu0 %4663
          %4665 = vrot.lane.b32.xlu0 %v4631, 104
          %v4666 = vpop.permute.xlu0 %4665
          %v4669 = vrot.slane %v4658, 4
          %v4670 = vsel %vm3440, %v4669, %v4629
          %v4671 = vrot.slane %v4629, 4
          %v4672 = vsel %vm3440, %v4658, %v4671
          %v4674 = vunpack.c.l.s4 1983009808
          %v4675 = vunpack.c.0.s8 %v4674
          %v4676 = vperm.slane %v4670, %v4675
          %v4678 = vunpack.c.l.s4 1983009808
          %v4679 = vunpack.c.0.s8 %v4678
          %v4680 = vperm.slane %v4672, %v4679
          %v4681 = vrot.slane %v4664, 4
          %v4682 = vsel %vm3440, %v4681, %v4652
          %v4683 = vrot.slane %v4652, 4
          %v4684 = vsel %vm3440, %v4664, %v4683
          %v4686 = vunpack.c.l.s4 1983009808
          %v4687 = vunpack.c.0.s8 %v4686
          %v4688 = vperm.slane %v4682, %v4687
          %v4690 = vunpack.c.l.s4 1983009808
          %v4691 = vunpack.c.0.s8 %v4690
          %v4692 = vperm.slane %v4684, %v4691
          %v4693 = vrot.slane %v4688, 4
          %v4694 = vsel %vm3440, %v4693, %v4676
          %v4695 = vrot.slane %v4676, 4
          %v4696 = vsel %vm3440, %v4688, %v4695
          %v4698 = vunpack.c.l.s4 1934713408
          %v4699 = vunpack.c.0.s8 %v4698
          %v4700 = vperm.slane %v4694, %v4699
          %v4702 = vunpack.c.l.s4 1934713408
          %v4703 = vunpack.c.0.s8 %v4702
          %v4704 = vperm.slane %v4696, %v4703
          %v4705 = vrot.slane %v4692, 4
          %v4706 = vsel %vm3440, %v4705, %v4680
          %v4707 = vrot.slane %v4680, 4
          %v4708 = vsel %vm3440, %v4692, %v4707
          %v4710 = vunpack.c.l.s4 1934713408
          %v4711 = vunpack.c.0.s8 %v4710
          %v4712 = vperm.slane %v4706, %v4711
          %v4714 = vunpack.c.l.s4 1934713408
          %v4715 = vunpack.c.0.s8 %v4714
          %v4716 = vperm.slane %v4708, %v4715
          %v4717 = vrot.slane %v4700, 4
          %v4718 = vsel %vm3440, 0.0, %v4717
          %v4719 = vrot.slane %v4704, 4
          %v4720 = vsel %vm3440, 0.0, %v4719
          %v4721 = vrot.slane %v4712, 4
          %v4722 = vsel %vm3440, 0.0, %v4721
          %v4723 = vrot.slane %v4716, 4
          %v4724 = vsel %vm3440, 0.0, %v4723
          %v4725 = vrot.slane %v4660, 4
          %v4726 = vsel %vm3440, %v4725, %v4631
          %v4727 = vrot.slane %v4631, 4
          %v4728 = vsel %vm3440, %v4660, %v4727
          %v4730 = vunpack.c.l.s4 1983009808
          %v4731 = vunpack.c.0.s8 %v4730
          %v4732 = vperm.slane %v4726, %v4731
          %v4734 = vunpack.c.l.s4 1983009808
          %v4735 = vunpack.c.0.s8 %v4734
          %v4736 = vperm.slane %v4728, %v4735
          %v4737 = vrot.slane %v4666, 4
          %v4738 = vsel %vm3440, %v4737, %v4654
          %v4739 = vrot.slane %v4654, 4
          %v4740 = vsel %vm3440, %v4666, %v4739
          %v4742 = vunpack.c.l.s4 1983009808
          %v4743 = vunpack.c.0.s8 %v4742
          %v4744 = vperm.slane %v4738, %v4743
          %v4746 = vunpack.c.l.s4 1983009808
          %v4747 = vunpack.c.0.s8 %v4746
          %v4748 = vperm.slane %v4740, %v4747
          %v4749 = vrot.slane %v4744, 4
          %v4750 = vsel %vm3440, %v4749, %v4732
          %v4751 = vrot.slane %v4732, 4
          %v4752 = vsel %vm3440, %v4744, %v4751
          %v4754 = vunpack.c.l.s4 1934713408
          %v4755 = vunpack.c.0.s8 %v4754
          %v4756 = vperm.slane %v4750, %v4755
          %v4758 = vunpack.c.l.s4 1934713408
          %v4759 = vunpack.c.0.s8 %v4758
          %v4760 = vperm.slane %v4752, %v4759
          %v4761 = vrot.slane %v4748, 4
          %v4762 = vsel %vm3440, %v4761, %v4736
          %v4763 = vrot.slane %v4736, 4
          %v4764 = vsel %vm3440, %v4748, %v4763
          %v4766 = vunpack.c.l.s4 1934713408
          %v4767 = vunpack.c.0.s8 %v4766
          %v4768 = vperm.slane %v4762, %v4767
          %v4770 = vunpack.c.l.s4 1934713408
          %v4771 = vunpack.c.0.s8 %v4770
          %v4772 = vperm.slane %v4764, %v4771
          %v4773 = vrot.slane %v4756, 4
          %v4774 = vsel %vm3440, 0.0, %v4773
          %v4775 = vrot.slane %v4760, 4
          %v4776 = vsel %vm3440, 0.0, %v4775
          %v4777 = vrot.slane %v4768, 4
          %v4778 = vsel %vm3440, 0.0, %v4777
          %v4779 = vrot.slane %v4772, 4
          %v4780 = vsel %vm3440, 0.0, %v4779
          %v4781 = vsel %vm3440, %v4719, %v4700
          %v4783 = vunpack.c.l.s4 1983009808
          %v4784 = vunpack.c.0.s8 %v4783
          %v4785 = vperm.slane %v4781, %v4784
          %v4786 = vrot.slane %v4720, 4
          %v4787 = vsel %vm3440, %v4786, %v4718
          %v4789 = vunpack.c.l.s4 1983009808
          %v4790 = vunpack.c.0.s8 %v4789
          %v4791 = vperm.slane %v4787, %v4790
          %v4792 = vsel %vm3440, %v4723, %v4712
          %v4794 = vunpack.c.l.s4 1983009808
          %v4795 = vunpack.c.0.s8 %v4794
          %v4796 = vperm.slane %v4792, %v4795
          %v4797 = vrot.slane %v4724, 4
          %v4798 = vsel %vm3440, %v4797, %v4722
          %v4800 = vunpack.c.l.s4 1983009808
          %v4801 = vunpack.c.0.s8 %v4800
          %v4802 = vperm.slane %v4798, %v4801
          %v4803 = vrot.slane %v4791, 4
          %v4804 = vsel %vm3440, %v4803, %v4785
          %v4805 = vrot.slane %v4785, 4
          %v4806 = vsel %vm3440, %v4791, %v4805
          %v4808 = vunpack.c.l.s4 1934713408
          %v4809 = vunpack.c.0.s8 %v4808
          %v4810 = vperm.slane %v4804, %v4809
          %v4812 = vunpack.c.l.s4 1934713408
          %v4813 = vunpack.c.0.s8 %v4812
          %v4814 = vperm.slane %v4806, %v4813
          %v4815 = vrot.slane %v4802, 4
          %v4816 = vsel %vm3440, %v4815, %v4796
          %v4817 = vrot.slane %v4796, 4
          %v4818 = vsel %vm3440, %v4802, %v4817
          %v4820 = vunpack.c.l.s4 1934713408
          %v4821 = vunpack.c.0.s8 %v4820
          %v4822 = vperm.slane %v4816, %v4821
          %v4824 = vunpack.c.l.s4 1934713408
          %v4825 = vunpack.c.0.s8 %v4824
          %v4826 = vperm.slane %v4818, %v4825
          %v4827 = vrot.slane %v4822, 4
          %v4828 = vsel %vm3440, %v4827, %v4810
          %v4829 = vrot.slane %v4810, 4
          %v4830 = vsel %vm3440, %v4822, %v4829
          %v4831 = vrot.slane %v4826, 4
          %v4832 = vsel %vm3440, %v4831, %v4814
          %v4833 = vrot.slane %v4814, 4
          %v4834 = vsel %vm3440, %v4826, %v4833
          %v4835 = vsel %vm3440, %v4775, %v4756
          %v4837 = vunpack.c.l.s4 1983009808
          %v4838 = vunpack.c.0.s8 %v4837
          %v4839 = vperm.slane %v4835, %v4838
          %v4840 = vrot.slane %v4776, 4
          %v4841 = vsel %vm3440, %v4840, %v4774
          %v4843 = vunpack.c.l.s4 1983009808
          %v4844 = vunpack.c.0.s8 %v4843
          %v4845 = vperm.slane %v4841, %v4844
          %v4846 = vsel %vm3440, %v4779, %v4768
          %v4848 = vunpack.c.l.s4 1983009808
          %v4849 = vunpack.c.0.s8 %v4848
          %v4850 = vperm.slane %v4846, %v4849
          %v4851 = vrot.slane %v4780, 4
          %v4852 = vsel %vm3440, %v4851, %v4778
          %v4854 = vunpack.c.l.s4 1983009808
          %v4855 = vunpack.c.0.s8 %v4854
          %v4856 = vperm.slane %v4852, %v4855
          %v4857 = vrot.slane %v4845, 4
          %v4858 = vsel %vm3440, %v4857, %v4839
          %v4859 = vrot.slane %v4839, 4
          %v4860 = vsel %vm3440, %v4845, %v4859
          %v4862 = vunpack.c.l.s4 1934713408
          %v4863 = vunpack.c.0.s8 %v4862
          %v4864 = vperm.slane %v4858, %v4863
          %v4866 = vunpack.c.l.s4 1934713408
          %v4867 = vunpack.c.0.s8 %v4866
          %v4868 = vperm.slane %v4860, %v4867
          %v4869 = vrot.slane %v4856, 4
          %v4870 = vsel %vm3440, %v4869, %v4850
          %v4871 = vrot.slane %v4850, 4
          %v4872 = vsel %vm3440, %v4856, %v4871
          %v4874 = vunpack.c.l.s4 1934713408
          %v4875 = vunpack.c.0.s8 %v4874
          %v4876 = vperm.slane %v4870, %v4875
          %v4878 = vunpack.c.l.s4 1934713408
          %v4879 = vunpack.c.0.s8 %v4878
          %v4880 = vperm.slane %v4872, %v4879
          %v4881 = vrot.slane %v4876, 4
          %v4882 = vsel %vm3440, %v4881, %v4864
          %v4883 = vrot.slane %v4864, 4
          %v4884 = vsel %vm3440, %v4876, %v4883
          %v4885 = vrot.slane %v4880, 4
          %v4886 = vsel %vm3440, %v4885, %v4868
          %v4887 = vrot.slane %v4868, 4
          %v4888 = vsel %vm3440, %v4880, %v4887
          %v4889 = vpack.c.bf16 %v4828, %v4828
          %v4890 = vpack.c.bf16 %v4882, %v4882
          %v4891 = vpack.c.bf16 %v4830, %v4830
          %v4892 = vpack.c.bf16 %v4884, %v4884
          %v4893 = vpack.c.bf16 %v4832, %v4832
          %v4894 = vpack.c.bf16 %v4886, %v4886
          %v4895 = vpack.c.bf16 %v4834, %v4834
          %v4896 = vpack.c.bf16 %v4888, %v4888
          %4898 = vrot.lane.b32.xlu0 %v4646, 120
          %v4899 = vpop.permute.xlu0 %4898
          %4901 = vrot.lane.b32.xlu0 %v4646, 112
          %v4902 = vpop.permute.xlu0 %4901
          %4904 = vrot.lane.b32.xlu0 %v4646, 104
          %v4905 = vpop.permute.xlu0 %4904
          %v4907 = vrot.slane %v4902, 4
          %v4908 = vsel %vm3440, %v4907, %v4646
          %v4909 = vrot.slane %v4646, 4
          %v4910 = vsel %vm3440, %v4902, %v4909
          %v4912 = vunpack.c.l.s4 1983009808
          %v4913 = vunpack.c.0.s8 %v4912
          %v4914 = vperm.slane %v4908, %v4913
          %v4916 = vunpack.c.l.s4 1983009808
          %v4917 = vunpack.c.0.s8 %v4916
          %v4918 = vperm.slane %v4910, %v4917
          %v4919 = vrot.slane %v4905, 4
          %v4920 = vsel %vm3440, %v4919, %v4899
          %v4921 = vrot.slane %v4899, 4
          %v4922 = vsel %vm3440, %v4905, %v4921
          %v4924 = vunpack.c.l.s4 1983009808
          %v4925 = vunpack.c.0.s8 %v4924
          %v4926 = vperm.slane %v4920, %v4925
          %v4928 = vunpack.c.l.s4 1983009808
          %v4929 = vunpack.c.0.s8 %v4928
          %v4930 = vperm.slane %v4922, %v4929
          %v4931 = vrot.slane %v4926, 4
          %v4932 = vsel %vm3440, %v4931, %v4914
          %v4933 = vrot.slane %v4914, 4
          %v4934 = vsel %vm3440, %v4926, %v4933
          %v4936 = vunpack.c.l.s4 1934713408
          %v4937 = vunpack.c.0.s8 %v4936
          %v4938 = vperm.slane %v4932, %v4937
          %v4940 = vunpack.c.l.s4 1934713408
          %v4941 = vunpack.c.0.s8 %v4940
          %v4942 = vperm.slane %v4934, %v4941
          %v4943 = vrot.slane %v4930, 4
          %v4944 = vsel %vm3440, %v4943, %v4918
          %v4945 = vrot.slane %v4918, 4
          %v4946 = vsel %vm3440, %v4930, %v4945
          %v4948 = vunpack.c.l.s4 1934713408
          %v4949 = vunpack.c.0.s8 %v4948
          %v4950 = vperm.slane %v4944, %v4949
          %v4952 = vunpack.c.l.s4 1934713408
          %v4953 = vunpack.c.0.s8 %v4952
          %v4954 = vperm.slane %v4946, %v4953
          %v4955 = vrot.slane %v4938, 4
          %v4956 = vsel %vm3440, 0.0, %v4955
          %v4957 = vrot.slane %v4942, 4
          %v4958 = vsel %vm3440, 0.0, %v4957
          %v4959 = vrot.slane %v4950, 4
          %v4960 = vsel %vm3440, 0.0, %v4959
          %v4961 = vrot.slane %v4954, 4
          %v4962 = vsel %vm3440, 0.0, %v4961
          %v4963 = vsel %vm3440, %v4957, %v4938
          %v4965 = vunpack.c.l.s4 1983009808
          %v4966 = vunpack.c.0.s8 %v4965
          %v4967 = vperm.slane %v4963, %v4966
          %v4968 = vrot.slane %v4958, 4
          %v4969 = vsel %vm3440, %v4968, %v4956
          %v4971 = vunpack.c.l.s4 1983009808
          %v4972 = vunpack.c.0.s8 %v4971
          %v4973 = vperm.slane %v4969, %v4972
          %v4974 = vsel %vm3440, %v4961, %v4950
          %v4976 = vunpack.c.l.s4 1983009808
          %v4977 = vunpack.c.0.s8 %v4976
          %v4978 = vperm.slane %v4974, %v4977
          %v4979 = vrot.slane %v4962, 4
          %v4980 = vsel %vm3440, %v4979, %v4960
          %v4982 = vunpack.c.l.s4 1983009808
          %v4983 = vunpack.c.0.s8 %v4982
          %v4984 = vperm.slane %v4980, %v4983
          %v4985 = vrot.slane %v4973, 4
          %v4986 = vsel %vm3440, %v4985, %v4967
          %v4987 = vrot.slane %v4967, 4
          %v4988 = vsel %vm3440, %v4973, %v4987
          %v4990 = vunpack.c.l.s4 1934713408
          %v4991 = vunpack.c.0.s8 %v4990
          %v4992 = vperm.slane %v4986, %v4991
          %v4994 = vunpack.c.l.s4 1934713408
          %v4995 = vunpack.c.0.s8 %v4994
          %v4996 = vperm.slane %v4988, %v4995
          %v4997 = vrot.slane %v4984, 4
          %v4998 = vsel %vm3440, %v4997, %v4978
          %v4999 = vrot.slane %v4978, 4
          %v5000 = vsel %vm3440, %v4984, %v4999
          %v5002 = vunpack.c.l.s4 1934713408
          %v5003 = vunpack.c.0.s8 %v5002
          %v5004 = vperm.slane %v4998, %v5003
          %v5006 = vunpack.c.l.s4 1934713408
          %v5007 = vunpack.c.0.s8 %v5006
          %v5008 = vperm.slane %v5000, %v5007
          %v5009 = vrot.slane %v5004, 4
          %v5010 = vsel %vm3440, %v5009, %v4992
          %v5011 = vrot.slane %v4992, 4
          %v5012 = vsel %vm3440, %v5004, %v5011
          %v5013 = vrot.slane %v5008, 4
          %v5014 = vsel %vm3440, %v5013, %v4996
          %v5015 = vrot.slane %v4996, 4
          %v5016 = vsel %vm3440, %v5008, %v5015
          %v5017 = vpack.c.bf16 %v5010, %v5010
          %v5018 = vpack.c.bf16 %v5012, %v5012
          %v5019 = vpack.c.bf16 %v5014, %v5014
          %v5020 = vpack.c.bf16 %v5016, %v5016
          %5021 = vrot.lane.b32.xlu0 %v4646, 96
          %v5022 = vpop.permute.xlu0 %5021
          %5023 = vrot.lane.b32.xlu0 %v4899, 96
          %v5024 = vpop.permute.xlu0 %5023
          %5025 = vrot.lane.b32.xlu0 %v4902, 96
          %v5026 = vpop.permute.xlu0 %5025
          %5027 = vrot.lane.b32.xlu0 %v4905, 96
          %v5028 = vpop.permute.xlu0 %5027
          %v5033 = vrot.slane %v5026, 4
          %v5034 = vsel %vm3440, %v5033, %v5022
          %v5035 = vrot.slane %v5022, 4
          %v5036 = vsel %vm3440, %v5026, %v5035
          %v5038 = vunpack.c.l.s4 1983009808
          %v5039 = vunpack.c.0.s8 %v5038
          %v5040 = vperm.slane %v5034, %v5039
          %v5042 = vunpack.c.l.s4 1983009808
          %v5043 = vunpack.c.0.s8 %v5042
          %v5044 = vperm.slane %v5036, %v5043
          %v5045 = vrot.slane %v5028, 4
          %v5046 = vsel %vm3440, %v5045, %v5024
          %v5047 = vrot.slane %v5024, 4
          %v5048 = vsel %vm3440, %v5028, %v5047
          %v5050 = vunpack.c.l.s4 1983009808
          %v5051 = vunpack.c.0.s8 %v5050
          %v5052 = vperm.slane %v5046, %v5051
          %v5054 = vunpack.c.l.s4 1983009808
          %v5055 = vunpack.c.0.s8 %v5054
          %v5056 = vperm.slane %v5048, %v5055
          %v5057 = vrot.slane %v5052, 4
          %v5058 = vsel %vm3440, %v5057, %v5040
          %v5059 = vrot.slane %v5040, 4
          %v5060 = vsel %vm3440, %v5052, %v5059
          %v5062 = vunpack.c.l.s4 1934713408
          %v5063 = vunpack.c.0.s8 %v5062
          %v5064 = vperm.slane %v5058, %v5063
          %v5066 = vunpack.c.l.s4 1934713408
          %v5067 = vunpack.c.0.s8 %v5066
          %v5068 = vperm.slane %v5060, %v5067
          %v5069 = vrot.slane %v5056, 4
          %v5070 = vsel %vm3440, %v5069, %v5044
          %v5071 = vrot.slane %v5044, 4
          %v5072 = vsel %vm3440, %v5056, %v5071
          %v5074 = vunpack.c.l.s4 1934713408
          %v5075 = vunpack.c.0.s8 %v5074
          %v5076 = vperm.slane %v5070, %v5075
          %v5078 = vunpack.c.l.s4 1934713408
          %v5079 = vunpack.c.0.s8 %v5078
          %v5080 = vperm.slane %v5072, %v5079
          %v5081 = vrot.slane %v5064, 4
          %v5082 = vsel %vm3440, 0.0, %v5081
          %v5083 = vrot.slane %v5068, 4
          %v5084 = vsel %vm3440, 0.0, %v5083
          %v5085 = vrot.slane %v5076, 4
          %v5086 = vsel %vm3440, 0.0, %v5085
          %v5087 = vrot.slane %v5080, 4
          %v5088 = vsel %vm3440, 0.0, %v5087
          %v5089 = vsel %vm3440, %v5083, %v5064
          %v5091 = vunpack.c.l.s4 1983009808
          %v5092 = vunpack.c.0.s8 %v5091
          %v5093 = vperm.slane %v5089, %v5092
          %v5094 = vrot.slane %v5084, 4
          %v5095 = vsel %vm3440, %v5094, %v5082
          %v5097 = vunpack.c.l.s4 1983009808
          %v5098 = vunpack.c.0.s8 %v5097
          %v5099 = vperm.slane %v5095, %v5098
          %v5100 = vsel %vm3440, %v5087, %v5076
          %v5102 = vunpack.c.l.s4 1983009808
          %v5103 = vunpack.c.0.s8 %v5102
          %v5104 = vperm.slane %v5100, %v5103
          %v5105 = vrot.slane %v5088, 4
          %v5106 = vsel %vm3440, %v5105, %v5086
          %v5108 = vunpack.c.l.s4 1983009808
          %v5109 = vunpack.c.0.s8 %v5108
          %v5110 = vperm.slane %v5106, %v5109
          %v5111 = vrot.slane %v5099, 4
          %v5112 = vsel %vm3440, %v5111, %v5093
          %v5113 = vrot.slane %v5093, 4
          %v5114 = vsel %vm3440, %v5099, %v5113
          %v5116 = vunpack.c.l.s4 1934713408
          %v5117 = vunpack.c.0.s8 %v5116
          %v5118 = vperm.slane %v5112, %v5117
          %v5120 = vunpack.c.l.s4 1934713408
          %v5121 = vunpack.c.0.s8 %v5120
          %v5122 = vperm.slane %v5114, %v5121
          %v5123 = vrot.slane %v5110, 4
          %v5124 = vsel %vm3440, %v5123, %v5104
          %v5125 = vrot.slane %v5104, 4
          %v5126 = vsel %vm3440, %v5110, %v5125
          %v5128 = vunpack.c.l.s4 1934713408
          %v5129 = vunpack.c.0.s8 %v5128
          %v5130 = vperm.slane %v5124, %v5129
          %v5132 = vunpack.c.l.s4 1934713408
          %v5133 = vunpack.c.0.s8 %v5132
          %v5134 = vperm.slane %v5126, %v5133
          %v5135 = vrot.slane %v5130, 4
          %v5136 = vsel %vm3440, %v5135, %v5118
          %v5137 = vrot.slane %v5118, 4
          %v5138 = vsel %vm3440, %v5130, %v5137
          %v5139 = vrot.slane %v5134, 4
          %v5140 = vsel %vm3440, %v5139, %v5122
          %v5141 = vrot.slane %v5122, 4
          %v5142 = vsel %vm3440, %v5134, %v5141
          %v5143 = vpack.c.bf16 %v5136, %v5136
          %v5144 = vpack.c.bf16 %v5138, %v5138
          %v5145 = vpack.c.bf16 %v5140, %v5140
          %v5146 = vpack.c.bf16 %v5142, %v5142
          %v5149 = vunpack.c.l.b16 %v4889
          %v5150 = vunpack.c.l.b16 %v4890
          %v5151 = vpack.c.b16 %v5150, %v5149
          %v5153 = vsel %vm4059, %v5151, 0
          %v5156 = vsel %vm4059, %v5017, 0
          %5158 = vmatpush.bf16.xpose.msra.mxu0 0
          %5159 = vmatpush.bf16.xpose.msra.mxu0 0
          %5160 = vmatpush.bf16.xpose.msra.mxu0 0
          %5161 = vmatpush.bf16.xpose.msra.mxu0 0
          %5162 = vmatpush.bf16.xpose.msra.mxu0 0
          %5163 = vmatpush.bf16.xpose.msra.mxu0 0
          %5164 = vmatpush.bf16.xpose.msra.mxu0 0
          %5165 = vmatpush.bf16.xpose.msra.mxu0 %v5156
          %5166 = vmatmul.bf16.gmra.mxu0 %v5153
          %v5167 = vpop.f32.mrf.mxu0
          %v5168 = vadd.f32 0.0, %v5167
          %v5169 = vpop.f32.mrf.mxu0
          %v5170 = vadd.f32 0.0, %v5169
          %5171 = vdwg.mxu0
          %v5174 = vunpack.c.l.b16 %v4891
          %v5175 = vunpack.c.l.b16 %v4892
          %v5176 = vpack.c.b16 %v5175, %v5174
          %v5178 = vsel %vm4059, %v5176, 0
          %v5181 = vsel %vm4059, %v5018, 0
          %5183 = vmatpush.bf16.xpose.msra.mxu0 0
          %5184 = vmatpush.bf16.xpose.msra.mxu0 0
          %5185 = vmatpush.bf16.xpose.msra.mxu0 0
          %5186 = vmatpush.bf16.xpose.msra.mxu0 0
          %5187 = vmatpush.bf16.xpose.msra.mxu0 0
          %5188 = vmatpush.bf16.xpose.msra.mxu0 0
          %5189 = vmatpush.bf16.xpose.msra.mxu0 0
          %5190 = vmatpush.bf16.xpose.msra.mxu0 %v5181
          %5191 = vmatmul.bf16.gmra.mxu0 %v5178
          %v5192 = vpop.f32.mrf.mxu0
          %v5193 = vadd.f32 0.0, %v5192
          %v5194 = vpop.f32.mrf.mxu0
          %v5195 = vadd.f32 0.0, %v5194
          %5196 = vdwg.mxu0
          %v5199 = vunpack.c.l.b16 %v4893
          %v5200 = vunpack.c.l.b16 %v4894
          %v5201 = vpack.c.b16 %v5200, %v5199
          %v5203 = vsel %vm4059, %v5201, 0
          %v5206 = vsel %vm4059, %v5019, 0
          %5208 = vmatpush.bf16.xpose.msra.mxu0 0
          %5209 = vmatpush.bf16.xpose.msra.mxu0 0
          %5210 = vmatpush.bf16.xpose.msra.mxu0 0
          %5211 = vmatpush.bf16.xpose.msra.mxu0 0
          %5212 = vmatpush.bf16.xpose.msra.mxu0 0
          %5213 = vmatpush.bf16.xpose.msra.mxu0 0
          %5214 = vmatpush.bf16.xpose.msra.mxu0 0
          %5215 = vmatpush.bf16.xpose.msra.mxu0 %v5206
          %5216 = vmatmul.bf16.gmra.mxu0 %v5203
          %v5217 = vpop.f32.mrf.mxu0
          %v5218 = vadd.f32 0.0, %v5217
          %v5219 = vpop.f32.mrf.mxu0
          %v5220 = vadd.f32 0.0, %v5219
          %5221 = vdwg.mxu0
          %v5224 = vunpack.c.l.b16 %v4895
          %v5225 = vunpack.c.l.b16 %v4896
          %v5226 = vpack.c.b16 %v5225, %v5224
          %v5228 = vsel %vm4059, %v5226, 0
          %v5231 = vsel %vm4059, %v5020, 0
          %5233 = vmatpush.bf16.xpose.msra.mxu0 0
          %5234 = vmatpush.bf16.xpose.msra.mxu0 0
          %5235 = vmatpush.bf16.xpose.msra.mxu0 0
          %5236 = vmatpush.bf16.xpose.msra.mxu0 0
          %5237 = vmatpush.bf16.xpose.msra.mxu0 0
          %5238 = vmatpush.bf16.xpose.msra.mxu0 0
          %5239 = vmatpush.bf16.xpose.msra.mxu0 0
          %5240 = vmatpush.bf16.xpose.msra.mxu0 %v5231
          %5241 = vmatmul.bf16.gmra.mxu0 %v5228
          %v5242 = vpop.f32.mrf.mxu0
          %v5243 = vadd.f32 0.0, %v5242
          %v5244 = vpop.f32.mrf.mxu0
          %v5245 = vadd.f32 0.0, %v5244
          %5246 = vdwg.mxu0
          %v5247 = vsel %vm4059, %v5168, -inf
          %5248 = vmax.xlane.f32.xlu0 %v5247
          %v5249 = vpop.xlane.xlu0 %5248
          %v5250 = vsel %vm4059, %v5170, -inf
          %5251 = vmax.xlane.f32.xlu0 %v5250
          %v5252 = vpop.xlane.xlu0 %5251
          %v5253 = vsel %vm4059, %v5193, -inf
          %5254 = vmax.xlane.f32.xlu0 %v5253
          %v5255 = vpop.xlane.xlu0 %5254
          %v5256 = vsel %vm4059, %v5195, -inf
          %5257 = vmax.xlane.f32.xlu0 %v5256
          %v5258 = vpop.xlane.xlu0 %5257
          %v5259 = vsel %vm4059, %v5218, -inf
          %5260 = vmax.xlane.f32.xlu0 %v5259
          %v5261 = vpop.xlane.xlu0 %5260
          %v5262 = vsel %vm4059, %v5220, -inf
          %5263 = vmax.xlane.f32.xlu0 %v5262
          %v5264 = vpop.xlane.xlu0 %5263
          %v5265 = vsel %vm4059, %v5243, -inf
          %5266 = vmax.xlane.f32.xlu0 %v5265
          %v5267 = vpop.xlane.xlu0 %5266
          %v5268 = vsel %vm4059, %v5245, -inf
          %5269 = vmax.xlane.f32.xlu0 %v5268
          %v5270 = vpop.xlane.xlu0 %5269
          %v5271 = vsub.f32 -inf, %v5249
          %v5272 = vsub.f32 -inf, %v5252
          %v5273 = vsub.f32 -inf, %v5255
          %v5274 = vsub.f32 -inf, %v5258
          %v5275 = vsub.f32 -inf, %v5261
          %v5276 = vsub.f32 -inf, %v5264
          %v5277 = vsub.f32 -inf, %v5267
          %v5278 = vsub.f32 -inf, %v5270
          %v5279 = vmul.f32 %v5271, 1.442695
          %v5280 = vpow.pop %v5279
          %v5281 = vmul.f32 %v5272, 1.442695
          %v5282 = vpow.pop %v5281
          %v5283 = vmul.f32 %v5273, 1.442695
          %v5284 = vpow.pop %v5283
          %v5285 = vmul.f32 %v5274, 1.442695
          %v5286 = vpow.pop %v5285
          %v5287 = vmul.f32 %v5275, 1.442695
          %v5288 = vpow.pop %v5287
          %v5289 = vmul.f32 %v5276, 1.442695
          %v5290 = vpow.pop %v5289
          %v5291 = vmul.f32 %v5277, 1.442695
          %v5292 = vpow.pop %v5291
          %v5293 = vmul.f32 %v5278, 1.442695
          %v5294 = vpow.pop %v5293
          %v5295 = vsub.f32 %v5168, %v5249
          %v5296 = vsub.f32 %v5170, %v5252
          %v5297 = vsub.f32 %v5193, %v5255
          %v5298 = vsub.f32 %v5195, %v5258
          %v5299 = vsub.f32 %v5218, %v5261
          %v5300 = vsub.f32 %v5220, %v5264
          %v5301 = vsub.f32 %v5243, %v5267
          %v5302 = vsub.f32 %v5245, %v5270
          %v5303 = vmul.f32 %v5295, 1.442695
          %v5304 = vpow.pop %v5303
          %v5305 = vmul.f32 %v5296, 1.442695
          %v5306 = vpow.pop %v5305
          %v5307 = vmul.f32 %v5297, 1.442695
          %v5308 = vpow.pop %v5307
          %v5309 = vmul.f32 %v5298, 1.442695
          %v5310 = vpow.pop %v5309
          %v5311 = vmul.f32 %v5299, 1.442695
          %v5312 = vpow.pop %v5311
          %v5313 = vmul.f32 %v5300, 1.442695
          %v5314 = vpow.pop %v5313
          %v5315 = vmul.f32 %v5301, 1.442695
          %v5316 = vpow.pop %v5315
          %v5317 = vmul.f32 %v5302, 1.442695
          %v5318 = vpow.pop %v5317
          %v5319 = vmul.f32 %v5280, 0.0
          %v5320 = vmul.f32 %v5282, 0.0
          %v5321 = vmul.f32 %v5284, 0.0
          %v5322 = vmul.f32 %v5286, 0.0
          %v5323 = vmul.f32 %v5288, 0.0
          %v5324 = vmul.f32 %v5290, 0.0
          %v5325 = vmul.f32 %v5292, 0.0
          %v5326 = vmul.f32 %v5294, 0.0
          %v5327 = vsel %vm4059, %v5304, 0.0
          %5328 = vadd.xlane.f32.xlu0 %v5327
          %v5329 = vpop.xlane.xlu0 %5328
          %v5330 = vsel %vm4059, %v5306, 0.0
          %5331 = vadd.xlane.f32.xlu0 %v5330
          %v5332 = vpop.xlane.xlu0 %5331
          %v5333 = vsel %vm4059, %v5308, 0.0
          %5334 = vadd.xlane.f32.xlu0 %v5333
          %v5335 = vpop.xlane.xlu0 %5334
          %v5336 = vsel %vm4059, %v5310, 0.0
          %5337 = vadd.xlane.f32.xlu0 %v5336
          %v5338 = vpop.xlane.xlu0 %5337
          %v5339 = vsel %vm4059, %v5312, 0.0
          %5340 = vadd.xlane.f32.xlu0 %v5339
          %v5341 = vpop.xlane.xlu0 %5340
          %v5342 = vsel %vm4059, %v5314, 0.0
          %5343 = vadd.xlane.f32.xlu0 %v5342
          %v5344 = vpop.xlane.xlu0 %5343
          %v5345 = vsel %vm4059, %v5316, 0.0
          %5346 = vadd.xlane.f32.xlu0 %v5345
          %v5347 = vpop.xlane.xlu0 %5346
          %v5348 = vsel %vm4059, %v5318, 0.0
          %5349 = vadd.xlane.f32.xlu0 %v5348
          %v5350 = vpop.xlane.xlu0 %5349
          %v5351 = vadd.f32 %v5319, %v5329
          %v5352 = vadd.f32 %v5320, %v5332
          %v5353 = vadd.f32 %v5321, %v5335
          %v5354 = vadd.f32 %v5322, %v5338
          %v5355 = vadd.f32 %v5323, %v5341
          %v5356 = vadd.f32 %v5324, %v5344
          %v5357 = vadd.f32 %v5325, %v5347
          %v5358 = vadd.f32 %v5326, %v5350
          %v5359 = vpack.c.bf16 %v5304, %v5304
          %v5360 = vpack.c.bf16 %v5306, %v5306
          %v5361 = vpack.c.bf16 %v5308, %v5308
          %v5362 = vpack.c.bf16 %v5310, %v5310
          %v5363 = vpack.c.bf16 %v5312, %v5312
          %v5364 = vpack.c.bf16 %v5314, %v5314
          %v5365 = vpack.c.bf16 %v5316, %v5316
          %v5366 = vpack.c.bf16 %v5318, %v5318
          %v5369 = vunpack.c.l.b16 %v5359
          %v5370 = vunpack.c.l.b16 %v5360
          %v5371 = vpack.c.b16 %v5370, %v5369
          %v5373 = vsel %vm4059, %v5371, 0
          %vm5375 = vcmask 1043456
          %v5377 = vsel %vm5375, %v5143, 0
          %5379 = vmatpush.bf16.msra.mxu0 0
          %5380 = vmatpush.bf16.msra.mxu0 0
          %5381 = vmatpush.bf16.msra.mxu0 0
          %5382 = vmatpush.bf16.msra.mxu0 0
          %5383 = vmatpush.bf16.msra.mxu0 0
          %5384 = vmatpush.bf16.msra.mxu0 0
          %5385 = vmatpush.bf16.msra.mxu0 0
          %5386 = vmatpush.bf16.msra.mxu0 %v5377
          %5387 = vmatmul.bf16.gmra.mxu0 %v5373
          %v5388 = vpop.f32.mrf.mxu0
          %v5389 = vadd.f32 0.0, %v5388
          %v5390 = vpop.f32.mrf.mxu0
          %v5391 = vadd.f32 0.0, %v5390
          %5392 = vdwg.mxu0
          %v5395 = vunpack.c.l.b16 %v5361
          %v5396 = vunpack.c.l.b16 %v5362
          %v5397 = vpack.c.b16 %v5396, %v5395
          %v5399 = vsel %vm4059, %v5397, 0
          %v5402 = vsel %vm5375, %v5144, 0
          %5404 = vmatpush.bf16.msra.mxu0 0
          %5405 = vmatpush.bf16.msra.mxu0 0
          %5406 = vmatpush.bf16.msra.mxu0 0
          %5407 = vmatpush.bf16.msra.mxu0 0
          %5408 = vmatpush.bf16.msra.mxu0 0
          %5409 = vmatpush.bf16.msra.mxu0 0
          %5410 = vmatpush.bf16.msra.mxu0 0
          %5411 = vmatpush.bf16.msra.mxu0 %v5402
          %5412 = vmatmul.bf16.gmra.mxu0 %v5399
          %v5413 = vpop.f32.mrf.mxu0
          %v5414 = vadd.f32 0.0, %v5413
          %v5415 = vpop.f32.mrf.mxu0
          %v5416 = vadd.f32 0.0, %v5415
          %5417 = vdwg.mxu0
          %v5420 = vunpack.c.l.b16 %v5363
          %v5421 = vunpack.c.l.b16 %v5364
          %v5422 = vpack.c.b16 %v5421, %v5420
          %v5424 = vsel %vm4059, %v5422, 0
          %v5427 = vsel %vm5375, %v5145, 0
          %5429 = vmatpush.bf16.msra.mxu0 0
          %5430 = vmatpush.bf16.msra.mxu0 0
          %5431 = vmatpush.bf16.msra.mxu0 0
          %5432 = vmatpush.bf16.msra.mxu0 0
          %5433 = vmatpush.bf16.msra.mxu0 0
          %5434 = vmatpush.bf16.msra.mxu0 0
          %5435 = vmatpush.bf16.msra.mxu0 0
          %5436 = vmatpush.bf16.msra.mxu0 %v5427
          %5437 = vmatmul.bf16.gmra.mxu0 %v5424
          %v5438 = vpop.f32.mrf.mxu0
          %v5439 = vadd.f32 0.0, %v5438
          %v5440 = vpop.f32.mrf.mxu0
          %v5441 = vadd.f32 0.0, %v5440
          %5442 = vdwg.mxu0
          %v5445 = vunpack.c.l.b16 %v5365
          %v5446 = vunpack.c.l.b16 %v5366
          %v5447 = vpack.c.b16 %v5446, %v5445
          %v5449 = vsel %vm4059, %v5447, 0
          %v5452 = vsel %vm5375, %v5146, 0
          %5454 = vmatpush.bf16.msra.mxu0 0
          %5455 = vmatpush.bf16.msra.mxu0 0
          %5456 = vmatpush.bf16.msra.mxu0 0
          %5457 = vmatpush.bf16.msra.mxu0 0
          %5458 = vmatpush.bf16.msra.mxu0 0
          %5459 = vmatpush.bf16.msra.mxu0 0
          %5460 = vmatpush.bf16.msra.mxu0 0
          %5461 = vmatpush.bf16.msra.mxu0 %v5452
          %5462 = vmatmul.bf16.gmra.mxu0 %v5449
          %v5463 = vpop.f32.mrf.mxu0
          %v5464 = vadd.f32 0.0, %v5463
          %v5465 = vpop.f32.mrf.mxu0
          %v5466 = vadd.f32 0.0, %v5465
          %5467 = vdwg.mxu0
          %v5468 = vadd.f32 %v5319, %v5389
          %v5469 = vadd.f32 %v5320, %v5391
          %v5470 = vadd.f32 %v5321, %v5414
          %v5471 = vadd.f32 %v5322, %v5416
          %v5472 = vadd.f32 %v5323, %v5439
          %v5473 = vadd.f32 %v5324, %v5441
          %v5474 = vadd.f32 %v5325, %v5464
          %v5475 = vadd.f32 %v5326, %v5466
          %v5476 = vrcp.pop %v5351
          %v5477 = vrcp.pop %v5352
          %v5478 = vrcp.pop %v5353
          %v5479 = vrcp.pop %v5354
          %v5480 = vrcp.pop %v5355
          %v5481 = vrcp.pop %v5356
          %v5482 = vrcp.pop %v5357
          %v5483 = vrcp.pop %v5358
          %v5484 = vmul.f32 %v5468, %v5476
          %v5485 = vmul.f32 %v5469, %v5477
          %v5486 = vmul.f32 %v5470, %v5478
          %v5487 = vmul.f32 %v5471, %v5479
          %v5488 = vmul.f32 %v5472, %v5480
          %v5489 = vmul.f32 %v5473, %v5481
          %v5490 = vmul.f32 %v5474, %v5482
          %v5491 = vmul.f32 %v5475, %v5483
          %v5492 = vrot.slane %v5488, 4
          %v5493 = vsel %vm3440, %v5492, %v5484
          %v5494 = vrot.slane %v5484, 4
          %v5495 = vsel %vm3440, %v5488, %v5494
          %v5497 = vunpack.c.l.s4 1983009808
          %v5498 = vunpack.c.0.s8 %v5497
          %v5499 = vperm.slane %v5493, %v5498
          %v5501 = vunpack.c.l.s4 1983009808
          %v5502 = vunpack.c.0.s8 %v5501
          %v5503 = vperm.slane %v5495, %v5502
          %v5504 = vrot.slane %v5490, 4
          %v5505 = vsel %vm3440, %v5504, %v5486
          %v5506 = vrot.slane %v5486, 4
          %v5507 = vsel %vm3440, %v5490, %v5506
          %v5509 = vunpack.c.l.s4 1983009808
          %v5510 = vunpack.c.0.s8 %v5509
          %v5511 = vperm.slane %v5505, %v5510
          %v5513 = vunpack.c.l.s4 1983009808
          %v5514 = vunpack.c.0.s8 %v5513
          %v5515 = vperm.slane %v5507, %v5514
          %v5516 = vrot.slane %v5511, 4
          %v5517 = vsel %vm3440, %v5516, %v5499
          %v5518 = vrot.slane %v5499, 4
          %v5519 = vsel %vm3440, %v5511, %v5518
          %v5521 = vunpack.c.l.s4 1934713408
          %v5522 = vunpack.c.0.s8 %v5521
          %v5523 = vperm.slane %v5517, %v5522
          %v5525 = vunpack.c.l.s4 1934713408
          %v5526 = vunpack.c.0.s8 %v5525
          %v5527 = vperm.slane %v5519, %v5526
          %v5528 = vrot.slane %v5515, 4
          %v5529 = vsel %vm3440, %v5528, %v5503
          %v5530 = vrot.slane %v5503, 4
          %v5531 = vsel %vm3440, %v5515, %v5530
          %v5533 = vunpack.c.l.s4 1934713408
          %v5534 = vunpack.c.0.s8 %v5533
          %v5535 = vperm.slane %v5529, %v5534
          %v5537 = vunpack.c.l.s4 1934713408
          %v5538 = vunpack.c.0.s8 %v5537
          %v5539 = vperm.slane %v5531, %v5538
          %v5540 = vrot.slane %v5523, 4
          %v5541 = vsel %vm3440, 0.0, %v5540
          %v5542 = vrot.slane %v5527, 4
          %v5543 = vsel %vm3440, 0.0, %v5542
          %v5544 = vrot.slane %v5535, 4
          %v5545 = vsel %vm3440, 0.0, %v5544
          %v5546 = vrot.slane %v5539, 4
          %v5547 = vsel %vm3440, 0.0, %v5546
          %v5548 = vrot.slane %v5489, 4
          %v5549 = vsel %vm3440, %v5548, %v5485
          %v5550 = vrot.slane %v5485, 4
          %v5551 = vsel %vm3440, %v5489, %v5550
          %v5553 = vunpack.c.l.s4 1983009808
          %v5554 = vunpack.c.0.s8 %v5553
          %v5555 = vperm.slane %v5549, %v5554
          %v5557 = vunpack.c.l.s4 1983009808
          %v5558 = vunpack.c.0.s8 %v5557
          %v5559 = vperm.slane %v5551, %v5558
          %v5560 = vrot.slane %v5491, 4
          %v5561 = vsel %vm3440, %v5560, %v5487
          %v5562 = vrot.slane %v5487, 4
          %v5563 = vsel %vm3440, %v5491, %v5562
          %v5565 = vunpack.c.l.s4 1983009808
          %v5566 = vunpack.c.0.s8 %v5565
          %v5567 = vperm.slane %v5561, %v5566
          %v5569 = vunpack.c.l.s4 1983009808
          %v5570 = vunpack.c.0.s8 %v5569
          %v5571 = vperm.slane %v5563, %v5570
          %v5572 = vrot.slane %v5567, 4
          %v5573 = vsel %vm3440, %v5572, %v5555
          %v5574 = vrot.slane %v5555, 4
          %v5575 = vsel %vm3440, %v5567, %v5574
          %v5577 = vunpack.c.l.s4 1934713408
          %v5578 = vunpack.c.0.s8 %v5577
          %v5579 = vperm.slane %v5573, %v5578
          %v5581 = vunpack.c.l.s4 1934713408
          %v5582 = vunpack.c.0.s8 %v5581
          %v5583 = vperm.slane %v5575, %v5582
          %v5584 = vrot.slane %v5571, 4
          %v5585 = vsel %vm3440, %v5584, %v5559
          %v5586 = vrot.slane %v5559, 4
          %v5587 = vsel %vm3440, %v5571, %v5586
          %v5589 = vunpack.c.l.s4 1934713408
          %v5590 = vunpack.c.0.s8 %v5589
          %v5591 = vperm.slane %v5585, %v5590
          %v5593 = vunpack.c.l.s4 1934713408
          %v5594 = vunpack.c.0.s8 %v5593
          %v5595 = vperm.slane %v5587, %v5594
          %v5596 = vrot.slane %v5579, 4
          %v5597 = vsel %vm3440, 0.0, %v5596
          %v5598 = vrot.slane %v5583, 4
          %v5599 = vsel %vm3440, 0.0, %v5598
          %v5600 = vrot.slane %v5591, 4
          %v5601 = vsel %vm3440, 0.0, %v5600
          %v5602 = vrot.slane %v5595, 4
          %v5603 = vsel %vm3440, 0.0, %v5602
          %v5604 = vsel %vm3440, %v5542, %v5523
          %v5606 = vunpack.c.l.s4 1983009808
          %v5607 = vunpack.c.0.s8 %v5606
          %v5608 = vperm.slane %v5604, %v5607
          %v5609 = vrot.slane %v5543, 4
          %v5610 = vsel %vm3440, %v5609, %v5541
          %v5612 = vunpack.c.l.s4 1983009808
          %v5613 = vunpack.c.0.s8 %v5612
          %v5614 = vperm.slane %v5610, %v5613
          %v5615 = vsel %vm3440, %v5546, %v5535
          %v5617 = vunpack.c.l.s4 1983009808
          %v5618 = vunpack.c.0.s8 %v5617
          %v5619 = vperm.slane %v5615, %v5618
          %v5620 = vrot.slane %v5547, 4
          %v5621 = vsel %vm3440, %v5620, %v5545
          %v5623 = vunpack.c.l.s4 1983009808
          %v5624 = vunpack.c.0.s8 %v5623
          %v5625 = vperm.slane %v5621, %v5624
          %v5626 = vrot.slane %v5614, 4
          %v5627 = vsel %vm3440, %v5626, %v5608
          %v5628 = vrot.slane %v5608, 4
          %v5629 = vsel %vm3440, %v5614, %v5628
          %v5631 = vunpack.c.l.s4 1934713408
          %v5632 = vunpack.c.0.s8 %v5631
          %v5633 = vperm.slane %v5627, %v5632
          %v5635 = vunpack.c.l.s4 1934713408
          %v5636 = vunpack.c.0.s8 %v5635
          %v5637 = vperm.slane %v5629, %v5636
          %v5638 = vrot.slane %v5625, 4
          %v5639 = vsel %vm3440, %v5638, %v5619
          %v5640 = vrot.slane %v5619, 4
          %v5641 = vsel %vm3440, %v5625, %v5640
          %v5643 = vunpack.c.l.s4 1934713408
          %v5644 = vunpack.c.0.s8 %v5643
          %v5645 = vperm.slane %v5639, %v5644
          %v5647 = vunpack.c.l.s4 1934713408
          %v5648 = vunpack.c.0.s8 %v5647
          %v5649 = vperm.slane %v5641, %v5648
          %v5650 = vrot.slane %v5645, 4
          %v5651 = vsel %vm3440, %v5650, %v5633
          %v5652 = vrot.slane %v5633, 4
          %v5653 = vsel %vm3440, %v5645, %v5652
          %v5654 = vrot.slane %v5649, 4
          %v5655 = vsel %vm3440, %v5654, %v5637
          %v5656 = vrot.slane %v5637, 4
          %v5657 = vsel %vm3440, %v5649, %v5656
          %v5658 = vsel %vm3440, %v5598, %v5579
          %v5660 = vunpack.c.l.s4 1983009808
          %v5661 = vunpack.c.0.s8 %v5660
          %v5662 = vperm.slane %v5658, %v5661
          %v5663 = vrot.slane %v5599, 4
          %v5664 = vsel %vm3440, %v5663, %v5597
          %v5666 = vunpack.c.l.s4 1983009808
          %v5667 = vunpack.c.0.s8 %v5666
          %v5668 = vperm.slane %v5664, %v5667
          %v5669 = vsel %vm3440, %v5602, %v5591
          %v5671 = vunpack.c.l.s4 1983009808
          %v5672 = vunpack.c.0.s8 %v5671
          %v5673 = vperm.slane %v5669, %v5672
          %v5674 = vrot.slane %v5603, 4
          %v5675 = vsel %vm3440, %v5674, %v5601
          %v5677 = vunpack.c.l.s4 1983009808
          %v5678 = vunpack.c.0.s8 %v5677
          %v5679 = vperm.slane %v5675, %v5678
          %v5680 = vrot.slane %v5668, 4
          %v5681 = vsel %vm3440, %v5680, %v5662
          %v5682 = vrot.slane %v5662, 4
          %v5683 = vsel %vm3440, %v5668, %v5682
          %v5685 = vunpack.c.l.s4 1934713408
          %v5686 = vunpack.c.0.s8 %v5685
          %v5687 = vperm.slane %v5681, %v5686
          %v5689 = vunpack.c.l.s4 1934713408
          %v5690 = vunpack.c.0.s8 %v5689
          %v5691 = vperm.slane %v5683, %v5690
          %v5692 = vrot.slane %v5679, 4
          %v5693 = vsel %vm3440, %v5692, %v5673
          %v5694 = vrot.slane %v5673, 4
          %v5695 = vsel %vm3440, %v5679, %v5694
          %v5697 = vunpack.c.l.s4 1934713408
          %v5698 = vunpack.c.0.s8 %v5697
          %v5699 = vperm.slane %v5693, %v5698
          %v5701 = vunpack.c.l.s4 1934713408
          %v5702 = vunpack.c.0.s8 %v5701
          %v5703 = vperm.slane %v5695, %v5702
          %v5704 = vrot.slane %v5699, 4
          %v5705 = vsel %vm3440, %v5704, %v5687
          %v5706 = vrot.slane %v5687, 4
          %v5707 = vsel %vm3440, %v5699, %v5706
          %v5708 = vrot.slane %v5703, 4
          %v5709 = vsel %vm3440, %v5708, %v5691
          %v5710 = vrot.slane %v5691, 4
          %v5711 = vsel %vm3440, %v5703, %v5710
          %5714 = vrot.lane.b32.xlu0 %v5653, 8
          %v5715 = vpop.permute.xlu0 %5714
          %5716 = vrot.lane.b32.xlu0 %v5707, 8
          %v5717 = vpop.permute.xlu0 %5716
          %5722 = vrot.lane.b32.xlu0 %v5655, 16
          %v5723 = vpop.permute.xlu0 %5722
          %5724 = vrot.lane.b32.xlu0 %v5709, 16
          %v5725 = vpop.permute.xlu0 %5724
          %5730 = vrot.lane.b32.xlu0 %v5657, 24
          %v5731 = vpop.permute.xlu0 %5730
          %5732 = vrot.lane.b32.xlu0 %v5711, 24
          %v5733 = vpop.permute.xlu0 %5732
          %v5736 = vsel %vm4059, %v5651, %v5715
          %v5737 = vsel %vm4059, %v5705, %v5717
          %v5738 = vsel %vm4151, %v5736, %v5723
          %v5739 = vsel %vm4151, %v5737, %v5725
          %v5740 = vsel %vm4436, %v5738, %v5731
          %v5741 = vsel %vm4436, %v5739, %v5733
          %v5742 = vpack.c.bf16 %v5741, %v5740
          %v5744 = vsel %vm3386, %v5742, 0
          %5746 = vmatpush.bf16.msra.mxu0 0
          %5747 = vmatpush.bf16.msra.mxu0 0
          %5748 = vmatpush.bf16.msra.mxu0 0
          %5749 = vmatpush.bf16.msra.mxu0 0
          %5750 = vmatpush.bf16.msra.mxu0 0
          %5751 = vmatpush.bf16.msra.mxu0 0
          %5752 = vmatpush.bf16.msra.mxu0 %v4451
          %5753 = vmatpush.bf16.msra.mxu0 %v4450
          %5754 = vmatmul.bf16.gmra.mxu0 %v5744
          %v5755 = vpop.f32.mrf.mxu0
          %v5756 = vadd.f32 %v4440, %v5755
          %v5757 = vpop.f32.mrf.mxu0
          %v5758 = vadd.f32 %v4440, %v5757
          %5759 = vdwg.mxu0
          %v5760 = vadd.f32 %v5756, %v3367
          %v5761 = vadd.f32 %v5758, %v3368
          %v5762 = vsel %vm3386, %v5760, 0.0
          %5763 = vadd.xlane.f32.xlu0 %v5762
          %v5764 = vpop.xlane.xlu0 %5763
          %v5765 = vsel %vm3386, %v5761, 0.0
          %5766 = vadd.xlane.f32.xlu0 %v5765
          %v5767 = vpop.xlane.xlu0 %5766
          %v5768 = vmul.f32 %v5764, %v4480
          %v5769 = vmul.f32 %v5767, %v4480
          %v5770 = vsub.f32 %v5760, %v5768
          %v5771 = vsub.f32 %v5761, %v5769
          %v5772 = vmul.f32 %v5770, %v5770
          %v5773 = vmul.f32 %v5771, %v5771
          %v5774 = vsel %vm3386, %v5772, 0.0
          %5775 = vadd.xlane.f32.xlu0 %v5774
          %v5776 = vpop.xlane.xlu0 %5775
          %v5777 = vsel %vm3386, %v5773, 0.0
          %5778 = vadd.xlane.f32.xlu0 %v5777
          %v5779 = vpop.xlane.xlu0 %5778
          %v5780 = vmul.f32 %v5776, %v4480
          %v5781 = vmul.f32 %v5779, %v4480
          %v5782 = vadd.f32 %v5780, 1e-05
          %v5783 = vadd.f32 %v5781, 1e-05
          %v5784 = vrsqrt.pop %v5782
          %v5785 = vmul.f32 %v5784, %v5782
          %v5786 = vmul.f32 %v5785, %v5784
          %v5787 = vmul.f32 0.5, %v5786
          %v5788 = vsub.f32 1.5, %v5787
          %v5789 = vmul.f32 %v5784, %v5788
          %vm5790 = vweird.f32 %v5782
          %vm5791 = vweird.f32 %v5784
          %vm5792 = vmor %vm5790, %vm5791
          %v5793 = vsel %vm5792, %v5784, %v5789
          %v5794 = vrsqrt.pop %v5783
          %v5795 = vmul.f32 %v5794, %v5783
          %v5796 = vmul.f32 %v5795, %v5794
          %v5797 = vmul.f32 0.5, %v5796
          %v5798 = vsub.f32 1.5, %v5797
          %v5799 = vmul.f32 %v5794, %v5798
          %vm5800 = vweird.f32 %v5783
          %vm5801 = vweird.f32 %v5794
          %vm5802 = vmor %vm5800, %vm5801
          %v5803 = vsel %vm5802, %v5794, %v5799
          %v5804 = vmul.f32 %v5770, %v5793
          %v5805 = vmul.f32 %v5771, %v5803
          %v5806 = vmul.f32 %v5804, %v4501
          %v5807 = vmul.f32 %v5805, %v4501
          %v5808 = vadd.f32 %v5806, %v4505
          %v5809 = vadd.f32 %v5807, %v4505
          %v5810 = vpack.c.bf16 %v5809, %v5808
          %v5812 = vsel %vm3386, %v5810, 0
          %5814 = vmatpush.bf16.msra.mxu0 0
          %5815 = vmatpush.bf16.msra.mxu0 0
          %5816 = vmatpush.bf16.msra.mxu0 0
          %5817 = vmatpush.bf16.msra.mxu0 0
          %5818 = vmatpush.bf16.msra.mxu0 0
          %5819 = vmatpush.bf16.msra.mxu0 0
          %5820 = vmatpush.bf16.msra.mxu0 %v4521
          %5821 = vmatpush.bf16.msra.mxu0 %v4520
          %5822 = vmatmul.bf16.gmra.mxu0 %v5812
          %v5823 = vpop.f32.mrf.mxu0
          %v5824 = vadd.f32 %v4510, %v5823
          %v5825 = vpop.f32.mrf.mxu0
          %v5826 = vadd.f32 %v4510, %v5825
          %5827 = vdwg.mxu0
          %v5828 = vmax.f32 %v5824, 0.0
          %v5829 = vmax.f32 %v5826, 0.0
          %v5830 = vpack.c.bf16 %v5829, %v5828
          %v5832 = vsel %vm4569, %v5830, 0
          %5834 = vmatpush.bf16.msra.mxu0 0
          %5835 = vmatpush.bf16.msra.mxu0 0
          %5836 = vmatpush.bf16.msra.mxu0 0
          %5837 = vmatpush.bf16.msra.mxu0 0
          %5838 = vmatpush.bf16.msra.mxu0 %v4564
          %5839 = vmatpush.bf16.msra.mxu0 %v4563
          %5840 = vmatpush.bf16.msra.mxu0 %v4562
          %5841 = vmatpush.bf16.msra.mxu0 %v4561
          %5842 = vmatmul.bf16.gmra.mxu0 %v5832
          %v5843 = vpop.f32.mrf.mxu0
          %v5844 = vadd.f32 %v4543, %v5843
          %v5845 = vpop.f32.mrf.mxu0
          %v5846 = vadd.f32 %v4543, %v5845
          %5847 = vdwg.mxu0
          %v5848 = vadd.f32 %v5808, %v5844
          %v5849 = vadd.f32 %v5809, %v5846
          %v5850 = vsel %vm3386, %v5848, 0.0
          %5851 = vadd.xlane.f32.xlu0 %v5850
          %v5852 = vpop.xlane.xlu0 %5851
          %v5853 = vsel %vm3386, %v5849, 0.0
          %5854 = vadd.xlane.f32.xlu0 %v5853
          %v5855 = vpop.xlane.xlu0 %5854
          %v5856 = vmul.f32 %v5852, %v4480
          %v5857 = vmul.f32 %v5855, %v4480
          %v5858 = vsub.f32 %v5848, %v5856
          %v5859 = vsub.f32 %v5849, %v5857
          %v5860 = vmul.f32 %v5858, %v5858
          %v5861 = vmul.f32 %v5859, %v5859
          %v5862 = vsel %vm3386, %v5860, 0.0
          %5863 = vadd.xlane.f32.xlu0 %v5862
          %v5864 = vpop.xlane.xlu0 %5863
          %v5865 = vsel %vm3386, %v5861, 0.0
          %5866 = vadd.xlane.f32.xlu0 %v5865
          %v5867 = vpop.xlane.xlu0 %5866
          %v5868 = vmul.f32 %v5864, %v4480
          %v5869 = vmul.f32 %v5867, %v4480
          %v5870 = vadd.f32 %v5868, 1e-05
          %v5871 = vadd.f32 %v5869, 1e-05
          %v5872 = vrsqrt.pop %v5870
          %v5873 = vmul.f32 %v5872, %v5870
          %v5874 = vmul.f32 %v5873, %v5872
          %v5875 = vmul.f32 0.5, %v5874
          %v5876 = vsub.f32 1.5, %v5875
          %v5877 = vmul.f32 %v5872, %v5876
          %vm5878 = vweird.f32 %v5870
          %vm5879 = vweird.f32 %v5872
          %vm5880 = vmor %vm5878, %vm5879
          %v5881 = vsel %vm5880, %v5872, %v5877
          %v5882 = vrsqrt.pop %v5871
          %v5883 = vmul.f32 %v5882, %v5871
          %v5884 = vmul.f32 %v5883, %v5882
          %v5885 = vmul.f32 0.5, %v5884
          %v5886 = vsub.f32 1.5, %v5885
          %v5887 = vmul.f32 %v5882, %v5886
          %vm5888 = vweird.f32 %v5871
          %vm5889 = vweird.f32 %v5882
          %vm5890 = vmor %vm5888, %vm5889
          %v5891 = vsel %vm5890, %v5882, %v5887
          %v5892 = vmul.f32 %v5858, %v5881
          %v5893 = vmul.f32 %v5859, %v5891
          %v5894 = vmul.f32 %v5892, %v4610
          %v5895 = vmul.f32 %v5893, %v4610
          %v5896 = vadd.f32 %v5894, %v4614
          %v5897 = vadd.f32 %v5895, %v4614
          %5898 = vst.msk [vmem:[%s778] sm:$0xff] %vm3386, %v5896
          %5899 = vst.msk [vmem:[%s778 + $0x8] sm:$0xff] %vm3386, %v5897
        $region104: #{tpu_custom_call.1} parent=75 // pred_fallthru
          _
        %s5900 = sand.u32 %s435, 1
        %s5901 = scalar_lea.sflag [#allocation6], %s5900
        %s5902 = sand.u32 %s435, 1
        %s5903 = smul.addr %s5902, 8
        %s5904 = scalar_lea.vmem [#allocation12], %s5903
        %s5905 = sand.u32 %s461, 1
        %s5906 = scalar_lea.sflag [#allocation14], %s5905
        %s5907 = sand.u32 %s461, 1
        %s5908 = smul.addr %s5907, 16
        %s5909 = scalar_lea.vmem [#allocation13], %s5908
        // Predicated region
        $region105: #{tpu_custom_call.1} parent=75 // pred_check
          %p5910 = pneg %p445
        $region106: #{tpu_custom_call.1} parent=75 // pred_check_branch
          %5912 = sbr.rel (%p5910) target = $region108
        $region107: #{tpu_custom_call.1} parent=75 // pred_region
          %5914 = vsyncadd %s5901, 0
          %s5915 = smul.addr %s55, 8
          %s5916 = scalar_lea.hbm %s15, %s5915
          %s5918 = sshll.u32 %s5904, 4
          %s5919 = int_to_ptr.vmem [resolvable:$true] %s5918
          %s5920 = sshll.u32 %s5916, 4
          %s5921 = int_to_ptr.hbm [resolvable:$true] %s5920
          %5923 = dma.vmem_to_hbm [thread:$0]  %s5919, 128, %s5921, %s5901
        $region108: #{tpu_custom_call.1} parent=75 // pred_fallthru
          _
        // Predicated region
        $region109: #{tpu_custom_call.1} parent=75 // pred_check
          %p5924 = pneg %p471
        $region110: #{tpu_custom_call.1} parent=75 // pred_check_branch
          %5926 = sbr.rel (%p5924) target = $region112
        $region111: #{tpu_custom_call.1} parent=75 // pred_region
          %5928 = vsyncadd %s5906, 0
          %s5929 = smul.addr %s55, 2
          %s5930 = smul.addr %s5929, 8
          %s5931 = scalar_lea.hbm %s16, %s5930
          %s5932 = sshll.u32 %s5909, 4
          %s5933 = int_to_ptr.vmem [resolvable:$true] %s5932
          %s5934 = sshll.u32 %s5931, 4
          %s5935 = int_to_ptr.hbm [resolvable:$true] %s5934
          %5940 = dma.vmem_to_hbm [thread:$0]  %s5933, 256, %s5935, %s5906, 128, 128, 8
        $region112: #{tpu_custom_call.1} parent=75 // pred_fallthru
          _
      $region76: #{tpu_custom_call.1} parent=5 // pred_fallthru
        _
      %p5941 = scmp.le.s32.totalorder 2, %s46
      // Predicated region
      $region113: #{tpu_custom_call.1} parent=5 // pred_check
        %p5942 = pneg %p5941
      $region114: #{tpu_custom_call.1} parent=5 // pred_check_branch
        %5944 = sbr.rel (%p5942) target = $region116
      $region115: #{tpu_custom_call.1} parent=5 // pred_region
        %s5945 = ssub.s32 %s46, 2
        // Predicated region
        $region117: #{tpu_custom_call.1} parent=115 // pred_check
          %p5946 = pneg %p451
        $region118: #{tpu_custom_call.1} parent=115 // pred_check_branch
          %5948 = sbr.rel (%p5946) target = $region120
        $region119: #{tpu_custom_call.1} parent=115 // pred_region
          %s5949 = sand.u32 %s436, 1
          %s5950 = scalar_lea.sflag [#allocation6], %s5949
          %s5951 = sand.u32 %s436, 1
          %s5952 = smul.addr %s5951, 8
          %s5953 = scalar_lea.vmem [#allocation12], %s5952
          %5955 = dma.done %s5950, 128
        $region120: #{tpu_custom_call.1} parent=115 // pred_fallthru
          _
        // Predicated region
        $region121: #{tpu_custom_call.1} parent=115 // pred_check
          %p5956 = pneg %p477
        $region122: #{tpu_custom_call.1} parent=115 // pred_check_branch
          %5958 = sbr.rel (%p5956) target = $region124
        $region123: #{tpu_custom_call.1} parent=115 // pred_region
          %s5959 = sand.u32 %s462, 1
          %s5960 = scalar_lea.sflag [#allocation14], %s5959
          %s5961 = sand.u32 %s462, 1
          %s5962 = smul.addr %s5961, 16
          %s5963 = scalar_lea.vmem [#allocation13], %s5962
          %5965 = dma.done %s5960, 256
        $region124: #{tpu_custom_call.1} parent=115 // pred_fallthru
          _
      $region116: #{tpu_custom_call.1} parent=5 // pred_fallthru
        _
    $region6: #{tpu_custom_call.1} parent=1 // loop_footer
      %s50 = sadd.s32 1, %s46
    $region7: #{tpu_custom_call.1} parent=1 // loop_footer_branch
      %45 = sbr.rel target = $region3
    $region8: #{tpu_custom_call.1} parent=1 // loop_exit
      _
    %5966 = vsyncpa [#allocation5], 1
    %s5967 = scalar_lea.sflag [#allocation5], 1
    %5968 = vsyncpa %s5967, 1
    %5969 = vsyncpa [#allocation8], 1
    %s5970 = scalar_lea.sflag [#allocation8], 1
    %5971 = vsyncpa %s5970, 1
    %5972 = vsyncpa [#allocation11], 1
    %s5973 = scalar_lea.sflag [#allocation11], 1
    %5974 = vsyncpa %s5973, 1
    %5975 = vsyncpa [#allocation6], 1
    %s5976 = scalar_lea.sflag [#allocation6], 1
    %5977 = vsyncpa %s5976, 1
    %5978 = vsyncpa [#allocation14], 1
    %s5979 = scalar_lea.sflag [#allocation14], 1
    %5980 = vsyncpa %s5979, 1

</llo_original>
